<compile_context>
chip_gen: v7x
topology: tpu7x:2x2x1
jax: 0.10.0
libtpu: 0.0.40
codegen_flags: <defaults>
</compile_context>

<pallas_src>
import functools

import jax
import jax.numpy as jnp
from jax import lax
from jax.experimental import pallas as pl
from jax.experimental.pallas import tpu as pltpu


# Flip to False to compare bit-closely against a f32 PyTorch reference
# (approx reciprocal adds ~1e-3 relative error to each softmax row).
_APPROX_RECIP = True


# --------------------------------------------------------------------------
# Fused forward kernel (one grid step == `batch_block` batch elements)
# --------------------------------------------------------------------------

def _image_to_audio_kernel(
        img_ref,                                             # (Bb, Ti, D) f32
        img_w_ref, img_b_ref, img_pos_ref, aud_pos_ref,
        sa_wqkv_ref, sa_bqkv_ref, sa_wo_ref, sa_bo_ref,
        ca_wq_ref, ca_bq_ref, ca_wkv_ref, ca_bkv_ref, ca_wo_ref, ca_bo_ref,
        ln1_g_ref, ln1_b_ref, ln2_g_ref, ln2_b_ref, ln3_g_ref, ln3_b_ref,
        ffn_w1_ref, ffn_b1_ref, ffn_w2_ref, ffn_b2_ref,
        tok_w_ref, tok_b_ref,
        out_ref,                                             # (Bb, Ta, Vp) f32
        *, nhead):
    f32 = jnp.float32
    bf16 = jnp.bfloat16

    Bb, Ti, D = img_ref.shape
    Ta = aud_pos_ref.shape[1]
    num_layers = sa_wqkv_ref.shape[0]
    Dh = D // nhead
    scale = 1.0 / float(Dh) ** 0.5
    Ma = Bb * Ta
    Mi = Bb * Ti

    def mm(a, w):
        # bf16 x bf16 MXU matmul with f32 accumulation.
        return jnp.dot(a.astype(bf16), w, preferred_element_type=f32)

    def layer_norm(x, g, b):
        mean = jnp.mean(x, axis=-1, keepdims=True)
        var = jnp.mean(jnp.square(x - mean), axis=-1, keepdims=True)
        return (x - mean) * lax.rsqrt(var + 1e-5) * g + b

    # ---- hoisted causal mask (additive bias), built once, reused L*H times --
    row = lax.broadcasted_iota(jnp.int32, (Ta, Ta), 0)
    col = lax.broadcasted_iota(jnp.int32, (Ta, Ta), 1)
    causal_bias = jnp.where(col <= row, 0.0, -jnp.inf).astype(f32)   # (Ta, Ta)

    def mha(q_all, k_all, v_all, bias):
        # q_all: (Bb, Tq, D) f32 (already scaled); k_all/v_all: (Bb, Tk, D).
        # Scores via contracted-last-dim einsum -> no k transpose on the XLU.
        outs = []
        for h in range(nhead):
            lo, hi = h * Dh, (h + 1) * Dh
            qh = q_all[:, :, lo:hi].astype(bf16)
            kh = k_all[:, :, lo:hi].astype(bf16)
            vh = v_all[:, :, lo:hi].astype(bf16)
            s = jnp.einsum('bqd,bkd->bqk', qh, kh,
                           preferred_element_type=f32)       # (Bb, Tq, Tk)
            if bias is not None:
                s = s + bias
            m = jnp.max(s, axis=-1, keepdims=True)
            p = jnp.exp(s - m)
            denom = jnp.sum(p, axis=-1, keepdims=True)
            p = p * pl.reciprocal(denom, approx=_APPROX_RECIP)
            outs.append(jnp.einsum('bqk,bkd->bqd', p.astype(bf16), vh,
                                   preferred_element_type=f32))
        return jnp.concatenate(outs, axis=-1)                # (Bb, Tq, D)

    # ---- image embedding (decoder memory), computed once ----
    img_flat = img_ref[...].reshape(Mi, D)
    mem = (mm(img_flat, img_w_ref[...]) + img_b_ref[...]).reshape(Bb, Ti, D)
    mem = mem + img_pos_ref[...]                             # (1, Ti, D) bcast
    mem_flat_bf = mem.reshape(Mi, D).astype(bf16)

    # ---- decoder target (audio positional embedding, batch-invariant) ----
    x = jnp.broadcast_to(aud_pos_ref[...], (Bb, Ta, D)).reshape(Ma, D)

    for l in range(num_layers):
        # ---------- self-attention (causal), fused QKV projection ----------
        qkv = mm(x, sa_wqkv_ref[l]) + sa_bqkv_ref[l]         # (Ma, 3D)
        q = (qkv[:, :D] * scale).reshape(Bb, Ta, D)
        k = qkv[:, D:2 * D].reshape(Bb, Ta, D)
        v = qkv[:, 2 * D:].reshape(Bb, Ta, D)
        o = mha(q, k, v, causal_bias)                        # (Bb, Ta, D)
        attn = mm(o.reshape(Ma, D), sa_wo_ref[l]) + sa_bo_ref[l]
        x = layer_norm(x + attn, ln1_g_ref[l], ln1_b_ref[l])

        # ---------- cross-attention over image memory ----------
        q = ((mm(x, ca_wq_ref[l]) + ca_bq_ref[l]) * scale).reshape(Bb, Ta, D)
        kv = mm(mem_flat_bf, ca_wkv_ref[l]) + ca_bkv_ref[l]  # (Mi, 2D)
        k = kv[:, :D].reshape(Bb, Ti, D)
        v = kv[:, D:].reshape(Bb, Ti, D)
        o = mha(q, k, v, None)                               # (Bb, Ta, D)
        attn = mm(o.reshape(Ma, D), ca_wo_ref[l]) + ca_bo_ref[l]
        x = layer_norm(x + attn, ln2_g_ref[l], ln2_b_ref[l])

        # ---------- feed-forward (ReLU) ----------
        hdn = jnp.maximum(mm(x, ffn_w1_ref[l]) + ffn_b1_ref[l], 0.0)
        ff = mm(hdn, ffn_w2_ref[l]) + ffn_b2_ref[l]
        x = layer_norm(x + ff, ln3_g_ref[l], ln3_b_ref[l])

    # ---- logits head (vocab padded to 128 -> lane-dense store) ----
    logits = mm(x, tok_w_ref[...]) + tok_b_ref[...]          # (Ma, Vp)
    out_ref[...] = logits.reshape(Bb, Ta, -1).astype(out_ref.dtype)


# --------------------------------------------------------------------------
# Wrapper
# --------------------------------------------------------------------------

_PARAM_ORDER = (
    "img_w", "img_b", "img_pos", "aud_pos",
    "sa_wqkv", "sa_bqkv", "sa_wo", "sa_bo",
    "ca_wq", "ca_bq", "ca_wkv", "ca_bkv", "ca_wo", "ca_bo",
    "ln1_g", "ln1_b", "ln2_g", "ln2_b", "ln3_g", "ln3_b",
    "ffn_w1", "ffn_b1", "ffn_w2", "ffn_b2",
    "tok_w", "tok_b",
)


def _full_block_spec(shape):
    ndim = len(shape)
    return pl.BlockSpec(shape, lambda b: (0,) * ndim)


def image_to_audio_forward(image_tokens, params, *, nhead, vocab_size,
                           batch_block=None):
    """image_tokens: (B, image_token_len, D) -> (B, audio_token_len, vocab)."""
    B, Ti, D = image_tokens.shape
    Ta = params["aud_pos"].shape[1]
    Vp = params["tok_w"].shape[1]

    # Keep >= 2 grid steps (megacore on v7x) while batching what we can per
    # step (fewer per-step overheads / bigger matmul M on single-TC chips).
    if batch_block is None:
        batch_block = B // 2 if (B >= 2 and B % 2 == 0) else B
    assert B % batch_block == 0
    grid = (B // batch_block,)

    in_specs = [pl.BlockSpec((batch_block, Ti, D), lambda b: (b, 0, 0))]
    args = [image_tokens]
    for name in _PARAM_ORDER:
        arr = params[name]
        in_specs.append(_full_block_spec(arr.shape))
        args.append(arr)

    # Explicit scoped-VMEM limit sized to the resident (double-buffered)
    # blocks, with headroom for activations/temporaries.
    def _nbytes(shape, itemsize):
        n = itemsize
        for s in shape:
            n *= s
        return n

    resident = 2 * _nbytes((batch_block, Ti, D), image_tokens.dtype.itemsize)
    resident += 2 * _nbytes((batch_block, Ta, Vp), 4)
    for name in _PARAM_ORDER:
        a = params[name]
        resident += 2 * _nbytes(a.shape, a.dtype.itemsize)
    vmem_limit = int(min(max(2 * resident + (4 << 20), 16 << 20), 64 << 20))

    kernel = functools.partial(_image_to_audio_kernel, nhead=nhead)

    out = pl.pallas_call(
        kernel,
        out_shape=jax.ShapeDtypeStruct((B, Ta, Vp), jnp.float32),
        grid=grid,
        in_specs=in_specs,
        out_specs=pl.BlockSpec((batch_block, Ta, Vp), lambda b: (b, 0, 0)),
        compiler_params=pltpu.CompilerParams(
            dimension_semantics=("parallel",),
            vmem_limit_bytes=vmem_limit),
    )(*args)
    return out[:, :, :vocab_size]


# --------------------------------------------------------------------------
# Deterministic synthetic parameters (fused, lane-dense layout)
# --------------------------------------------------------------------------

def pack_params(key, *, latent_dim, nhead, num_layers, audio_token_len,
                image_token_len, vocab_size, ff_dim):
    D, L, Fd = latent_dim, num_layers, ff_dim
    del nhead  # head split happens inside the kernel on fused tensors
    Vp = ((vocab_size + 127) // 128) * 128       # lane-dense padded vocab

    keys = iter(jax.random.split(key, 16))

    def w(shape, scale=0.05):
        return (scale * jax.random.normal(next(keys), shape, jnp.float32)
                ).astype(jnp.bfloat16)

    def zeros(shape):
        return jnp.zeros(shape, jnp.float32)

    def ones(shape):
        return jnp.ones(shape, jnp.float32)

    tok_w = 0.05 * jax.random.normal(next(keys), (D, vocab_size), jnp.float32)
    tok_w = jnp.pad(tok_w, ((0, 0), (0, Vp - vocab_size))).astype(jnp.bfloat16)

    return {
        "img_w": w((D, D)),
        "img_b": zeros((1, D)),
        "img_pos": jax.random.normal(next(keys), (1, image_token_len, D),
                                     jnp.float32),
        "aud_pos": jax.random.normal(next(keys), (1, audio_token_len, D),
                                     jnp.float32),
        # self-attention: fused QKV + output projection (lane-dense)
        "sa_wqkv": w((L, D, 3 * D)),
        "sa_bqkv": zeros((L, 1, 3 * D)),
        "sa_wo": w((L, D, D)),
        "sa_bo": zeros((L, 1, D)),
        # cross-attention: fused Q, fused KV, output projection
        "ca_wq": w((L, D, D)),
        "ca_bq": zeros((L, 1, D)),
        "ca_wkv": w((L, D, 2 * D)),
        "ca_bkv": zeros((L, 1, 2 * D)),
        "ca_wo": w((L, D, D)),
        "ca_bo": zeros((L, 1, D)),
        # LayerNorms
        "ln1_g": ones((L, 1, D)), "ln1_b": zeros((L, 1, D)),
        "ln2_g": ones((L, 1, D)), "ln2_b": zeros((L, 1, D)),
        "ln3_g": ones((L, 1, D)), "ln3_b": zeros((L, 1, D)),
        # FFN
        "ffn_w1": w((L, D, Fd)),
        "ffn_b1": zeros((L, 1, Fd)),
        "ffn_w2": w((L, Fd, D)),
        "ffn_b2": zeros((L, 1, D)),
        # logits head (vocab padded to multiple of 128 with zeros)
        "tok_w": tok_w,
        "tok_b": zeros((1, Vp)),
    }


# --------------------------------------------------------------------------

if __name__ == "__main__":
    # Small shapes consistent with the module's forward.
    B = 2
    LATENT_DIM = 32
    NHEAD = 4
    NUM_LAYERS = 2
    AUDIO_TOKEN_LEN = 8
    IMAGE_TOKEN_LEN = 8
    VOCAB_SIZE = 64
    FF_DIM = 64     # small stand-in for PyTorch's default dim_feedforward=2048

    key = jax.random.PRNGKey(0)
    k_params, k_input = jax.random.split(key)

    params = pack_params(k_params, latent_dim=LATENT_DIM, nhead=NHEAD,
                         num_layers=NUM_LAYERS,
                         audio_token_len=AUDIO_TOKEN_LEN,
                         image_token_len=IMAGE_TOKEN_LEN,
                         vocab_size=VOCAB_SIZE, ff_dim=FF_DIM)

    image_tokens = jax.random.normal(
        k_input, (B, IMAGE_TOKEN_LEN, LATENT_DIM), jnp.float32)

    fwd = jax.jit(functools.partial(image_to_audio_forward,
                                    nhead=NHEAD, vocab_size=VOCAB_SIZE))
    logits = jax.block_until_ready(fwd(image_tokens, params))

    assert logits.shape == (B, AUDIO_TOKEN_LEN, VOCAB_SIZE), logits.shape
    assert logits.dtype == jnp.float32
    assert bool(jnp.all(jnp.isfinite(logits)))

    print("KERNEL_OK")
</pallas_src>

<mosaic_0001>
module attributes {stable_mosaic.version = 11 : i64} {
  func.func @_image_to_audio_kernel(%arg0: i32, %arg1: memref<1x8x32xf32, #tpu.memory_space<vmem>>, %arg2: memref<32x32xbf16, #tpu.memory_space<vmem>>, %arg3: memref<1x32xf32, #tpu.memory_space<vmem>>, %arg4: memref<1x8x32xf32, #tpu.memory_space<vmem>>, %arg5: memref<1x8x32xf32, #tpu.memory_space<vmem>>, %arg6: memref<2x32x96xbf16, #tpu.memory_space<vmem>>, %arg7: memref<2x1x96xf32, #tpu.memory_space<vmem>>, %arg8: memref<2x32x32xbf16, #tpu.memory_space<vmem>>, %arg9: memref<2x1x32xf32, #tpu.memory_space<vmem>>, %arg10: memref<2x32x32xbf16, #tpu.memory_space<vmem>>, %arg11: memref<2x1x32xf32, #tpu.memory_space<vmem>>, %arg12: memref<2x32x64xbf16, #tpu.memory_space<vmem>>, %arg13: memref<2x1x64xf32, #tpu.memory_space<vmem>>, %arg14: memref<2x32x32xbf16, #tpu.memory_space<vmem>>, %arg15: memref<2x1x32xf32, #tpu.memory_space<vmem>>, %arg16: memref<2x1x32xf32, #tpu.memory_space<vmem>>, %arg17: memref<2x1x32xf32, #tpu.memory_space<vmem>>, %arg18: memref<2x1x32xf32, #tpu.memory_space<vmem>>, %arg19: memref<2x1x32xf32, #tpu.memory_space<vmem>>, %arg20: memref<2x1x32xf32, #tpu.memory_space<vmem>>, %arg21: memref<2x1x32xf32, #tpu.memory_space<vmem>>, %arg22: memref<2x32x64xbf16, #tpu.memory_space<vmem>>, %arg23: memref<2x1x64xf32, #tpu.memory_space<vmem>>, %arg24: memref<2x64x32xbf16, #tpu.memory_space<vmem>>, %arg25: memref<2x1x32xf32, #tpu.memory_space<vmem>>, %arg26: memref<32x128xbf16, #tpu.memory_space<vmem>>, %arg27: memref<1x128xf32, #tpu.memory_space<vmem>>, %arg28: memref<1x8x128xf32, #tpu.memory_space<vmem>>) attributes {dimension_semantics = [#tpu.dimension_semantics<parallel>], iteration_bounds = array<i64: 2>, scalar_prefetch = 0 : i64, scratch_operands = 0 : i64, tpu.core_type = #tpu.core_type<tc>, window_params = [{transform_indices = @transform_0, window_bounds = array<i64: 1, 8, 32>}, {pipeline_mode = #tpu.pipeline_mode<synchronous>, transform_indices = @transform_1, window_bounds = array<i64: 32, 32>}, {pipeline_mode = #tpu.pipeline_mode<synchronous>, transform_indices = @transform_2, window_bounds = array<i64: 1, 32>}, {pipeline_mode = #tpu.pipeline_mode<synchronous>, transform_indices = @transform_3, window_bounds = array<i64: 1, 8, 32>}, {pipeline_mode = #tpu.pipeline_mode<synchronous>, transform_indices = @transform_4, window_bounds = array<i64: 1, 8, 32>}, {pipeline_mode = #tpu.pipeline_mode<synchronous>, transform_indices = @transform_5, window_bounds = array<i64: 2, 32, 96>}, {pipeline_mode = #tpu.pipeline_mode<synchronous>, transform_indices = @transform_6, window_bounds = array<i64: 2, 1, 96>}, {pipeline_mode = #tpu.pipeline_mode<synchronous>, transform_indices = @transform_7, window_bounds = array<i64: 2, 32, 32>}, {pipeline_mode = #tpu.pipeline_mode<synchronous>, transform_indices = @transform_8, window_bounds = array<i64: 2, 1, 32>}, {pipeline_mode = #tpu.pipeline_mode<synchronous>, transform_indices = @transform_9, window_bounds = array<i64: 2, 32, 32>}, {pipeline_mode = #tpu.pipeline_mode<synchronous>, transform_indices = @transform_10, window_bounds = array<i64: 2, 1, 32>}, {pipeline_mode = #tpu.pipeline_mode<synchronous>, transform_indices = @transform_11, window_bounds = array<i64: 2, 32, 64>}, {pipeline_mode = #tpu.pipeline_mode<synchronous>, transform_indices = @transform_12, window_bounds = array<i64: 2, 1, 64>}, {pipeline_mode = #tpu.pipeline_mode<synchronous>, transform_indices = @transform_13, window_bounds = array<i64: 2, 32, 32>}, {pipeline_mode = #tpu.pipeline_mode<synchronous>, transform_indices = @transform_14, window_bounds = array<i64: 2, 1, 32>}, {pipeline_mode = #tpu.pipeline_mode<synchronous>, transform_indices = @transform_15, window_bounds = array<i64: 2, 1, 32>}, {pipeline_mode = #tpu.pipeline_mode<synchronous>, transform_indices = @transform_16, window_bounds = array<i64: 2, 1, 32>}, {pipeline_mode = #tpu.pipeline_mode<synchronous>, transform_indices = @transform_17, window_bounds = array<i64: 2, 1, 32>}, {pipeline_mode = #tpu.pipeline_mode<synchronous>, transform_indices = @transform_18, window_bounds = array<i64: 2, 1, 32>}, {pipeline_mode = #tpu.pipeline_mode<synchronous>, transform_indices = @transform_19, window_bounds = array<i64: 2, 1, 32>}, {pipeline_mode = #tpu.pipeline_mode<synchronous>, transform_indices = @transform_20, window_bounds = array<i64: 2, 1, 32>}, {pipeline_mode = #tpu.pipeline_mode<synchronous>, transform_indices = @transform_21, window_bounds = array<i64: 2, 32, 64>}, {pipeline_mode = #tpu.pipeline_mode<synchronous>, transform_indices = @transform_22, window_bounds = array<i64: 2, 1, 64>}, {pipeline_mode = #tpu.pipeline_mode<synchronous>, transform_indices = @transform_23, window_bounds = array<i64: 2, 64, 32>}, {pipeline_mode = #tpu.pipeline_mode<synchronous>, transform_indices = @transform_24, window_bounds = array<i64: 2, 1, 32>}, {pipeline_mode = #tpu.pipeline_mode<synchronous>, transform_indices = @transform_25, window_bounds = array<i64: 32, 128>}, {pipeline_mode = #tpu.pipeline_mode<synchronous>, transform_indices = @transform_26, window_bounds = array<i64: 1, 128>}, {transform_indices = @transform_27, window_bounds = array<i64: 1, 8, 128>}]} {
    %0 = tpu.iota {dimensions = array<i32: 0>} : vector<8x8xi32>
    %1 = tpu.iota {dimensions = array<i32: 1>} : vector<8x8xi32>
    %2 = arith.cmpi sle, %1, %0 : vector<8x8xi32>
    %cst = arith.constant 0.000000e+00 : f32
    %cst_0 = arith.constant 0xFF800000 : f32
    %3 = vector.broadcast %cst : f32 to vector<8x8xf32>
    %4 = vector.broadcast %cst_0 : f32 to vector<8x8xf32>
    %5 = arith.select %2, %3, %4 : vector<8x8xi1>, vector<8x8xf32>
    %c0 = arith.constant 0 : index
    %c0_1 = arith.constant 0 : index
    %c0_2 = arith.constant 0 : index
    %6 = vector.load %arg1[%c0, %c0_1, %c0_2] : memref<1x8x32xf32, #tpu.memory_space<vmem>>, vector<1x8x32xf32>
    %7 = vector.shape_cast %6 : vector<1x8x32xf32> to vector<8x32xf32>
    %c0_3 = arith.constant 0 : index
    %c0_4 = arith.constant 0 : index
    %8 = vector.load %arg2[%c0_3, %c0_4] : memref<32x32xbf16, #tpu.memory_space<vmem>>, vector<32x32xbf16>
    %9 = arith.truncf %7 : vector<8x32xf32> to vector<8x32xbf16>
    %cst_5 = arith.constant dense<0.000000e+00> : vector<8x32xf32>
    %10 = tpu.matmul %9, %8, %cst_5 {dimension_numbers = #tpu.dot_dimension_numbers<[1], [0], [0], [1], [0, 0, 1, 1], [], []>} : vector<8x32xbf16>, vector<32x32xbf16>, vector<8x32xf32> -> vector<8x32xf32>
    %c0_6 = arith.constant 0 : index
    %c0_7 = arith.constant 0 : index
    %11 = vector.load %arg3[%c0_6, %c0_7] : memref<1x32xf32, #tpu.memory_space<vmem>>, vector<1x32xf32>
    %12 = vector.broadcast %11 : vector<1x32xf32> to vector<8x32xf32>
    %13 = arith.addf %10, %12 : vector<8x32xf32>
    %14 = vector.shape_cast %13 : vector<8x32xf32> to vector<1x8x32xf32>
    %c0_8 = arith.constant 0 : index
    %c0_9 = arith.constant 0 : index
    %c0_10 = arith.constant 0 : index
    %15 = vector.load %arg4[%c0_8, %c0_9, %c0_10] : memref<1x8x32xf32, #tpu.memory_space<vmem>>, vector<1x8x32xf32>
    %16 = arith.addf %14, %15 : vector<1x8x32xf32>
    %17 = vector.shape_cast %16 : vector<1x8x32xf32> to vector<8x32xf32>
    %18 = arith.truncf %17 : vector<8x32xf32> to vector<8x32xbf16>
    %c0_11 = arith.constant 0 : index
    %c0_12 = arith.constant 0 : index
    %c0_13 = arith.constant 0 : index
    %19 = vector.load %arg5[%c0_11, %c0_12, %c0_13] : memref<1x8x32xf32, #tpu.memory_space<vmem>>, vector<1x8x32xf32>
    %20 = vector.shape_cast %19 : vector<1x8x32xf32> to vector<8x32xf32>
    %c0_14 = arith.constant 0 : index
    %c0_15 = arith.constant 0 : index
    %c0_16 = arith.constant 0 : index
    %21 = vector.load %arg6[%c0_14, %c0_15, %c0_16] : memref<2x32x96xbf16, #tpu.memory_space<vmem>>, vector<1x32x96xbf16>
    %22 = vector.shape_cast %21 : vector<1x32x96xbf16> to vector<32x96xbf16>
    %23 = arith.truncf %20 : vector<8x32xf32> to vector<8x32xbf16>
    %cst_17 = arith.constant dense<0.000000e+00> : vector<8x96xf32>
    %24 = tpu.matmul %23, %22, %cst_17 {dimension_numbers = #tpu.dot_dimension_numbers<[1], [0], [0], [1], [0, 0, 1, 1], [], []>} : vector<8x32xbf16>, vector<32x96xbf16>, vector<8x96xf32> -> vector<8x96xf32>
    %c0_18 = arith.constant 0 : index
    %c0_19 = arith.constant 0 : index
    %c0_20 = arith.constant 0 : index
    %25 = vector.load %arg7[%c0_18, %c0_19, %c0_20] : memref<2x1x96xf32, #tpu.memory_space<vmem>>, vector<1x1x96xf32>
    %26 = vector.shape_cast %25 : vector<1x1x96xf32> to vector<1x96xf32>
    %27 = vector.broadcast %26 : vector<1x96xf32> to vector<8x96xf32>
    %28 = arith.addf %24, %27 : vector<8x96xf32>
    %29 = vector.extract_strided_slice %28 {offsets = [0, 0], sizes = [8, 32], strides = [1, 1]} : vector<8x96xf32> to vector<8x32xf32>
    %cst_21 = arith.constant 0.353553385 : f32
    %30 = vector.broadcast %cst_21 : f32 to vector<8x32xf32>
    %31 = arith.mulf %29, %30 : vector<8x32xf32>
    %32 = vector.shape_cast %31 : vector<8x32xf32> to vector<1x8x32xf32>
    %33 = vector.extract_strided_slice %28 {offsets = [0, 32], sizes = [8, 32], strides = [1, 1]} : vector<8x96xf32> to vector<8x32xf32>
    %34 = vector.shape_cast %33 : vector<8x32xf32> to vector<1x8x32xf32>
    %35 = vector.extract_strided_slice %28 {offsets = [0, 64], sizes = [8, 32], strides = [1, 1]} : vector<8x96xf32> to vector<8x32xf32>
    %36 = vector.shape_cast %35 : vector<8x32xf32> to vector<1x8x32xf32>
    %37 = vector.extract_strided_slice %32 {offsets = [0, 0, 0], sizes = [1, 8, 8], strides = [1, 1, 1]} : vector<1x8x32xf32> to vector<1x8x8xf32>
    %38 = arith.truncf %37 : vector<1x8x8xf32> to vector<1x8x8xbf16>
    %39 = vector.extract_strided_slice %34 {offsets = [0, 0, 0], sizes = [1, 8, 8], strides = [1, 1, 1]} : vector<1x8x32xf32> to vector<1x8x8xf32>
    %40 = arith.truncf %39 : vector<1x8x8xf32> to vector<1x8x8xbf16>
    %41 = vector.extract_strided_slice %36 {offsets = [0, 0, 0], sizes = [1, 8, 8], strides = [1, 1, 1]} : vector<1x8x32xf32> to vector<1x8x8xf32>
    %42 = arith.truncf %41 : vector<1x8x8xf32> to vector<1x8x8xbf16>
    "tpu.trace_start"() <{level = 10 : i32, message = "bqd,bkd->bqk"}> : () -> ()
    %cst_22 = arith.constant dense<0.000000e+00> : vector<1x8x8xf32>
    %43 = tpu.matmul %38, %40, %cst_22 {dimension_numbers = #tpu.dot_dimension_numbers<[2], [2], [1], [1], [0, 0, 0, 1, 1, 1], [0], [0]>} : vector<1x8x8xbf16>, vector<1x8x8xbf16>, vector<1x8x8xf32> -> vector<1x8x8xf32>
    "tpu.trace_stop"() : () -> ()
    %44 = vector.shape_cast %5 : vector<8x8xf32> to vector<1x8x8xf32>
    %45 = arith.addf %43, %44 : vector<1x8x8xf32>
    %cst_23 = arith.constant dense<0xFF800000> : vector<1x8xf32>
    %46 = vector.multi_reduction <maximumf>, %45, %cst_23 [2] : vector<1x8x8xf32> to vector<1x8xf32>
    %47 = vector.shape_cast %46 : vector<1x8xf32> to vector<1x8x1xf32>
    %48 = vector.broadcast %47 : vector<1x8x1xf32> to vector<1x8x8xf32>
    %49 = arith.subf %45, %48 : vector<1x8x8xf32>
    %50 = math.exp %49 : vector<1x8x8xf32>
    %cst_24 = arith.constant dense<0.000000e+00> : vector<1x8xf32>
    %51 = vector.multi_reduction <add>, %50, %cst_24 [2] : vector<1x8x8xf32> to vector<1x8xf32>
    %52 = vector.shape_cast %51 : vector<1x8xf32> to vector<1x8x1xf32>
    %53 = tpu.reciprocal %52 {approx = true} : vector<1x8x1xf32> -> vector<1x8x1xf32>
    %54 = vector.broadcast %53 : vector<1x8x1xf32> to vector<1x8x8xf32>
    %55 = arith.mulf %50, %54 : vector<1x8x8xf32>
    %56 = arith.truncf %55 : vector<1x8x8xf32> to vector<1x8x8xbf16>
    "tpu.trace_start"() <{level = 10 : i32, message = "bqk,bkd->bqd"}> : () -> ()
    %cst_25 = arith.constant dense<0.000000e+00> : vector<1x8x8xf32>
    %57 = tpu.matmul %56, %42, %cst_25 {dimension_numbers = #tpu.dot_dimension_numbers<[2], [1], [1], [2], [0, 0, 0, 1, 1, 2], [0], [0]>} : vector<1x8x8xbf16>, vector<1x8x8xbf16>, vector<1x8x8xf32> -> vector<1x8x8xf32>
    "tpu.trace_stop"() : () -> ()
    %58 = vector.extract_strided_slice %32 {offsets = [0, 0, 8], sizes = [1, 8, 8], strides = [1, 1, 1]} : vector<1x8x32xf32> to vector<1x8x8xf32>
    %59 = arith.truncf %58 : vector<1x8x8xf32> to vector<1x8x8xbf16>
    %60 = vector.extract_strided_slice %34 {offsets = [0, 0, 8], sizes = [1, 8, 8], strides = [1, 1, 1]} : vector<1x8x32xf32> to vector<1x8x8xf32>
    %61 = arith.truncf %60 : vector<1x8x8xf32> to vector<1x8x8xbf16>
    %62 = vector.extract_strided_slice %36 {offsets = [0, 0, 8], sizes = [1, 8, 8], strides = [1, 1, 1]} : vector<1x8x32xf32> to vector<1x8x8xf32>
    %63 = arith.truncf %62 : vector<1x8x8xf32> to vector<1x8x8xbf16>
    "tpu.trace_start"() <{level = 10 : i32, message = "bqd,bkd->bqk"}> : () -> ()
    %cst_26 = arith.constant dense<0.000000e+00> : vector<1x8x8xf32>
    %64 = tpu.matmul %59, %61, %cst_26 {dimension_numbers = #tpu.dot_dimension_numbers<[2], [2], [1], [1], [0, 0, 0, 1, 1, 1], [0], [0]>} : vector<1x8x8xbf16>, vector<1x8x8xbf16>, vector<1x8x8xf32> -> vector<1x8x8xf32>
    "tpu.trace_stop"() : () -> ()
    %65 = vector.shape_cast %5 : vector<8x8xf32> to vector<1x8x8xf32>
    %66 = arith.addf %64, %65 : vector<1x8x8xf32>
    %cst_27 = arith.constant dense<0xFF800000> : vector<1x8xf32>
    %67 = vector.multi_reduction <maximumf>, %66, %cst_27 [2] : vector<1x8x8xf32> to vector<1x8xf32>
    %68 = vector.shape_cast %67 : vector<1x8xf32> to vector<1x8x1xf32>
    %69 = vector.broadcast %68 : vector<1x8x1xf32> to vector<1x8x8xf32>
    %70 = arith.subf %66, %69 : vector<1x8x8xf32>
    %71 = math.exp %70 : vector<1x8x8xf32>
    %cst_28 = arith.constant dense<0.000000e+00> : vector<1x8xf32>
    %72 = vector.multi_reduction <add>, %71, %cst_28 [2] : vector<1x8x8xf32> to vector<1x8xf32>
    %73 = vector.shape_cast %72 : vector<1x8xf32> to vector<1x8x1xf32>
    %74 = tpu.reciprocal %73 {approx = true} : vector<1x8x1xf32> -> vector<1x8x1xf32>
    %75 = vector.broadcast %74 : vector<1x8x1xf32> to vector<1x8x8xf32>
    %76 = arith.mulf %71, %75 : vector<1x8x8xf32>
    %77 = arith.truncf %76 : vector<1x8x8xf32> to vector<1x8x8xbf16>
    "tpu.trace_start"() <{level = 10 : i32, message = "bqk,bkd->bqd"}> : () -> ()
    %cst_29 = arith.constant dense<0.000000e+00> : vector<1x8x8xf32>
    %78 = tpu.matmul %77, %63, %cst_29 {dimension_numbers = #tpu.dot_dimension_numbers<[2], [1], [1], [2], [0, 0, 0, 1, 1, 2], [0], [0]>} : vector<1x8x8xbf16>, vector<1x8x8xbf16>, vector<1x8x8xf32> -> vector<1x8x8xf32>
    "tpu.trace_stop"() : () -> ()
    %79 = vector.extract_strided_slice %32 {offsets = [0, 0, 16], sizes = [1, 8, 8], strides = [1, 1, 1]} : vector<1x8x32xf32> to vector<1x8x8xf32>
    %80 = arith.truncf %79 : vector<1x8x8xf32> to vector<1x8x8xbf16>
    %81 = vector.extract_strided_slice %34 {offsets = [0, 0, 16], sizes = [1, 8, 8], strides = [1, 1, 1]} : vector<1x8x32xf32> to vector<1x8x8xf32>
    %82 = arith.truncf %81 : vector<1x8x8xf32> to vector<1x8x8xbf16>
    %83 = vector.extract_strided_slice %36 {offsets = [0, 0, 16], sizes = [1, 8, 8], strides = [1, 1, 1]} : vector<1x8x32xf32> to vector<1x8x8xf32>
    %84 = arith.truncf %83 : vector<1x8x8xf32> to vector<1x8x8xbf16>
    "tpu.trace_start"() <{level = 10 : i32, message = "bqd,bkd->bqk"}> : () -> ()
    %cst_30 = arith.constant dense<0.000000e+00> : vector<1x8x8xf32>
    %85 = tpu.matmul %80, %82, %cst_30 {dimension_numbers = #tpu.dot_dimension_numbers<[2], [2], [1], [1], [0, 0, 0, 1, 1, 1], [0], [0]>} : vector<1x8x8xbf16>, vector<1x8x8xbf16>, vector<1x8x8xf32> -> vector<1x8x8xf32>
    "tpu.trace_stop"() : () -> ()
    %86 = vector.shape_cast %5 : vector<8x8xf32> to vector<1x8x8xf32>
    %87 = arith.addf %85, %86 : vector<1x8x8xf32>
    %cst_31 = arith.constant dense<0xFF800000> : vector<1x8xf32>
    %88 = vector.multi_reduction <maximumf>, %87, %cst_31 [2] : vector<1x8x8xf32> to vector<1x8xf32>
    %89 = vector.shape_cast %88 : vector<1x8xf32> to vector<1x8x1xf32>
    %90 = vector.broadcast %89 : vector<1x8x1xf32> to vector<1x8x8xf32>
    %91 = arith.subf %87, %90 : vector<1x8x8xf32>
    %92 = math.exp %91 : vector<1x8x8xf32>
    %cst_32 = arith.constant dense<0.000000e+00> : vector<1x8xf32>
    %93 = vector.multi_reduction <add>, %92, %cst_32 [2] : vector<1x8x8xf32> to vector<1x8xf32>
    %94 = vector.shape_cast %93 : vector<1x8xf32> to vector<1x8x1xf32>
    %95 = tpu.reciprocal %94 {approx = true} : vector<1x8x1xf32> -> vector<1x8x1xf32>
    %96 = vector.broadcast %95 : vector<1x8x1xf32> to vector<1x8x8xf32>
    %97 = arith.mulf %92, %96 : vector<1x8x8xf32>
    %98 = arith.truncf %97 : vector<1x8x8xf32> to vector<1x8x8xbf16>
    "tpu.trace_start"() <{level = 10 : i32, message = "bqk,bkd->bqd"}> : () -> ()
    %cst_33 = arith.constant dense<0.000000e+00> : vector<1x8x8xf32>
    %99 = tpu.matmul %98, %84, %cst_33 {dimension_numbers = #tpu.dot_dimension_numbers<[2], [1], [1], [2], [0, 0, 0, 1, 1, 2], [0], [0]>} : vector<1x8x8xbf16>, vector<1x8x8xbf16>, vector<1x8x8xf32> -> vector<1x8x8xf32>
    "tpu.trace_stop"() : () -> ()
    %100 = vector.extract_strided_slice %32 {offsets = [0, 0, 24], sizes = [1, 8, 8], strides = [1, 1, 1]} : vector<1x8x32xf32> to vector<1x8x8xf32>
    %101 = arith.truncf %100 : vector<1x8x8xf32> to vector<1x8x8xbf16>
    %102 = vector.extract_strided_slice %34 {offsets = [0, 0, 24], sizes = [1, 8, 8], strides = [1, 1, 1]} : vector<1x8x32xf32> to vector<1x8x8xf32>
    %103 = arith.truncf %102 : vector<1x8x8xf32> to vector<1x8x8xbf16>
    %104 = vector.extract_strided_slice %36 {offsets = [0, 0, 24], sizes = [1, 8, 8], strides = [1, 1, 1]} : vector<1x8x32xf32> to vector<1x8x8xf32>
    %105 = arith.truncf %104 : vector<1x8x8xf32> to vector<1x8x8xbf16>
    "tpu.trace_start"() <{level = 10 : i32, message = "bqd,bkd->bqk"}> : () -> ()
    %cst_34 = arith.constant dense<0.000000e+00> : vector<1x8x8xf32>
    %106 = tpu.matmul %101, %103, %cst_34 {dimension_numbers = #tpu.dot_dimension_numbers<[2], [2], [1], [1], [0, 0, 0, 1, 1, 1], [0], [0]>} : vector<1x8x8xbf16>, vector<1x8x8xbf16>, vector<1x8x8xf32> -> vector<1x8x8xf32>
    "tpu.trace_stop"() : () -> ()
    %107 = vector.shape_cast %5 : vector<8x8xf32> to vector<1x8x8xf32>
    %108 = arith.addf %106, %107 : vector<1x8x8xf32>
    %cst_35 = arith.constant dense<0xFF800000> : vector<1x8xf32>
    %109 = vector.multi_reduction <maximumf>, %108, %cst_35 [2] : vector<1x8x8xf32> to vector<1x8xf32>
    %110 = vector.shape_cast %109 : vector<1x8xf32> to vector<1x8x1xf32>
    %111 = vector.broadcast %110 : vector<1x8x1xf32> to vector<1x8x8xf32>
    %112 = arith.subf %108, %111 : vector<1x8x8xf32>
    %113 = math.exp %112 : vector<1x8x8xf32>
    %cst_36 = arith.constant dense<0.000000e+00> : vector<1x8xf32>
    %114 = vector.multi_reduction <add>, %113, %cst_36 [2] : vector<1x8x8xf32> to vector<1x8xf32>
    %115 = vector.shape_cast %114 : vector<1x8xf32> to vector<1x8x1xf32>
    %116 = tpu.reciprocal %115 {approx = true} : vector<1x8x1xf32> -> vector<1x8x1xf32>
    %117 = vector.broadcast %116 : vector<1x8x1xf32> to vector<1x8x8xf32>
    %118 = arith.mulf %113, %117 : vector<1x8x8xf32>
    %119 = arith.truncf %118 : vector<1x8x8xf32> to vector<1x8x8xbf16>
    "tpu.trace_start"() <{level = 10 : i32, message = "bqk,bkd->bqd"}> : () -> ()
    %cst_37 = arith.constant dense<0.000000e+00> : vector<1x8x8xf32>
    %120 = tpu.matmul %119, %105, %cst_37 {dimension_numbers = #tpu.dot_dimension_numbers<[2], [1], [1], [2], [0, 0, 0, 1, 1, 2], [0], [0]>} : vector<1x8x8xbf16>, vector<1x8x8xbf16>, vector<1x8x8xf32> -> vector<1x8x8xf32>
    "tpu.trace_stop"() : () -> ()
    %121 = tpu.concatenate %57, %78, %99, %120 in 2 : vector<1x8x8xf32>, vector<1x8x8xf32>, vector<1x8x8xf32>, vector<1x8x8xf32> -> vector<1x8x32xf32>
    %122 = vector.shape_cast %121 : vector<1x8x32xf32> to vector<8x32xf32>
    %c0_38 = arith.constant 0 : index
    %c0_39 = arith.constant 0 : index
    %c0_40 = arith.constant 0 : index
    %123 = vector.load %arg8[%c0_38, %c0_39, %c0_40] : memref<2x32x32xbf16, #tpu.memory_space<vmem>>, vector<1x32x32xbf16>
    %124 = vector.shape_cast %123 : vector<1x32x32xbf16> to vector<32x32xbf16>
    %125 = arith.truncf %122 : vector<8x32xf32> to vector<8x32xbf16>
    %cst_41 = arith.constant dense<0.000000e+00> : vector<8x32xf32>
    %126 = tpu.matmul %125, %124, %cst_41 {dimension_numbers = #tpu.dot_dimension_numbers<[1], [0], [0], [1], [0, 0, 1, 1], [], []>} : vector<8x32xbf16>, vector<32x32xbf16>, vector<8x32xf32> -> vector<8x32xf32>
    %c0_42 = arith.constant 0 : index
    %c0_43 = arith.constant 0 : index
    %c0_44 = arith.constant 0 : index
    %127 = vector.load %arg9[%c0_42, %c0_43, %c0_44] : memref<2x1x32xf32, #tpu.memory_space<vmem>>, vector<1x1x32xf32>
    %128 = vector.shape_cast %127 : vector<1x1x32xf32> to vector<1x32xf32>
    %129 = vector.broadcast %128 : vector<1x32xf32> to vector<8x32xf32>
    %130 = arith.addf %126, %129 : vector<8x32xf32>
    %131 = arith.addf %20, %130 : vector<8x32xf32>
    %c0_45 = arith.constant 0 : index
    %c0_46 = arith.constant 0 : index
    %c0_47 = arith.constant 0 : index
    %132 = vector.load %arg16[%c0_45, %c0_46, %c0_47] : memref<2x1x32xf32, #tpu.memory_space<vmem>>, vector<1x1x32xf32>
    %133 = vector.shape_cast %132 : vector<1x1x32xf32> to vector<1x32xf32>
    %c0_48 = arith.constant 0 : index
    %c0_49 = arith.constant 0 : index
    %c0_50 = arith.constant 0 : index
    %134 = vector.load %arg17[%c0_48, %c0_49, %c0_50] : memref<2x1x32xf32, #tpu.memory_space<vmem>>, vector<1x1x32xf32>
    %135 = vector.shape_cast %134 : vector<1x1x32xf32> to vector<1x32xf32>
    %cst_51 = arith.constant dense<0.000000e+00> : vector<8xf32>
    %136 = vector.multi_reduction <add>, %131, %cst_51 [1] : vector<8x32xf32> to vector<8xf32>
    %137 = vector.shape_cast %136 : vector<8xf32> to vector<8x1xf32>
    %cst_52 = arith.constant 3.200000e+01 : f32
    %138 = vector.broadcast %cst_52 : f32 to vector<8x1xf32>
    %139 = arith.divf %137, %138 : vector<8x1xf32>
    %140 = vector.broadcast %139 : vector<8x1xf32> to vector<8x32xf32>
    %141 = arith.subf %131, %140 : vector<8x32xf32>
    %142 = arith.mulf %141, %141 : vector<8x32xf32>
    %cst_53 = arith.constant dense<0.000000e+00> : vector<8xf32>
    %143 = vector.multi_reduction <add>, %142, %cst_53 [1] : vector<8x32xf32> to vector<8xf32>
    %144 = vector.shape_cast %143 : vector<8xf32> to vector<8x1xf32>
    %cst_54 = arith.constant 3.200000e+01 : f32
    %145 = vector.broadcast %cst_54 : f32 to vector<8x1xf32>
    %146 = arith.divf %144, %145 : vector<8x1xf32>
    %147 = vector.broadcast %139 : vector<8x1xf32> to vector<8x32xf32>
    %148 = arith.subf %131, %147 : vector<8x32xf32>
    %cst_55 = arith.constant 9.99999974E-6 : f32
    %149 = vector.broadcast %cst_55 : f32 to vector<8x1xf32>
    %150 = arith.addf %146, %149 : vector<8x1xf32>
    %151 = math.rsqrt %150 : vector<8x1xf32>
    %152 = vector.broadcast %151 : vector<8x1xf32> to vector<8x32xf32>
    %153 = arith.mulf %148, %152 : vector<8x32xf32>
    %154 = vector.broadcast %133 : vector<1x32xf32> to vector<8x32xf32>
    %155 = arith.mulf %153, %154 : vector<8x32xf32>
    %156 = vector.broadcast %135 : vector<1x32xf32> to vector<8x32xf32>
    %157 = arith.addf %155, %156 : vector<8x32xf32>
    %c0_56 = arith.constant 0 : index
    %c0_57 = arith.constant 0 : index
    %c0_58 = arith.constant 0 : index
    %158 = vector.load %arg10[%c0_56, %c0_57, %c0_58] : memref<2x32x32xbf16, #tpu.memory_space<vmem>>, vector<1x32x32xbf16>
    %159 = vector.shape_cast %158 : vector<1x32x32xbf16> to vector<32x32xbf16>
    %160 = arith.truncf %157 : vector<8x32xf32> to vector<8x32xbf16>
    %cst_59 = arith.constant dense<0.000000e+00> : vector<8x32xf32>
    %161 = tpu.matmul %160, %159, %cst_59 {dimension_numbers = #tpu.dot_dimension_numbers<[1], [0], [0], [1], [0, 0, 1, 1], [], []>} : vector<8x32xbf16>, vector<32x32xbf16>, vector<8x32xf32> -> vector<8x32xf32>
    %c0_60 = arith.constant 0 : index
    %c0_61 = arith.constant 0 : index
    %c0_62 = arith.constant 0 : index
    %162 = vector.load %arg11[%c0_60, %c0_61, %c0_62] : memref<2x1x32xf32, #tpu.memory_space<vmem>>, vector<1x1x32xf32>
    %163 = vector.shape_cast %162 : vector<1x1x32xf32> to vector<1x32xf32>
    %164 = vector.broadcast %163 : vector<1x32xf32> to vector<8x32xf32>
    %165 = arith.addf %161, %164 : vector<8x32xf32>
    %cst_63 = arith.constant 0.353553385 : f32
    %166 = vector.broadcast %cst_63 : f32 to vector<8x32xf32>
    %167 = arith.mulf %165, %166 : vector<8x32xf32>
    %168 = vector.shape_cast %167 : vector<8x32xf32> to vector<1x8x32xf32>
    %c0_64 = arith.constant 0 : index
    %c0_65 = arith.constant 0 : index
    %c0_66 = arith.constant 0 : index
    %169 = vector.load %arg12[%c0_64, %c0_65, %c0_66] : memref<2x32x64xbf16, #tpu.memory_space<vmem>>, vector<1x32x64xbf16>
    %170 = vector.shape_cast %169 : vector<1x32x64xbf16> to vector<32x64xbf16>
    %cst_67 = arith.constant dense<0.000000e+00> : vector<8x64xf32>
    %171 = tpu.matmul %18, %170, %cst_67 {dimension_numbers = #tpu.dot_dimension_numbers<[1], [0], [0], [1], [0, 0, 1, 1], [], []>} : vector<8x32xbf16>, vector<32x64xbf16>, vector<8x64xf32> -> vector<8x64xf32>
    %c0_68 = arith.constant 0 : index
    %c0_69 = arith.constant 0 : index
    %c0_70 = arith.constant 0 : index
    %172 = vector.load %arg13[%c0_68, %c0_69, %c0_70] : memref<2x1x64xf32, #tpu.memory_space<vmem>>, vector<1x1x64xf32>
    %173 = vector.shape_cast %172 : vector<1x1x64xf32> to vector<1x64xf32>
    %174 = vector.broadcast %173 : vector<1x64xf32> to vector<8x64xf32>
    %175 = arith.addf %171, %174 : vector<8x64xf32>
    %176 = vector.extract_strided_slice %175 {offsets = [0, 0], sizes = [8, 32], strides = [1, 1]} : vector<8x64xf32> to vector<8x32xf32>
    %177 = vector.shape_cast %176 : vector<8x32xf32> to vector<1x8x32xf32>
    %178 = vector.extract_strided_slice %175 {offsets = [0, 32], sizes = [8, 32], strides = [1, 1]} : vector<8x64xf32> to vector<8x32xf32>
    %179 = vector.shape_cast %178 : vector<8x32xf32> to vector<1x8x32xf32>
    %180 = vector.extract_strided_slice %168 {offsets = [0, 0, 0], sizes = [1, 8, 8], strides = [1, 1, 1]} : vector<1x8x32xf32> to vector<1x8x8xf32>
    %181 = arith.truncf %180 : vector<1x8x8xf32> to vector<1x8x8xbf16>
    %182 = vector.extract_strided_slice %177 {offsets = [0, 0, 0], sizes = [1, 8, 8], strides = [1, 1, 1]} : vector<1x8x32xf32> to vector<1x8x8xf32>
    %183 = arith.truncf %182 : vector<1x8x8xf32> to vector<1x8x8xbf16>
    %184 = vector.extract_strided_slice %179 {offsets = [0, 0, 0], sizes = [1, 8, 8], strides = [1, 1, 1]} : vector<1x8x32xf32> to vector<1x8x8xf32>
    %185 = arith.truncf %184 : vector<1x8x8xf32> to vector<1x8x8xbf16>
    "tpu.trace_start"() <{level = 10 : i32, message = "bqd,bkd->bqk"}> : () -> ()
    %cst_71 = arith.constant dense<0.000000e+00> : vector<1x8x8xf32>
    %186 = tpu.matmul %181, %183, %cst_71 {dimension_numbers = #tpu.dot_dimension_numbers<[2], [2], [1], [1], [0, 0, 0, 1, 1, 1], [0], [0]>} : vector<1x8x8xbf16>, vector<1x8x8xbf16>, vector<1x8x8xf32> -> vector<1x8x8xf32>
    "tpu.trace_stop"() : () -> ()
    %cst_72 = arith.constant dense<0xFF800000> : vector<1x8xf32>
    %187 = vector.multi_reduction <maximumf>, %186, %cst_72 [2] : vector<1x8x8xf32> to vector<1x8xf32>
    %188 = vector.shape_cast %187 : vector<1x8xf32> to vector<1x8x1xf32>
    %189 = vector.broadcast %188 : vector<1x8x1xf32> to vector<1x8x8xf32>
    %190 = arith.subf %186, %189 : vector<1x8x8xf32>
    %191 = math.exp %190 : vector<1x8x8xf32>
    %cst_73 = arith.constant dense<0.000000e+00> : vector<1x8xf32>
    %192 = vector.multi_reduction <add>, %191, %cst_73 [2] : vector<1x8x8xf32> to vector<1x8xf32>
    %193 = vector.shape_cast %192 : vector<1x8xf32> to vector<1x8x1xf32>
    %194 = tpu.reciprocal %193 {approx = true} : vector<1x8x1xf32> -> vector<1x8x1xf32>
    %195 = vector.broadcast %194 : vector<1x8x1xf32> to vector<1x8x8xf32>
    %196 = arith.mulf %191, %195 : vector<1x8x8xf32>
    %197 = arith.truncf %196 : vector<1x8x8xf32> to vector<1x8x8xbf16>
    "tpu.trace_start"() <{level = 10 : i32, message = "bqk,bkd->bqd"}> : () -> ()
    %cst_74 = arith.constant dense<0.000000e+00> : vector<1x8x8xf32>
    %198 = tpu.matmul %197, %185, %cst_74 {dimension_numbers = #tpu.dot_dimension_numbers<[2], [1], [1], [2], [0, 0, 0, 1, 1, 2], [0], [0]>} : vector<1x8x8xbf16>, vector<1x8x8xbf16>, vector<1x8x8xf32> -> vector<1x8x8xf32>
    "tpu.trace_stop"() : () -> ()
    %199 = vector.extract_strided_slice %168 {offsets = [0, 0, 8], sizes = [1, 8, 8], strides = [1, 1, 1]} : vector<1x8x32xf32> to vector<1x8x8xf32>
    %200 = arith.truncf %199 : vector<1x8x8xf32> to vector<1x8x8xbf16>
    %201 = vector.extract_strided_slice %177 {offsets = [0, 0, 8], sizes = [1, 8, 8], strides = [1, 1, 1]} : vector<1x8x32xf32> to vector<1x8x8xf32>
    %202 = arith.truncf %201 : vector<1x8x8xf32> to vector<1x8x8xbf16>
    %203 = vector.extract_strided_slice %179 {offsets = [0, 0, 8], sizes = [1, 8, 8], strides = [1, 1, 1]} : vector<1x8x32xf32> to vector<1x8x8xf32>
    %204 = arith.truncf %203 : vector<1x8x8xf32> to vector<1x8x8xbf16>
    "tpu.trace_start"() <{level = 10 : i32, message = "bqd,bkd->bqk"}> : () -> ()
    %cst_75 = arith.constant dense<0.000000e+00> : vector<1x8x8xf32>
    %205 = tpu.matmul %200, %202, %cst_75 {dimension_numbers = #tpu.dot_dimension_numbers<[2], [2], [1], [1], [0, 0, 0, 1, 1, 1], [0], [0]>} : vector<1x8x8xbf16>, vector<1x8x8xbf16>, vector<1x8x8xf32> -> vector<1x8x8xf32>
    "tpu.trace_stop"() : () -> ()
    %cst_76 = arith.constant dense<0xFF800000> : vector<1x8xf32>
    %206 = vector.multi_reduction <maximumf>, %205, %cst_76 [2] : vector<1x8x8xf32> to vector<1x8xf32>
    %207 = vector.shape_cast %206 : vector<1x8xf32> to vector<1x8x1xf32>
    %208 = vector.broadcast %207 : vector<1x8x1xf32> to vector<1x8x8xf32>
    %209 = arith.subf %205, %208 : vector<1x8x8xf32>
    %210 = math.exp %209 : vector<1x8x8xf32>
    %cst_77 = arith.constant dense<0.000000e+00> : vector<1x8xf32>
    %211 = vector.multi_reduction <add>, %210, %cst_77 [2] : vector<1x8x8xf32> to vector<1x8xf32>
    %212 = vector.shape_cast %211 : vector<1x8xf32> to vector<1x8x1xf32>
    %213 = tpu.reciprocal %212 {approx = true} : vector<1x8x1xf32> -> vector<1x8x1xf32>
    %214 = vector.broadcast %213 : vector<1x8x1xf32> to vector<1x8x8xf32>
    %215 = arith.mulf %210, %214 : vector<1x8x8xf32>
    %216 = arith.truncf %215 : vector<1x8x8xf32> to vector<1x8x8xbf16>
    "tpu.trace_start"() <{level = 10 : i32, message = "bqk,bkd->bqd"}> : () -> ()
    %cst_78 = arith.constant dense<0.000000e+00> : vector<1x8x8xf32>
    %217 = tpu.matmul %216, %204, %cst_78 {dimension_numbers = #tpu.dot_dimension_numbers<[2], [1], [1], [2], [0, 0, 0, 1, 1, 2], [0], [0]>} : vector<1x8x8xbf16>, vector<1x8x8xbf16>, vector<1x8x8xf32> -> vector<1x8x8xf32>
    "tpu.trace_stop"() : () -> ()
    %218 = vector.extract_strided_slice %168 {offsets = [0, 0, 16], sizes = [1, 8, 8], strides = [1, 1, 1]} : vector<1x8x32xf32> to vector<1x8x8xf32>
    %219 = arith.truncf %218 : vector<1x8x8xf32> to vector<1x8x8xbf16>
    %220 = vector.extract_strided_slice %177 {offsets = [0, 0, 16], sizes = [1, 8, 8], strides = [1, 1, 1]} : vector<1x8x32xf32> to vector<1x8x8xf32>
    %221 = arith.truncf %220 : vector<1x8x8xf32> to vector<1x8x8xbf16>
    %222 = vector.extract_strided_slice %179 {offsets = [0, 0, 16], sizes = [1, 8, 8], strides = [1, 1, 1]} : vector<1x8x32xf32> to vector<1x8x8xf32>
    %223 = arith.truncf %222 : vector<1x8x8xf32> to vector<1x8x8xbf16>
    "tpu.trace_start"() <{level = 10 : i32, message = "bqd,bkd->bqk"}> : () -> ()
    %cst_79 = arith.constant dense<0.000000e+00> : vector<1x8x8xf32>
    %224 = tpu.matmul %219, %221, %cst_79 {dimension_numbers = #tpu.dot_dimension_numbers<[2], [2], [1], [1], [0, 0, 0, 1, 1, 1], [0], [0]>} : vector<1x8x8xbf16>, vector<1x8x8xbf16>, vector<1x8x8xf32> -> vector<1x8x8xf32>
    "tpu.trace_stop"() : () -> ()
    %cst_80 = arith.constant dense<0xFF800000> : vector<1x8xf32>
    %225 = vector.multi_reduction <maximumf>, %224, %cst_80 [2] : vector<1x8x8xf32> to vector<1x8xf32>
    %226 = vector.shape_cast %225 : vector<1x8xf32> to vector<1x8x1xf32>
    %227 = vector.broadcast %226 : vector<1x8x1xf32> to vector<1x8x8xf32>
    %228 = arith.subf %224, %227 : vector<1x8x8xf32>
    %229 = math.exp %228 : vector<1x8x8xf32>
    %cst_81 = arith.constant dense<0.000000e+00> : vector<1x8xf32>
    %230 = vector.multi_reduction <add>, %229, %cst_81 [2] : vector<1x8x8xf32> to vector<1x8xf32>
    %231 = vector.shape_cast %230 : vector<1x8xf32> to vector<1x8x1xf32>
    %232 = tpu.reciprocal %231 {approx = true} : vector<1x8x1xf32> -> vector<1x8x1xf32>
    %233 = vector.broadcast %232 : vector<1x8x1xf32> to vector<1x8x8xf32>
    %234 = arith.mulf %229, %233 : vector<1x8x8xf32>
    %235 = arith.truncf %234 : vector<1x8x8xf32> to vector<1x8x8xbf16>
    "tpu.trace_start"() <{level = 10 : i32, message = "bqk,bkd->bqd"}> : () -> ()
    %cst_82 = arith.constant dense<0.000000e+00> : vector<1x8x8xf32>
    %236 = tpu.matmul %235, %223, %cst_82 {dimension_numbers = #tpu.dot_dimension_numbers<[2], [1], [1], [2], [0, 0, 0, 1, 1, 2], [0], [0]>} : vector<1x8x8xbf16>, vector<1x8x8xbf16>, vector<1x8x8xf32> -> vector<1x8x8xf32>
    "tpu.trace_stop"() : () -> ()
    %237 = vector.extract_strided_slice %168 {offsets = [0, 0, 24], sizes = [1, 8, 8], strides = [1, 1, 1]} : vector<1x8x32xf32> to vector<1x8x8xf32>
    %238 = arith.truncf %237 : vector<1x8x8xf32> to vector<1x8x8xbf16>
    %239 = vector.extract_strided_slice %177 {offsets = [0, 0, 24], sizes = [1, 8, 8], strides = [1, 1, 1]} : vector<1x8x32xf32> to vector<1x8x8xf32>
    %240 = arith.truncf %239 : vector<1x8x8xf32> to vector<1x8x8xbf16>
    %241 = vector.extract_strided_slice %179 {offsets = [0, 0, 24], sizes = [1, 8, 8], strides = [1, 1, 1]} : vector<1x8x32xf32> to vector<1x8x8xf32>
    %242 = arith.truncf %241 : vector<1x8x8xf32> to vector<1x8x8xbf16>
    "tpu.trace_start"() <{level = 10 : i32, message = "bqd,bkd->bqk"}> : () -> ()
    %cst_83 = arith.constant dense<0.000000e+00> : vector<1x8x8xf32>
    %243 = tpu.matmul %238, %240, %cst_83 {dimension_numbers = #tpu.dot_dimension_numbers<[2], [2], [1], [1], [0, 0, 0, 1, 1, 1], [0], [0]>} : vector<1x8x8xbf16>, vector<1x8x8xbf16>, vector<1x8x8xf32> -> vector<1x8x8xf32>
    "tpu.trace_stop"() : () -> ()
    %cst_84 = arith.constant dense<0xFF800000> : vector<1x8xf32>
    %244 = vector.multi_reduction <maximumf>, %243, %cst_84 [2] : vector<1x8x8xf32> to vector<1x8xf32>
    %245 = vector.shape_cast %244 : vector<1x8xf32> to vector<1x8x1xf32>
    %246 = vector.broadcast %245 : vector<1x8x1xf32> to vector<1x8x8xf32>
    %247 = arith.subf %243, %246 : vector<1x8x8xf32>
    %248 = math.exp %247 : vector<1x8x8xf32>
    %cst_85 = arith.constant dense<0.000000e+00> : vector<1x8xf32>
    %249 = vector.multi_reduction <add>, %248, %cst_85 [2] : vector<1x8x8xf32> to vector<1x8xf32>
    %250 = vector.shape_cast %249 : vector<1x8xf32> to vector<1x8x1xf32>
    %251 = tpu.reciprocal %250 {approx = true} : vector<1x8x1xf32> -> vector<1x8x1xf32>
    %252 = vector.broadcast %251 : vector<1x8x1xf32> to vector<1x8x8xf32>
    %253 = arith.mulf %248, %252 : vector<1x8x8xf32>
    %254 = arith.truncf %253 : vector<1x8x8xf32> to vector<1x8x8xbf16>
    "tpu.trace_start"() <{level = 10 : i32, message = "bqk,bkd->bqd"}> : () -> ()
    %cst_86 = arith.constant dense<0.000000e+00> : vector<1x8x8xf32>
    %255 = tpu.matmul %254, %242, %cst_86 {dimension_numbers = #tpu.dot_dimension_numbers<[2], [1], [1], [2], [0, 0, 0, 1, 1, 2], [0], [0]>} : vector<1x8x8xbf16>, vector<1x8x8xbf16>, vector<1x8x8xf32> -> vector<1x8x8xf32>
    "tpu.trace_stop"() : () -> ()
    %256 = tpu.concatenate %198, %217, %236, %255 in 2 : vector<1x8x8xf32>, vector<1x8x8xf32>, vector<1x8x8xf32>, vector<1x8x8xf32> -> vector<1x8x32xf32>
    %257 = vector.shape_cast %256 : vector<1x8x32xf32> to vector<8x32xf32>
    %c0_87 = arith.constant 0 : index
    %c0_88 = arith.constant 0 : index
    %c0_89 = arith.constant 0 : index
    %258 = vector.load %arg14[%c0_87, %c0_88, %c0_89] : memref<2x32x32xbf16, #tpu.memory_space<vmem>>, vector<1x32x32xbf16>
    %259 = vector.shape_cast %258 : vector<1x32x32xbf16> to vector<32x32xbf16>
    %260 = arith.truncf %257 : vector<8x32xf32> to vector<8x32xbf16>
    %cst_90 = arith.constant dense<0.000000e+00> : vector<8x32xf32>
    %261 = tpu.matmul %260, %259, %cst_90 {dimension_numbers = #tpu.dot_dimension_numbers<[1], [0], [0], [1], [0, 0, 1, 1], [], []>} : vector<8x32xbf16>, vector<32x32xbf16>, vector<8x32xf32> -> vector<8x32xf32>
    %c0_91 = arith.constant 0 : index
    %c0_92 = arith.constant 0 : index
    %c0_93 = arith.constant 0 : index
    %262 = vector.load %arg15[%c0_91, %c0_92, %c0_93] : memref<2x1x32xf32, #tpu.memory_space<vmem>>, vector<1x1x32xf32>
    %263 = vector.shape_cast %262 : vector<1x1x32xf32> to vector<1x32xf32>
    %264 = vector.broadcast %263 : vector<1x32xf32> to vector<8x32xf32>
    %265 = arith.addf %261, %264 : vector<8x32xf32>
    %266 = arith.addf %157, %265 : vector<8x32xf32>
    %c0_94 = arith.constant 0 : index
    %c0_95 = arith.constant 0 : index
    %c0_96 = arith.constant 0 : index
    %267 = vector.load %arg18[%c0_94, %c0_95, %c0_96] : memref<2x1x32xf32, #tpu.memory_space<vmem>>, vector<1x1x32xf32>
    %268 = vector.shape_cast %267 : vector<1x1x32xf32> to vector<1x32xf32>
    %c0_97 = arith.constant 0 : index
    %c0_98 = arith.constant 0 : index
    %c0_99 = arith.constant 0 : index
    %269 = vector.load %arg19[%c0_97, %c0_98, %c0_99] : memref<2x1x32xf32, #tpu.memory_space<vmem>>, vector<1x1x32xf32>
    %270 = vector.shape_cast %269 : vector<1x1x32xf32> to vector<1x32xf32>
    %cst_100 = arith.constant dense<0.000000e+00> : vector<8xf32>
    %271 = vector.multi_reduction <add>, %266, %cst_100 [1] : vector<8x32xf32> to vector<8xf32>
    %272 = vector.shape_cast %271 : vector<8xf32> to vector<8x1xf32>
    %cst_101 = arith.constant 3.200000e+01 : f32
    %273 = vector.broadcast %cst_101 : f32 to vector<8x1xf32>
    %274 = arith.divf %272, %273 : vector<8x1xf32>
    %275 = vector.broadcast %274 : vector<8x1xf32> to vector<8x32xf32>
    %276 = arith.subf %266, %275 : vector<8x32xf32>
    %277 = arith.mulf %276, %276 : vector<8x32xf32>
    %cst_102 = arith.constant dense<0.000000e+00> : vector<8xf32>
    %278 = vector.multi_reduction <add>, %277, %cst_102 [1] : vector<8x32xf32> to vector<8xf32>
    %279 = vector.shape_cast %278 : vector<8xf32> to vector<8x1xf32>
    %cst_103 = arith.constant 3.200000e+01 : f32
    %280 = vector.broadcast %cst_103 : f32 to vector<8x1xf32>
    %281 = arith.divf %279, %280 : vector<8x1xf32>
    %282 = vector.broadcast %274 : vector<8x1xf32> to vector<8x32xf32>
    %283 = arith.subf %266, %282 : vector<8x32xf32>
    %cst_104 = arith.constant 9.99999974E-6 : f32
    %284 = vector.broadcast %cst_104 : f32 to vector<8x1xf32>
    %285 = arith.addf %281, %284 : vector<8x1xf32>
    %286 = math.rsqrt %285 : vector<8x1xf32>
    %287 = vector.broadcast %286 : vector<8x1xf32> to vector<8x32xf32>
    %288 = arith.mulf %283, %287 : vector<8x32xf32>
    %289 = vector.broadcast %268 : vector<1x32xf32> to vector<8x32xf32>
    %290 = arith.mulf %288, %289 : vector<8x32xf32>
    %291 = vector.broadcast %270 : vector<1x32xf32> to vector<8x32xf32>
    %292 = arith.addf %290, %291 : vector<8x32xf32>
    %c0_105 = arith.constant 0 : index
    %c0_106 = arith.constant 0 : index
    %c0_107 = arith.constant 0 : index
    %293 = vector.load %arg22[%c0_105, %c0_106, %c0_107] : memref<2x32x64xbf16, #tpu.memory_space<vmem>>, vector<1x32x64xbf16>
    %294 = vector.shape_cast %293 : vector<1x32x64xbf16> to vector<32x64xbf16>
    %295 = arith.truncf %292 : vector<8x32xf32> to vector<8x32xbf16>
    %cst_108 = arith.constant dense<0.000000e+00> : vector<8x64xf32>
    %296 = tpu.matmul %295, %294, %cst_108 {dimension_numbers = #tpu.dot_dimension_numbers<[1], [0], [0], [1], [0, 0, 1, 1], [], []>} : vector<8x32xbf16>, vector<32x64xbf16>, vector<8x64xf32> -> vector<8x64xf32>
    %c0_109 = arith.constant 0 : index
    %c0_110 = arith.constant 0 : index
    %c0_111 = arith.constant 0 : index
    %297 = vector.load %arg23[%c0_109, %c0_110, %c0_111] : memref<2x1x64xf32, #tpu.memory_space<vmem>>, vector<1x1x64xf32>
    %298 = vector.shape_cast %297 : vector<1x1x64xf32> to vector<1x64xf32>
    %299 = vector.broadcast %298 : vector<1x64xf32> to vector<8x64xf32>
    %300 = arith.addf %296, %299 : vector<8x64xf32>
    %cst_112 = arith.constant 0.000000e+00 : f32
    %301 = vector.broadcast %cst_112 : f32 to vector<8x64xf32>
    %302 = arith.maximumf %300, %301 : vector<8x64xf32>
    %c0_113 = arith.constant 0 : index
    %c0_114 = arith.constant 0 : index
    %c0_115 = arith.constant 0 : index
    %303 = vector.load %arg24[%c0_113, %c0_114, %c0_115] : memref<2x64x32xbf16, #tpu.memory_space<vmem>>, vector<1x64x32xbf16>
    %304 = vector.shape_cast %303 : vector<1x64x32xbf16> to vector<64x32xbf16>
    %305 = arith.truncf %302 : vector<8x64xf32> to vector<8x64xbf16>
    %cst_116 = arith.constant dense<0.000000e+00> : vector<8x32xf32>
    %306 = tpu.matmul %305, %304, %cst_116 {dimension_numbers = #tpu.dot_dimension_numbers<[1], [0], [0], [1], [0, 0, 1, 1], [], []>} : vector<8x64xbf16>, vector<64x32xbf16>, vector<8x32xf32> -> vector<8x32xf32>
    %c0_117 = arith.constant 0 : index
    %c0_118 = arith.constant 0 : index
    %c0_119 = arith.constant 0 : index
    %307 = vector.load %arg25[%c0_117, %c0_118, %c0_119] : memref<2x1x32xf32, #tpu.memory_space<vmem>>, vector<1x1x32xf32>
    %308 = vector.shape_cast %307 : vector<1x1x32xf32> to vector<1x32xf32>
    %309 = vector.broadcast %308 : vector<1x32xf32> to vector<8x32xf32>
    %310 = arith.addf %306, %309 : vector<8x32xf32>
    %311 = arith.addf %292, %310 : vector<8x32xf32>
    %c0_120 = arith.constant 0 : index
    %c0_121 = arith.constant 0 : index
    %c0_122 = arith.constant 0 : index
    %312 = vector.load %arg20[%c0_120, %c0_121, %c0_122] : memref<2x1x32xf32, #tpu.memory_space<vmem>>, vector<1x1x32xf32>
    %313 = vector.shape_cast %312 : vector<1x1x32xf32> to vector<1x32xf32>
    %c0_123 = arith.constant 0 : index
    %c0_124 = arith.constant 0 : index
    %c0_125 = arith.constant 0 : index
    %314 = vector.load %arg21[%c0_123, %c0_124, %c0_125] : memref<2x1x32xf32, #tpu.memory_space<vmem>>, vector<1x1x32xf32>
    %315 = vector.shape_cast %314 : vector<1x1x32xf32> to vector<1x32xf32>
    %cst_126 = arith.constant dense<0.000000e+00> : vector<8xf32>
    %316 = vector.multi_reduction <add>, %311, %cst_126 [1] : vector<8x32xf32> to vector<8xf32>
    %317 = vector.shape_cast %316 : vector<8xf32> to vector<8x1xf32>
    %cst_127 = arith.constant 3.200000e+01 : f32
    %318 = vector.broadcast %cst_127 : f32 to vector<8x1xf32>
    %319 = arith.divf %317, %318 : vector<8x1xf32>
    %320 = vector.broadcast %319 : vector<8x1xf32> to vector<8x32xf32>
    %321 = arith.subf %311, %320 : vector<8x32xf32>
    %322 = arith.mulf %321, %321 : vector<8x32xf32>
    %cst_128 = arith.constant dense<0.000000e+00> : vector<8xf32>
    %323 = vector.multi_reduction <add>, %322, %cst_128 [1] : vector<8x32xf32> to vector<8xf32>
    %324 = vector.shape_cast %323 : vector<8xf32> to vector<8x1xf32>
    %cst_129 = arith.constant 3.200000e+01 : f32
    %325 = vector.broadcast %cst_129 : f32 to vector<8x1xf32>
    %326 = arith.divf %324, %325 : vector<8x1xf32>
    %327 = vector.broadcast %319 : vector<8x1xf32> to vector<8x32xf32>
    %328 = arith.subf %311, %327 : vector<8x32xf32>
    %cst_130 = arith.constant 9.99999974E-6 : f32
    %329 = vector.broadcast %cst_130 : f32 to vector<8x1xf32>
    %330 = arith.addf %326, %329 : vector<8x1xf32>
    %331 = math.rsqrt %330 : vector<8x1xf32>
    %332 = vector.broadcast %331 : vector<8x1xf32> to vector<8x32xf32>
    %333 = arith.mulf %328, %332 : vector<8x32xf32>
    %334 = vector.broadcast %313 : vector<1x32xf32> to vector<8x32xf32>
    %335 = arith.mulf %333, %334 : vector<8x32xf32>
    %336 = vector.broadcast %315 : vector<1x32xf32> to vector<8x32xf32>
    %337 = arith.addf %335, %336 : vector<8x32xf32>
    %c1 = arith.constant 1 : index
    %c0_131 = arith.constant 0 : index
    %c0_132 = arith.constant 0 : index
    %338 = vector.load %arg6[%c1, %c0_131, %c0_132] : memref<2x32x96xbf16, #tpu.memory_space<vmem>>, vector<1x32x96xbf16>
    %339 = vector.shape_cast %338 : vector<1x32x96xbf16> to vector<32x96xbf16>
    %340 = arith.truncf %337 : vector<8x32xf32> to vector<8x32xbf16>
    %cst_133 = arith.constant dense<0.000000e+00> : vector<8x96xf32>
    %341 = tpu.matmul %340, %339, %cst_133 {dimension_numbers = #tpu.dot_dimension_numbers<[1], [0], [0], [1], [0, 0, 1, 1], [], []>} : vector<8x32xbf16>, vector<32x96xbf16>, vector<8x96xf32> -> vector<8x96xf32>
    %c1_134 = arith.constant 1 : index
    %c0_135 = arith.constant 0 : index
    %c0_136 = arith.constant 0 : index
    %342 = vector.load %arg7[%c1_134, %c0_135, %c0_136] : memref<2x1x96xf32, #tpu.memory_space<vmem>>, vector<1x1x96xf32>
    %343 = vector.shape_cast %342 : vector<1x1x96xf32> to vector<1x96xf32>
    %344 = vector.broadcast %343 : vector<1x96xf32> to vector<8x96xf32>
    %345 = arith.addf %341, %344 : vector<8x96xf32>
    %346 = vector.extract_strided_slice %345 {offsets = [0, 0], sizes = [8, 32], strides = [1, 1]} : vector<8x96xf32> to vector<8x32xf32>
    %cst_137 = arith.constant 0.353553385 : f32
    %347 = vector.broadcast %cst_137 : f32 to vector<8x32xf32>
    %348 = arith.mulf %346, %347 : vector<8x32xf32>
    %349 = vector.shape_cast %348 : vector<8x32xf32> to vector<1x8x32xf32>
    %350 = vector.extract_strided_slice %345 {offsets = [0, 32], sizes = [8, 32], strides = [1, 1]} : vector<8x96xf32> to vector<8x32xf32>
    %351 = vector.shape_cast %350 : vector<8x32xf32> to vector<1x8x32xf32>
    %352 = vector.extract_strided_slice %345 {offsets = [0, 64], sizes = [8, 32], strides = [1, 1]} : vector<8x96xf32> to vector<8x32xf32>
    %353 = vector.shape_cast %352 : vector<8x32xf32> to vector<1x8x32xf32>
    %354 = vector.extract_strided_slice %349 {offsets = [0, 0, 0], sizes = [1, 8, 8], strides = [1, 1, 1]} : vector<1x8x32xf32> to vector<1x8x8xf32>
    %355 = arith.truncf %354 : vector<1x8x8xf32> to vector<1x8x8xbf16>
    %356 = vector.extract_strided_slice %351 {offsets = [0, 0, 0], sizes = [1, 8, 8], strides = [1, 1, 1]} : vector<1x8x32xf32> to vector<1x8x8xf32>
    %357 = arith.truncf %356 : vector<1x8x8xf32> to vector<1x8x8xbf16>
    %358 = vector.extract_strided_slice %353 {offsets = [0, 0, 0], sizes = [1, 8, 8], strides = [1, 1, 1]} : vector<1x8x32xf32> to vector<1x8x8xf32>
    %359 = arith.truncf %358 : vector<1x8x8xf32> to vector<1x8x8xbf16>
    "tpu.trace_start"() <{level = 10 : i32, message = "bqd,bkd->bqk"}> : () -> ()
    %cst_138 = arith.constant dense<0.000000e+00> : vector<1x8x8xf32>
    %360 = tpu.matmul %355, %357, %cst_138 {dimension_numbers = #tpu.dot_dimension_numbers<[2], [2], [1], [1], [0, 0, 0, 1, 1, 1], [0], [0]>} : vector<1x8x8xbf16>, vector<1x8x8xbf16>, vector<1x8x8xf32> -> vector<1x8x8xf32>
    "tpu.trace_stop"() : () -> ()
    %361 = vector.shape_cast %5 : vector<8x8xf32> to vector<1x8x8xf32>
    %362 = arith.addf %360, %361 : vector<1x8x8xf32>
    %cst_139 = arith.constant dense<0xFF800000> : vector<1x8xf32>
    %363 = vector.multi_reduction <maximumf>, %362, %cst_139 [2] : vector<1x8x8xf32> to vector<1x8xf32>
    %364 = vector.shape_cast %363 : vector<1x8xf32> to vector<1x8x1xf32>
    %365 = vector.broadcast %364 : vector<1x8x1xf32> to vector<1x8x8xf32>
    %366 = arith.subf %362, %365 : vector<1x8x8xf32>
    %367 = math.exp %366 : vector<1x8x8xf32>
    %cst_140 = arith.constant dense<0.000000e+00> : vector<1x8xf32>
    %368 = vector.multi_reduction <add>, %367, %cst_140 [2] : vector<1x8x8xf32> to vector<1x8xf32>
    %369 = vector.shape_cast %368 : vector<1x8xf32> to vector<1x8x1xf32>
    %370 = tpu.reciprocal %369 {approx = true} : vector<1x8x1xf32> -> vector<1x8x1xf32>
    %371 = vector.broadcast %370 : vector<1x8x1xf32> to vector<1x8x8xf32>
    %372 = arith.mulf %367, %371 : vector<1x8x8xf32>
    %373 = arith.truncf %372 : vector<1x8x8xf32> to vector<1x8x8xbf16>
    "tpu.trace_start"() <{level = 10 : i32, message = "bqk,bkd->bqd"}> : () -> ()
    %cst_141 = arith.constant dense<0.000000e+00> : vector<1x8x8xf32>
    %374 = tpu.matmul %373, %359, %cst_141 {dimension_numbers = #tpu.dot_dimension_numbers<[2], [1], [1], [2], [0, 0, 0, 1, 1, 2], [0], [0]>} : vector<1x8x8xbf16>, vector<1x8x8xbf16>, vector<1x8x8xf32> -> vector<1x8x8xf32>
    "tpu.trace_stop"() : () -> ()
    %375 = vector.extract_strided_slice %349 {offsets = [0, 0, 8], sizes = [1, 8, 8], strides = [1, 1, 1]} : vector<1x8x32xf32> to vector<1x8x8xf32>
    %376 = arith.truncf %375 : vector<1x8x8xf32> to vector<1x8x8xbf16>
    %377 = vector.extract_strided_slice %351 {offsets = [0, 0, 8], sizes = [1, 8, 8], strides = [1, 1, 1]} : vector<1x8x32xf32> to vector<1x8x8xf32>
    %378 = arith.truncf %377 : vector<1x8x8xf32> to vector<1x8x8xbf16>
    %379 = vector.extract_strided_slice %353 {offsets = [0, 0, 8], sizes = [1, 8, 8], strides = [1, 1, 1]} : vector<1x8x32xf32> to vector<1x8x8xf32>
    %380 = arith.truncf %379 : vector<1x8x8xf32> to vector<1x8x8xbf16>
    "tpu.trace_start"() <{level = 10 : i32, message = "bqd,bkd->bqk"}> : () -> ()
    %cst_142 = arith.constant dense<0.000000e+00> : vector<1x8x8xf32>
    %381 = tpu.matmul %376, %378, %cst_142 {dimension_numbers = #tpu.dot_dimension_numbers<[2], [2], [1], [1], [0, 0, 0, 1, 1, 1], [0], [0]>} : vector<1x8x8xbf16>, vector<1x8x8xbf16>, vector<1x8x8xf32> -> vector<1x8x8xf32>
    "tpu.trace_stop"() : () -> ()
    %382 = vector.shape_cast %5 : vector<8x8xf32> to vector<1x8x8xf32>
    %383 = arith.addf %381, %382 : vector<1x8x8xf32>
    %cst_143 = arith.constant dense<0xFF800000> : vector<1x8xf32>
    %384 = vector.multi_reduction <maximumf>, %383, %cst_143 [2] : vector<1x8x8xf32> to vector<1x8xf32>
    %385 = vector.shape_cast %384 : vector<1x8xf32> to vector<1x8x1xf32>
    %386 = vector.broadcast %385 : vector<1x8x1xf32> to vector<1x8x8xf32>
    %387 = arith.subf %383, %386 : vector<1x8x8xf32>
    %388 = math.exp %387 : vector<1x8x8xf32>
    %cst_144 = arith.constant dense<0.000000e+00> : vector<1x8xf32>
    %389 = vector.multi_reduction <add>, %388, %cst_144 [2] : vector<1x8x8xf32> to vector<1x8xf32>
    %390 = vector.shape_cast %389 : vector<1x8xf32> to vector<1x8x1xf32>
    %391 = tpu.reciprocal %390 {approx = true} : vector<1x8x1xf32> -> vector<1x8x1xf32>
    %392 = vector.broadcast %391 : vector<1x8x1xf32> to vector<1x8x8xf32>
    %393 = arith.mulf %388, %392 : vector<1x8x8xf32>
    %394 = arith.truncf %393 : vector<1x8x8xf32> to vector<1x8x8xbf16>
    "tpu.trace_start"() <{level = 10 : i32, message = "bqk,bkd->bqd"}> : () -> ()
    %cst_145 = arith.constant dense<0.000000e+00> : vector<1x8x8xf32>
    %395 = tpu.matmul %394, %380, %cst_145 {dimension_numbers = #tpu.dot_dimension_numbers<[2], [1], [1], [2], [0, 0, 0, 1, 1, 2], [0], [0]>} : vector<1x8x8xbf16>, vector<1x8x8xbf16>, vector<1x8x8xf32> -> vector<1x8x8xf32>
    "tpu.trace_stop"() : () -> ()
    %396 = vector.extract_strided_slice %349 {offsets = [0, 0, 16], sizes = [1, 8, 8], strides = [1, 1, 1]} : vector<1x8x32xf32> to vector<1x8x8xf32>
    %397 = arith.truncf %396 : vector<1x8x8xf32> to vector<1x8x8xbf16>
    %398 = vector.extract_strided_slice %351 {offsets = [0, 0, 16], sizes = [1, 8, 8], strides = [1, 1, 1]} : vector<1x8x32xf32> to vector<1x8x8xf32>
    %399 = arith.truncf %398 : vector<1x8x8xf32> to vector<1x8x8xbf16>
    %400 = vector.extract_strided_slice %353 {offsets = [0, 0, 16], sizes = [1, 8, 8], strides = [1, 1, 1]} : vector<1x8x32xf32> to vector<1x8x8xf32>
    %401 = arith.truncf %400 : vector<1x8x8xf32> to vector<1x8x8xbf16>
    "tpu.trace_start"() <{level = 10 : i32, message = "bqd,bkd->bqk"}> : () -> ()
    %cst_146 = arith.constant dense<0.000000e+00> : vector<1x8x8xf32>
    %402 = tpu.matmul %397, %399, %cst_146 {dimension_numbers = #tpu.dot_dimension_numbers<[2], [2], [1], [1], [0, 0, 0, 1, 1, 1], [0], [0]>} : vector<1x8x8xbf16>, vector<1x8x8xbf16>, vector<1x8x8xf32> -> vector<1x8x8xf32>
    "tpu.trace_stop"() : () -> ()
    %403 = vector.shape_cast %5 : vector<8x8xf32> to vector<1x8x8xf32>
    %404 = arith.addf %402, %403 : vector<1x8x8xf32>
    %cst_147 = arith.constant dense<0xFF800000> : vector<1x8xf32>
    %405 = vector.multi_reduction <maximumf>, %404, %cst_147 [2] : vector<1x8x8xf32> to vector<1x8xf32>
    %406 = vector.shape_cast %405 : vector<1x8xf32> to vector<1x8x1xf32>
    %407 = vector.broadcast %406 : vector<1x8x1xf32> to vector<1x8x8xf32>
    %408 = arith.subf %404, %407 : vector<1x8x8xf32>
    %409 = math.exp %408 : vector<1x8x8xf32>
    %cst_148 = arith.constant dense<0.000000e+00> : vector<1x8xf32>
    %410 = vector.multi_reduction <add>, %409, %cst_148 [2] : vector<1x8x8xf32> to vector<1x8xf32>
    %411 = vector.shape_cast %410 : vector<1x8xf32> to vector<1x8x1xf32>
    %412 = tpu.reciprocal %411 {approx = true} : vector<1x8x1xf32> -> vector<1x8x1xf32>
    %413 = vector.broadcast %412 : vector<1x8x1xf32> to vector<1x8x8xf32>
    %414 = arith.mulf %409, %413 : vector<1x8x8xf32>
    %415 = arith.truncf %414 : vector<1x8x8xf32> to vector<1x8x8xbf16>
    "tpu.trace_start"() <{level = 10 : i32, message = "bqk,bkd->bqd"}> : () -> ()
    %cst_149 = arith.constant dense<0.000000e+00> : vector<1x8x8xf32>
    %416 = tpu.matmul %415, %401, %cst_149 {dimension_numbers = #tpu.dot_dimension_numbers<[2], [1], [1], [2], [0, 0, 0, 1, 1, 2], [0], [0]>} : vector<1x8x8xbf16>, vector<1x8x8xbf16>, vector<1x8x8xf32> -> vector<1x8x8xf32>
    "tpu.trace_stop"() : () -> ()
    %417 = vector.extract_strided_slice %349 {offsets = [0, 0, 24], sizes = [1, 8, 8], strides = [1, 1, 1]} : vector<1x8x32xf32> to vector<1x8x8xf32>
    %418 = arith.truncf %417 : vector<1x8x8xf32> to vector<1x8x8xbf16>
    %419 = vector.extract_strided_slice %351 {offsets = [0, 0, 24], sizes = [1, 8, 8], strides = [1, 1, 1]} : vector<1x8x32xf32> to vector<1x8x8xf32>
    %420 = arith.truncf %419 : vector<1x8x8xf32> to vector<1x8x8xbf16>
    %421 = vector.extract_strided_slice %353 {offsets = [0, 0, 24], sizes = [1, 8, 8], strides = [1, 1, 1]} : vector<1x8x32xf32> to vector<1x8x8xf32>
    %422 = arith.truncf %421 : vector<1x8x8xf32> to vector<1x8x8xbf16>
    "tpu.trace_start"() <{level = 10 : i32, message = "bqd,bkd->bqk"}> : () -> ()
    %cst_150 = arith.constant dense<0.000000e+00> : vector<1x8x8xf32>
    %423 = tpu.matmul %418, %420, %cst_150 {dimension_numbers = #tpu.dot_dimension_numbers<[2], [2], [1], [1], [0, 0, 0, 1, 1, 1], [0], [0]>} : vector<1x8x8xbf16>, vector<1x8x8xbf16>, vector<1x8x8xf32> -> vector<1x8x8xf32>
    "tpu.trace_stop"() : () -> ()
    %424 = vector.shape_cast %5 : vector<8x8xf32> to vector<1x8x8xf32>
    %425 = arith.addf %423, %424 : vector<1x8x8xf32>
    %cst_151 = arith.constant dense<0xFF800000> : vector<1x8xf32>
    %426 = vector.multi_reduction <maximumf>, %425, %cst_151 [2] : vector<1x8x8xf32> to vector<1x8xf32>
    %427 = vector.shape_cast %426 : vector<1x8xf32> to vector<1x8x1xf32>
    %428 = vector.broadcast %427 : vector<1x8x1xf32> to vector<1x8x8xf32>
    %429 = arith.subf %425, %428 : vector<1x8x8xf32>
    %430 = math.exp %429 : vector<1x8x8xf32>
    %cst_152 = arith.constant dense<0.000000e+00> : vector<1x8xf32>
    %431 = vector.multi_reduction <add>, %430, %cst_152 [2] : vector<1x8x8xf32> to vector<1x8xf32>
    %432 = vector.shape_cast %431 : vector<1x8xf32> to vector<1x8x1xf32>
    %433 = tpu.reciprocal %432 {approx = true} : vector<1x8x1xf32> -> vector<1x8x1xf32>
    %434 = vector.broadcast %433 : vector<1x8x1xf32> to vector<1x8x8xf32>
    %435 = arith.mulf %430, %434 : vector<1x8x8xf32>
    %436 = arith.truncf %435 : vector<1x8x8xf32> to vector<1x8x8xbf16>
    "tpu.trace_start"() <{level = 10 : i32, message = "bqk,bkd->bqd"}> : () -> ()
    %cst_153 = arith.constant dense<0.000000e+00> : vector<1x8x8xf32>
    %437 = tpu.matmul %436, %422, %cst_153 {dimension_numbers = #tpu.dot_dimension_numbers<[2], [1], [1], [2], [0, 0, 0, 1, 1, 2], [0], [0]>} : vector<1x8x8xbf16>, vector<1x8x8xbf16>, vector<1x8x8xf32> -> vector<1x8x8xf32>
    "tpu.trace_stop"() : () -> ()
    %438 = tpu.concatenate %374, %395, %416, %437 in 2 : vector<1x8x8xf32>, vector<1x8x8xf32>, vector<1x8x8xf32>, vector<1x8x8xf32> -> vector<1x8x32xf32>
    %439 = vector.shape_cast %438 : vector<1x8x32xf32> to vector<8x32xf32>
    %c1_154 = arith.constant 1 : index
    %c0_155 = arith.constant 0 : index
    %c0_156 = arith.constant 0 : index
    %440 = vector.load %arg8[%c1_154, %c0_155, %c0_156] : memref<2x32x32xbf16, #tpu.memory_space<vmem>>, vector<1x32x32xbf16>
    %441 = vector.shape_cast %440 : vector<1x32x32xbf16> to vector<32x32xbf16>
    %442 = arith.truncf %439 : vector<8x32xf32> to vector<8x32xbf16>
    %cst_157 = arith.constant dense<0.000000e+00> : vector<8x32xf32>
    %443 = tpu.matmul %442, %441, %cst_157 {dimension_numbers = #tpu.dot_dimension_numbers<[1], [0], [0], [1], [0, 0, 1, 1], [], []>} : vector<8x32xbf16>, vector<32x32xbf16>, vector<8x32xf32> -> vector<8x32xf32>
    %c1_158 = arith.constant 1 : index
    %c0_159 = arith.constant 0 : index
    %c0_160 = arith.constant 0 : index
    %444 = vector.load %arg9[%c1_158, %c0_159, %c0_160] : memref<2x1x32xf32, #tpu.memory_space<vmem>>, vector<1x1x32xf32>
    %445 = vector.shape_cast %444 : vector<1x1x32xf32> to vector<1x32xf32>
    %446 = vector.broadcast %445 : vector<1x32xf32> to vector<8x32xf32>
    %447 = arith.addf %443, %446 : vector<8x32xf32>
    %448 = arith.addf %337, %447 : vector<8x32xf32>
    %c1_161 = arith.constant 1 : index
    %c0_162 = arith.constant 0 : index
    %c0_163 = arith.constant 0 : index
    %449 = vector.load %arg16[%c1_161, %c0_162, %c0_163] : memref<2x1x32xf32, #tpu.memory_space<vmem>>, vector<1x1x32xf32>
    %450 = vector.shape_cast %449 : vector<1x1x32xf32> to vector<1x32xf32>
    %c1_164 = arith.constant 1 : index
    %c0_165 = arith.constant 0 : index
    %c0_166 = arith.constant 0 : index
    %451 = vector.load %arg17[%c1_164, %c0_165, %c0_166] : memref<2x1x32xf32, #tpu.memory_space<vmem>>, vector<1x1x32xf32>
    %452 = vector.shape_cast %451 : vector<1x1x32xf32> to vector<1x32xf32>
    %cst_167 = arith.constant dense<0.000000e+00> : vector<8xf32>
    %453 = vector.multi_reduction <add>, %448, %cst_167 [1] : vector<8x32xf32> to vector<8xf32>
    %454 = vector.shape_cast %453 : vector<8xf32> to vector<8x1xf32>
    %cst_168 = arith.constant 3.200000e+01 : f32
    %455 = vector.broadcast %cst_168 : f32 to vector<8x1xf32>
    %456 = arith.divf %454, %455 : vector<8x1xf32>
    %457 = vector.broadcast %456 : vector<8x1xf32> to vector<8x32xf32>
    %458 = arith.subf %448, %457 : vector<8x32xf32>
    %459 = arith.mulf %458, %458 : vector<8x32xf32>
    %cst_169 = arith.constant dense<0.000000e+00> : vector<8xf32>
    %460 = vector.multi_reduction <add>, %459, %cst_169 [1] : vector<8x32xf32> to vector<8xf32>
    %461 = vector.shape_cast %460 : vector<8xf32> to vector<8x1xf32>
    %cst_170 = arith.constant 3.200000e+01 : f32
    %462 = vector.broadcast %cst_170 : f32 to vector<8x1xf32>
    %463 = arith.divf %461, %462 : vector<8x1xf32>
    %464 = vector.broadcast %456 : vector<8x1xf32> to vector<8x32xf32>
    %465 = arith.subf %448, %464 : vector<8x32xf32>
    %cst_171 = arith.constant 9.99999974E-6 : f32
    %466 = vector.broadcast %cst_171 : f32 to vector<8x1xf32>
    %467 = arith.addf %463, %466 : vector<8x1xf32>
    %468 = math.rsqrt %467 : vector<8x1xf32>
    %469 = vector.broadcast %468 : vector<8x1xf32> to vector<8x32xf32>
    %470 = arith.mulf %465, %469 : vector<8x32xf32>
    %471 = vector.broadcast %450 : vector<1x32xf32> to vector<8x32xf32>
    %472 = arith.mulf %470, %471 : vector<8x32xf32>
    %473 = vector.broadcast %452 : vector<1x32xf32> to vector<8x32xf32>
    %474 = arith.addf %472, %473 : vector<8x32xf32>
    %c1_172 = arith.constant 1 : index
    %c0_173 = arith.constant 0 : index
    %c0_174 = arith.constant 0 : index
    %475 = vector.load %arg10[%c1_172, %c0_173, %c0_174] : memref<2x32x32xbf16, #tpu.memory_space<vmem>>, vector<1x32x32xbf16>
    %476 = vector.shape_cast %475 : vector<1x32x32xbf16> to vector<32x32xbf16>
    %477 = arith.truncf %474 : vector<8x32xf32> to vector<8x32xbf16>
    %cst_175 = arith.constant dense<0.000000e+00> : vector<8x32xf32>
    %478 = tpu.matmul %477, %476, %cst_175 {dimension_numbers = #tpu.dot_dimension_numbers<[1], [0], [0], [1], [0, 0, 1, 1], [], []>} : vector<8x32xbf16>, vector<32x32xbf16>, vector<8x32xf32> -> vector<8x32xf32>
    %c1_176 = arith.constant 1 : index
    %c0_177 = arith.constant 0 : index
    %c0_178 = arith.constant 0 : index
    %479 = vector.load %arg11[%c1_176, %c0_177, %c0_178] : memref<2x1x32xf32, #tpu.memory_space<vmem>>, vector<1x1x32xf32>
    %480 = vector.shape_cast %479 : vector<1x1x32xf32> to vector<1x32xf32>
    %481 = vector.broadcast %480 : vector<1x32xf32> to vector<8x32xf32>
    %482 = arith.addf %478, %481 : vector<8x32xf32>
    %cst_179 = arith.constant 0.353553385 : f32
    %483 = vector.broadcast %cst_179 : f32 to vector<8x32xf32>
    %484 = arith.mulf %482, %483 : vector<8x32xf32>
    %485 = vector.shape_cast %484 : vector<8x32xf32> to vector<1x8x32xf32>
    %c1_180 = arith.constant 1 : index
    %c0_181 = arith.constant 0 : index
    %c0_182 = arith.constant 0 : index
    %486 = vector.load %arg12[%c1_180, %c0_181, %c0_182] : memref<2x32x64xbf16, #tpu.memory_space<vmem>>, vector<1x32x64xbf16>
    %487 = vector.shape_cast %486 : vector<1x32x64xbf16> to vector<32x64xbf16>
    %cst_183 = arith.constant dense<0.000000e+00> : vector<8x64xf32>
    %488 = tpu.matmul %18, %487, %cst_183 {dimension_numbers = #tpu.dot_dimension_numbers<[1], [0], [0], [1], [0, 0, 1, 1], [], []>} : vector<8x32xbf16>, vector<32x64xbf16>, vector<8x64xf32> -> vector<8x64xf32>
    %c1_184 = arith.constant 1 : index
    %c0_185 = arith.constant 0 : index
    %c0_186 = arith.constant 0 : index
    %489 = vector.load %arg13[%c1_184, %c0_185, %c0_186] : memref<2x1x64xf32, #tpu.memory_space<vmem>>, vector<1x1x64xf32>
    %490 = vector.shape_cast %489 : vector<1x1x64xf32> to vector<1x64xf32>
    %491 = vector.broadcast %490 : vector<1x64xf32> to vector<8x64xf32>
    %492 = arith.addf %488, %491 : vector<8x64xf32>
    %493 = vector.extract_strided_slice %492 {offsets = [0, 0], sizes = [8, 32], strides = [1, 1]} : vector<8x64xf32> to vector<8x32xf32>
    %494 = vector.shape_cast %493 : vector<8x32xf32> to vector<1x8x32xf32>
    %495 = vector.extract_strided_slice %492 {offsets = [0, 32], sizes = [8, 32], strides = [1, 1]} : vector<8x64xf32> to vector<8x32xf32>
    %496 = vector.shape_cast %495 : vector<8x32xf32> to vector<1x8x32xf32>
    %497 = vector.extract_strided_slice %485 {offsets = [0, 0, 0], sizes = [1, 8, 8], strides = [1, 1, 1]} : vector<1x8x32xf32> to vector<1x8x8xf32>
    %498 = arith.truncf %497 : vector<1x8x8xf32> to vector<1x8x8xbf16>
    %499 = vector.extract_strided_slice %494 {offsets = [0, 0, 0], sizes = [1, 8, 8], strides = [1, 1, 1]} : vector<1x8x32xf32> to vector<1x8x8xf32>
    %500 = arith.truncf %499 : vector<1x8x8xf32> to vector<1x8x8xbf16>
    %501 = vector.extract_strided_slice %496 {offsets = [0, 0, 0], sizes = [1, 8, 8], strides = [1, 1, 1]} : vector<1x8x32xf32> to vector<1x8x8xf32>
    %502 = arith.truncf %501 : vector<1x8x8xf32> to vector<1x8x8xbf16>
    "tpu.trace_start"() <{level = 10 : i32, message = "bqd,bkd->bqk"}> : () -> ()
    %cst_187 = arith.constant dense<0.000000e+00> : vector<1x8x8xf32>
    %503 = tpu.matmul %498, %500, %cst_187 {dimension_numbers = #tpu.dot_dimension_numbers<[2], [2], [1], [1], [0, 0, 0, 1, 1, 1], [0], [0]>} : vector<1x8x8xbf16>, vector<1x8x8xbf16>, vector<1x8x8xf32> -> vector<1x8x8xf32>
    "tpu.trace_stop"() : () -> ()
    %cst_188 = arith.constant dense<0xFF800000> : vector<1x8xf32>
    %504 = vector.multi_reduction <maximumf>, %503, %cst_188 [2] : vector<1x8x8xf32> to vector<1x8xf32>
    %505 = vector.shape_cast %504 : vector<1x8xf32> to vector<1x8x1xf32>
    %506 = vector.broadcast %505 : vector<1x8x1xf32> to vector<1x8x8xf32>
    %507 = arith.subf %503, %506 : vector<1x8x8xf32>
    %508 = math.exp %507 : vector<1x8x8xf32>
    %cst_189 = arith.constant dense<0.000000e+00> : vector<1x8xf32>
    %509 = vector.multi_reduction <add>, %508, %cst_189 [2] : vector<1x8x8xf32> to vector<1x8xf32>
    %510 = vector.shape_cast %509 : vector<1x8xf32> to vector<1x8x1xf32>
    %511 = tpu.reciprocal %510 {approx = true} : vector<1x8x1xf32> -> vector<1x8x1xf32>
    %512 = vector.broadcast %511 : vector<1x8x1xf32> to vector<1x8x8xf32>
    %513 = arith.mulf %508, %512 : vector<1x8x8xf32>
    %514 = arith.truncf %513 : vector<1x8x8xf32> to vector<1x8x8xbf16>
    "tpu.trace_start"() <{level = 10 : i32, message = "bqk,bkd->bqd"}> : () -> ()
    %cst_190 = arith.constant dense<0.000000e+00> : vector<1x8x8xf32>
    %515 = tpu.matmul %514, %502, %cst_190 {dimension_numbers = #tpu.dot_dimension_numbers<[2], [1], [1], [2], [0, 0, 0, 1, 1, 2], [0], [0]>} : vector<1x8x8xbf16>, vector<1x8x8xbf16>, vector<1x8x8xf32> -> vector<1x8x8xf32>
    "tpu.trace_stop"() : () -> ()
    %516 = vector.extract_strided_slice %485 {offsets = [0, 0, 8], sizes = [1, 8, 8], strides = [1, 1, 1]} : vector<1x8x32xf32> to vector<1x8x8xf32>
    %517 = arith.truncf %516 : vector<1x8x8xf32> to vector<1x8x8xbf16>
    %518 = vector.extract_strided_slice %494 {offsets = [0, 0, 8], sizes = [1, 8, 8], strides = [1, 1, 1]} : vector<1x8x32xf32> to vector<1x8x8xf32>
    %519 = arith.truncf %518 : vector<1x8x8xf32> to vector<1x8x8xbf16>
    %520 = vector.extract_strided_slice %496 {offsets = [0, 0, 8], sizes = [1, 8, 8], strides = [1, 1, 1]} : vector<1x8x32xf32> to vector<1x8x8xf32>
    %521 = arith.truncf %520 : vector<1x8x8xf32> to vector<1x8x8xbf16>
    "tpu.trace_start"() <{level = 10 : i32, message = "bqd,bkd->bqk"}> : () -> ()
    %cst_191 = arith.constant dense<0.000000e+00> : vector<1x8x8xf32>
    %522 = tpu.matmul %517, %519, %cst_191 {dimension_numbers = #tpu.dot_dimension_numbers<[2], [2], [1], [1], [0, 0, 0, 1, 1, 1], [0], [0]>} : vector<1x8x8xbf16>, vector<1x8x8xbf16>, vector<1x8x8xf32> -> vector<1x8x8xf32>
    "tpu.trace_stop"() : () -> ()
    %cst_192 = arith.constant dense<0xFF800000> : vector<1x8xf32>
    %523 = vector.multi_reduction <maximumf>, %522, %cst_192 [2] : vector<1x8x8xf32> to vector<1x8xf32>
    %524 = vector.shape_cast %523 : vector<1x8xf32> to vector<1x8x1xf32>
    %525 = vector.broadcast %524 : vector<1x8x1xf32> to vector<1x8x8xf32>
    %526 = arith.subf %522, %525 : vector<1x8x8xf32>
    %527 = math.exp %526 : vector<1x8x8xf32>
    %cst_193 = arith.constant dense<0.000000e+00> : vector<1x8xf32>
    %528 = vector.multi_reduction <add>, %527, %cst_193 [2] : vector<1x8x8xf32> to vector<1x8xf32>
    %529 = vector.shape_cast %528 : vector<1x8xf32> to vector<1x8x1xf32>
    %530 = tpu.reciprocal %529 {approx = true} : vector<1x8x1xf32> -> vector<1x8x1xf32>
    %531 = vector.broadcast %530 : vector<1x8x1xf32> to vector<1x8x8xf32>
    %532 = arith.mulf %527, %531 : vector<1x8x8xf32>
    %533 = arith.truncf %532 : vector<1x8x8xf32> to vector<1x8x8xbf16>
    "tpu.trace_start"() <{level = 10 : i32, message = "bqk,bkd->bqd"}> : () -> ()
    %cst_194 = arith.constant dense<0.000000e+00> : vector<1x8x8xf32>
    %534 = tpu.matmul %533, %521, %cst_194 {dimension_numbers = #tpu.dot_dimension_numbers<[2], [1], [1], [2], [0, 0, 0, 1, 1, 2], [0], [0]>} : vector<1x8x8xbf16>, vector<1x8x8xbf16>, vector<1x8x8xf32> -> vector<1x8x8xf32>
    "tpu.trace_stop"() : () -> ()
    %535 = vector.extract_strided_slice %485 {offsets = [0, 0, 16], sizes = [1, 8, 8], strides = [1, 1, 1]} : vector<1x8x32xf32> to vector<1x8x8xf32>
    %536 = arith.truncf %535 : vector<1x8x8xf32> to vector<1x8x8xbf16>
    %537 = vector.extract_strided_slice %494 {offsets = [0, 0, 16], sizes = [1, 8, 8], strides = [1, 1, 1]} : vector<1x8x32xf32> to vector<1x8x8xf32>
    %538 = arith.truncf %537 : vector<1x8x8xf32> to vector<1x8x8xbf16>
    %539 = vector.extract_strided_slice %496 {offsets = [0, 0, 16], sizes = [1, 8, 8], strides = [1, 1, 1]} : vector<1x8x32xf32> to vector<1x8x8xf32>
    %540 = arith.truncf %539 : vector<1x8x8xf32> to vector<1x8x8xbf16>
    "tpu.trace_start"() <{level = 10 : i32, message = "bqd,bkd->bqk"}> : () -> ()
    %cst_195 = arith.constant dense<0.000000e+00> : vector<1x8x8xf32>
    %541 = tpu.matmul %536, %538, %cst_195 {dimension_numbers = #tpu.dot_dimension_numbers<[2], [2], [1], [1], [0, 0, 0, 1, 1, 1], [0], [0]>} : vector<1x8x8xbf16>, vector<1x8x8xbf16>, vector<1x8x8xf32> -> vector<1x8x8xf32>
    "tpu.trace_stop"() : () -> ()
    %cst_196 = arith.constant dense<0xFF800000> : vector<1x8xf32>
    %542 = vector.multi_reduction <maximumf>, %541, %cst_196 [2] : vector<1x8x8xf32> to vector<1x8xf32>
    %543 = vector.shape_cast %542 : vector<1x8xf32> to vector<1x8x1xf32>
    %544 = vector.broadcast %543 : vector<1x8x1xf32> to vector<1x8x8xf32>
    %545 = arith.subf %541, %544 : vector<1x8x8xf32>
    %546 = math.exp %545 : vector<1x8x8xf32>
    %cst_197 = arith.constant dense<0.000000e+00> : vector<1x8xf32>
    %547 = vector.multi_reduction <add>, %546, %cst_197 [2] : vector<1x8x8xf32> to vector<1x8xf32>
    %548 = vector.shape_cast %547 : vector<1x8xf32> to vector<1x8x1xf32>
    %549 = tpu.reciprocal %548 {approx = true} : vector<1x8x1xf32> -> vector<1x8x1xf32>
    %550 = vector.broadcast %549 : vector<1x8x1xf32> to vector<1x8x8xf32>
    %551 = arith.mulf %546, %550 : vector<1x8x8xf32>
    %552 = arith.truncf %551 : vector<1x8x8xf32> to vector<1x8x8xbf16>
    "tpu.trace_start"() <{level = 10 : i32, message = "bqk,bkd->bqd"}> : () -> ()
    %cst_198 = arith.constant dense<0.000000e+00> : vector<1x8x8xf32>
    %553 = tpu.matmul %552, %540, %cst_198 {dimension_numbers = #tpu.dot_dimension_numbers<[2], [1], [1], [2], [0, 0, 0, 1, 1, 2], [0], [0]>} : vector<1x8x8xbf16>, vector<1x8x8xbf16>, vector<1x8x8xf32> -> vector<1x8x8xf32>
    "tpu.trace_stop"() : () -> ()
    %554 = vector.extract_strided_slice %485 {offsets = [0, 0, 24], sizes = [1, 8, 8], strides = [1, 1, 1]} : vector<1x8x32xf32> to vector<1x8x8xf32>
    %555 = arith.truncf %554 : vector<1x8x8xf32> to vector<1x8x8xbf16>
    %556 = vector.extract_strided_slice %494 {offsets = [0, 0, 24], sizes = [1, 8, 8], strides = [1, 1, 1]} : vector<1x8x32xf32> to vector<1x8x8xf32>
    %557 = arith.truncf %556 : vector<1x8x8xf32> to vector<1x8x8xbf16>
    %558 = vector.extract_strided_slice %496 {offsets = [0, 0, 24], sizes = [1, 8, 8], strides = [1, 1, 1]} : vector<1x8x32xf32> to vector<1x8x8xf32>
    %559 = arith.truncf %558 : vector<1x8x8xf32> to vector<1x8x8xbf16>
    "tpu.trace_start"() <{level = 10 : i32, message = "bqd,bkd->bqk"}> : () -> ()
    %cst_199 = arith.constant dense<0.000000e+00> : vector<1x8x8xf32>
    %560 = tpu.matmul %555, %557, %cst_199 {dimension_numbers = #tpu.dot_dimension_numbers<[2], [2], [1], [1], [0, 0, 0, 1, 1, 1], [0], [0]>} : vector<1x8x8xbf16>, vector<1x8x8xbf16>, vector<1x8x8xf32> -> vector<1x8x8xf32>
    "tpu.trace_stop"() : () -> ()
    %cst_200 = arith.constant dense<0xFF800000> : vector<1x8xf32>
    %561 = vector.multi_reduction <maximumf>, %560, %cst_200 [2] : vector<1x8x8xf32> to vector<1x8xf32>
    %562 = vector.shape_cast %561 : vector<1x8xf32> to vector<1x8x1xf32>
    %563 = vector.broadcast %562 : vector<1x8x1xf32> to vector<1x8x8xf32>
    %564 = arith.subf %560, %563 : vector<1x8x8xf32>
    %565 = math.exp %564 : vector<1x8x8xf32>
    %cst_201 = arith.constant dense<0.000000e+00> : vector<1x8xf32>
    %566 = vector.multi_reduction <add>, %565, %cst_201 [2] : vector<1x8x8xf32> to vector<1x8xf32>
    %567 = vector.shape_cast %566 : vector<1x8xf32> to vector<1x8x1xf32>
    %568 = tpu.reciprocal %567 {approx = true} : vector<1x8x1xf32> -> vector<1x8x1xf32>
    %569 = vector.broadcast %568 : vector<1x8x1xf32> to vector<1x8x8xf32>
    %570 = arith.mulf %565, %569 : vector<1x8x8xf32>
    %571 = arith.truncf %570 : vector<1x8x8xf32> to vector<1x8x8xbf16>
    "tpu.trace_start"() <{level = 10 : i32, message = "bqk,bkd->bqd"}> : () -> ()
    %cst_202 = arith.constant dense<0.000000e+00> : vector<1x8x8xf32>
    %572 = tpu.matmul %571, %559, %cst_202 {dimension_numbers = #tpu.dot_dimension_numbers<[2], [1], [1], [2], [0, 0, 0, 1, 1, 2], [0], [0]>} : vector<1x8x8xbf16>, vector<1x8x8xbf16>, vector<1x8x8xf32> -> vector<1x8x8xf32>
    "tpu.trace_stop"() : () -> ()
    %573 = tpu.concatenate %515, %534, %553, %572 in 2 : vector<1x8x8xf32>, vector<1x8x8xf32>, vector<1x8x8xf32>, vector<1x8x8xf32> -> vector<1x8x32xf32>
    %574 = vector.shape_cast %573 : vector<1x8x32xf32> to vector<8x32xf32>
    %c1_203 = arith.constant 1 : index
    %c0_204 = arith.constant 0 : index
    %c0_205 = arith.constant 0 : index
    %575 = vector.load %arg14[%c1_203, %c0_204, %c0_205] : memref<2x32x32xbf16, #tpu.memory_space<vmem>>, vector<1x32x32xbf16>
    %576 = vector.shape_cast %575 : vector<1x32x32xbf16> to vector<32x32xbf16>
    %577 = arith.truncf %574 : vector<8x32xf32> to vector<8x32xbf16>
    %cst_206 = arith.constant dense<0.000000e+00> : vector<8x32xf32>
    %578 = tpu.matmul %577, %576, %cst_206 {dimension_numbers = #tpu.dot_dimension_numbers<[1], [0], [0], [1], [0, 0, 1, 1], [], []>} : vector<8x32xbf16>, vector<32x32xbf16>, vector<8x32xf32> -> vector<8x32xf32>
    %c1_207 = arith.constant 1 : index
    %c0_208 = arith.constant 0 : index
    %c0_209 = arith.constant 0 : index
    %579 = vector.load %arg15[%c1_207, %c0_208, %c0_209] : memref<2x1x32xf32, #tpu.memory_space<vmem>>, vector<1x1x32xf32>
    %580 = vector.shape_cast %579 : vector<1x1x32xf32> to vector<1x32xf32>
    %581 = vector.broadcast %580 : vector<1x32xf32> to vector<8x32xf32>
    %582 = arith.addf %578, %581 : vector<8x32xf32>
    %583 = arith.addf %474, %582 : vector<8x32xf32>
    %c1_210 = arith.constant 1 : index
    %c0_211 = arith.constant 0 : index
    %c0_212 = arith.constant 0 : index
    %584 = vector.load %arg18[%c1_210, %c0_211, %c0_212] : memref<2x1x32xf32, #tpu.memory_space<vmem>>, vector<1x1x32xf32>
    %585 = vector.shape_cast %584 : vector<1x1x32xf32> to vector<1x32xf32>
    %c1_213 = arith.constant 1 : index
    %c0_214 = arith.constant 0 : index
    %c0_215 = arith.constant 0 : index
    %586 = vector.load %arg19[%c1_213, %c0_214, %c0_215] : memref<2x1x32xf32, #tpu.memory_space<vmem>>, vector<1x1x32xf32>
    %587 = vector.shape_cast %586 : vector<1x1x32xf32> to vector<1x32xf32>
    %cst_216 = arith.constant dense<0.000000e+00> : vector<8xf32>
    %588 = vector.multi_reduction <add>, %583, %cst_216 [1] : vector<8x32xf32> to vector<8xf32>
    %589 = vector.shape_cast %588 : vector<8xf32> to vector<8x1xf32>
    %cst_217 = arith.constant 3.200000e+01 : f32
    %590 = vector.broadcast %cst_217 : f32 to vector<8x1xf32>
    %591 = arith.divf %589, %590 : vector<8x1xf32>
    %592 = vector.broadcast %591 : vector<8x1xf32> to vector<8x32xf32>
    %593 = arith.subf %583, %592 : vector<8x32xf32>
    %594 = arith.mulf %593, %593 : vector<8x32xf32>
    %cst_218 = arith.constant dense<0.000000e+00> : vector<8xf32>
    %595 = vector.multi_reduction <add>, %594, %cst_218 [1] : vector<8x32xf32> to vector<8xf32>
    %596 = vector.shape_cast %595 : vector<8xf32> to vector<8x1xf32>
    %cst_219 = arith.constant 3.200000e+01 : f32
    %597 = vector.broadcast %cst_219 : f32 to vector<8x1xf32>
    %598 = arith.divf %596, %597 : vector<8x1xf32>
    %599 = vector.broadcast %591 : vector<8x1xf32> to vector<8x32xf32>
    %600 = arith.subf %583, %599 : vector<8x32xf32>
    %cst_220 = arith.constant 9.99999974E-6 : f32
    %601 = vector.broadcast %cst_220 : f32 to vector<8x1xf32>
    %602 = arith.addf %598, %601 : vector<8x1xf32>
    %603 = math.rsqrt %602 : vector<8x1xf32>
    %604 = vector.broadcast %603 : vector<8x1xf32> to vector<8x32xf32>
    %605 = arith.mulf %600, %604 : vector<8x32xf32>
    %606 = vector.broadcast %585 : vector<1x32xf32> to vector<8x32xf32>
    %607 = arith.mulf %605, %606 : vector<8x32xf32>
    %608 = vector.broadcast %587 : vector<1x32xf32> to vector<8x32xf32>
    %609 = arith.addf %607, %608 : vector<8x32xf32>
    %c1_221 = arith.constant 1 : index
    %c0_222 = arith.constant 0 : index
    %c0_223 = arith.constant 0 : index
    %610 = vector.load %arg22[%c1_221, %c0_222, %c0_223] : memref<2x32x64xbf16, #tpu.memory_space<vmem>>, vector<1x32x64xbf16>
    %611 = vector.shape_cast %610 : vector<1x32x64xbf16> to vector<32x64xbf16>
    %612 = arith.truncf %609 : vector<8x32xf32> to vector<8x32xbf16>
    %cst_224 = arith.constant dense<0.000000e+00> : vector<8x64xf32>
    %613 = tpu.matmul %612, %611, %cst_224 {dimension_numbers = #tpu.dot_dimension_numbers<[1], [0], [0], [1], [0, 0, 1, 1], [], []>} : vector<8x32xbf16>, vector<32x64xbf16>, vector<8x64xf32> -> vector<8x64xf32>
    %c1_225 = arith.constant 1 : index
    %c0_226 = arith.constant 0 : index
    %c0_227 = arith.constant 0 : index
    %614 = vector.load %arg23[%c1_225, %c0_226, %c0_227] : memref<2x1x64xf32, #tpu.memory_space<vmem>>, vector<1x1x64xf32>
    %615 = vector.shape_cast %614 : vector<1x1x64xf32> to vector<1x64xf32>
    %616 = vector.broadcast %615 : vector<1x64xf32> to vector<8x64xf32>
    %617 = arith.addf %613, %616 : vector<8x64xf32>
    %cst_228 = arith.constant 0.000000e+00 : f32
    %618 = vector.broadcast %cst_228 : f32 to vector<8x64xf32>
    %619 = arith.maximumf %617, %618 : vector<8x64xf32>
    %c1_229 = arith.constant 1 : index
    %c0_230 = arith.constant 0 : index
    %c0_231 = arith.constant 0 : index
    %620 = vector.load %arg24[%c1_229, %c0_230, %c0_231] : memref<2x64x32xbf16, #tpu.memory_space<vmem>>, vector<1x64x32xbf16>
    %621 = vector.shape_cast %620 : vector<1x64x32xbf16> to vector<64x32xbf16>
    %622 = arith.truncf %619 : vector<8x64xf32> to vector<8x64xbf16>
    %cst_232 = arith.constant dense<0.000000e+00> : vector<8x32xf32>
    %623 = tpu.matmul %622, %621, %cst_232 {dimension_numbers = #tpu.dot_dimension_numbers<[1], [0], [0], [1], [0, 0, 1, 1], [], []>} : vector<8x64xbf16>, vector<64x32xbf16>, vector<8x32xf32> -> vector<8x32xf32>
    %c1_233 = arith.constant 1 : index
    %c0_234 = arith.constant 0 : index
    %c0_235 = arith.constant 0 : index
    %624 = vector.load %arg25[%c1_233, %c0_234, %c0_235] : memref<2x1x32xf32, #tpu.memory_space<vmem>>, vector<1x1x32xf32>
    %625 = vector.shape_cast %624 : vector<1x1x32xf32> to vector<1x32xf32>
    %626 = vector.broadcast %625 : vector<1x32xf32> to vector<8x32xf32>
    %627 = arith.addf %623, %626 : vector<8x32xf32>
    %628 = arith.addf %609, %627 : vector<8x32xf32>
    %c1_236 = arith.constant 1 : index
    %c0_237 = arith.constant 0 : index
    %c0_238 = arith.constant 0 : index
    %629 = vector.load %arg20[%c1_236, %c0_237, %c0_238] : memref<2x1x32xf32, #tpu.memory_space<vmem>>, vector<1x1x32xf32>
    %630 = vector.shape_cast %629 : vector<1x1x32xf32> to vector<1x32xf32>
    %c1_239 = arith.constant 1 : index
    %c0_240 = arith.constant 0 : index
    %c0_241 = arith.constant 0 : index
    %631 = vector.load %arg21[%c1_239, %c0_240, %c0_241] : memref<2x1x32xf32, #tpu.memory_space<vmem>>, vector<1x1x32xf32>
    %632 = vector.shape_cast %631 : vector<1x1x32xf32> to vector<1x32xf32>
    %cst_242 = arith.constant dense<0.000000e+00> : vector<8xf32>
    %633 = vector.multi_reduction <add>, %628, %cst_242 [1] : vector<8x32xf32> to vector<8xf32>
    %634 = vector.shape_cast %633 : vector<8xf32> to vector<8x1xf32>
    %cst_243 = arith.constant 3.200000e+01 : f32
    %635 = vector.broadcast %cst_243 : f32 to vector<8x1xf32>
    %636 = arith.divf %634, %635 : vector<8x1xf32>
    %637 = vector.broadcast %636 : vector<8x1xf32> to vector<8x32xf32>
    %638 = arith.subf %628, %637 : vector<8x32xf32>
    %639 = arith.mulf %638, %638 : vector<8x32xf32>
    %cst_244 = arith.constant dense<0.000000e+00> : vector<8xf32>
    %640 = vector.multi_reduction <add>, %639, %cst_244 [1] : vector<8x32xf32> to vector<8xf32>
    %641 = vector.shape_cast %640 : vector<8xf32> to vector<8x1xf32>
    %cst_245 = arith.constant 3.200000e+01 : f32
    %642 = vector.broadcast %cst_245 : f32 to vector<8x1xf32>
    %643 = arith.divf %641, %642 : vector<8x1xf32>
    %644 = vector.broadcast %636 : vector<8x1xf32> to vector<8x32xf32>
    %645 = arith.subf %628, %644 : vector<8x32xf32>
    %cst_246 = arith.constant 9.99999974E-6 : f32
    %646 = vector.broadcast %cst_246 : f32 to vector<8x1xf32>
    %647 = arith.addf %643, %646 : vector<8x1xf32>
    %648 = math.rsqrt %647 : vector<8x1xf32>
    %649 = vector.broadcast %648 : vector<8x1xf32> to vector<8x32xf32>
    %650 = arith.mulf %645, %649 : vector<8x32xf32>
    %651 = vector.broadcast %630 : vector<1x32xf32> to vector<8x32xf32>
    %652 = arith.mulf %650, %651 : vector<8x32xf32>
    %653 = vector.broadcast %632 : vector<1x32xf32> to vector<8x32xf32>
    %654 = arith.addf %652, %653 : vector<8x32xf32>
    %c0_247 = arith.constant 0 : index
    %c0_248 = arith.constant 0 : index
    %655 = vector.load %arg26[%c0_247, %c0_248] : memref<32x128xbf16, #tpu.memory_space<vmem>>, vector<32x128xbf16>
    %656 = arith.truncf %654 : vector<8x32xf32> to vector<8x32xbf16>
    %cst_249 = arith.constant dense<0.000000e+00> : vector<8x128xf32>
    %657 = tpu.matmul %656, %655, %cst_249 {dimension_numbers = #tpu.dot_dimension_numbers<[1], [0], [0], [1], [0, 0, 1, 1], [], []>} : vector<8x32xbf16>, vector<32x128xbf16>, vector<8x128xf32> -> vector<8x128xf32>
    %c0_250 = arith.constant 0 : index
    %c0_251 = arith.constant 0 : index
    %658 = vector.load %arg27[%c0_250, %c0_251] : memref<1x128xf32, #tpu.memory_space<vmem>>, vector<1x128xf32>
    %659 = vector.broadcast %658 : vector<1x128xf32> to vector<8x128xf32>
    %660 = arith.addf %657, %659 : vector<8x128xf32>
    %661 = vector.shape_cast %660 : vector<8x128xf32> to vector<1x8x128xf32>
    %c0_252 = arith.constant 0 : index
    %c0_253 = arith.constant 0 : index
    %c0_254 = arith.constant 0 : index
    %662 = vector.load %arg28[%c0_252, %c0_253, %c0_254] : memref<1x8x128xf32, #tpu.memory_space<vmem>>, vector<1x8x128xf32>
    tpu.vector_store %arg28[%c0_252, %c0_253, %c0_254], %661 {strides = array<i32>} : memref<1x8x128xf32, #tpu.memory_space<vmem>>, vector<1x8x128xf32>,
    return
  }
  func.func @transform_0(%arg0: i32) -> (i32, i32, i32) {
    %c0_i32 = arith.constant 0 : i32
    %c0_i32_0 = arith.constant 0 : i32
    %c0_i32_1 = arith.constant 0 : i32
    return %arg0, %c0_i32, %c0_i32_0 : i32, i32, i32
  }
  func.func @transform_1(%arg0: i32) -> (i32, i32) {
    %c0_i32 = arith.constant 0 : i32
    %c0_i32_0 = arith.constant 0 : i32
    %c0_i32_1 = arith.constant 0 : i32
    return %c0_i32, %c0_i32_0 : i32, i32
  }
  func.func @transform_2(%arg0: i32) -> (i32, i32) {
    %c0_i32 = arith.constant 0 : i32
    %c0_i32_0 = arith.constant 0 : i32
    %c0_i32_1 = arith.constant 0 : i32
    return %c0_i32, %c0_i32_0 : i32, i32
  }
  func.func @transform_3(%arg0: i32) -> (i32, i32, i32) {
    %c0_i32 = arith.constant 0 : i32
    %c0_i32_0 = arith.constant 0 : i32
    %c0_i32_1 = arith.constant 0 : i32
    %c0_i32_2 = arith.constant 0 : i32
    return %c0_i32, %c0_i32_0, %c0_i32_1 : i32, i32, i32
  }
  func.func @transform_4(%arg0: i32) -> (i32, i32, i32) {
    %c0_i32 = arith.constant 0 : i32
    %c0_i32_0 = arith.constant 0 : i32
    %c0_i32_1 = arith.constant 0 : i32
    %c0_i32_2 = arith.constant 0 : i32
    return %c0_i32, %c0_i32_0, %c0_i32_1 : i32, i32, i32
  }
  func.func @transform_5(%arg0: i32) -> (i32, i32, i32) {
    %c0_i32 = arith.constant 0 : i32
    %c0_i32_0 = arith.constant 0 : i32
    %c0_i32_1 = arith.constant 0 : i32
    %c0_i32_2 = arith.constant 0 : i32
    return %c0_i32, %c0_i32_0, %c0_i32_1 : i32, i32, i32
  }
  func.func @transform_6(%arg0: i32) -> (i32, i32, i32) {
    %c0_i32 = arith.constant 0 : i32
    %c0_i32_0 = arith.constant 0 : i32
    %c0_i32_1 = arith.constant 0 : i32
    %c0_i32_2 = arith.constant 0 : i32
    return %c0_i32, %c0_i32_0, %c0_i32_1 : i32, i32, i32
  }
  func.func @transform_7(%arg0: i32) -> (i32, i32, i32) {
    %c0_i32 = arith.constant 0 : i32
    %c0_i32_0 = arith.constant 0 : i32
    %c0_i32_1 = arith.constant 0 : i32
    %c0_i32_2 = arith.constant 0 : i32
    return %c0_i32, %c0_i32_0, %c0_i32_1 : i32, i32, i32
  }
  func.func @transform_8(%arg0: i32) -> (i32, i32, i32) {
    %c0_i32 = arith.constant 0 : i32
    %c0_i32_0 = arith.constant 0 : i32
    %c0_i32_1 = arith.constant 0 : i32
    %c0_i32_2 = arith.constant 0 : i32
    return %c0_i32, %c0_i32_0, %c0_i32_1 : i32, i32, i32
  }
  func.func @transform_9(%arg0: i32) -> (i32, i32, i32) {
    %c0_i32 = arith.constant 0 : i32
    %c0_i32_0 = arith.constant 0 : i32
    %c0_i32_1 = arith.constant 0 : i32
    %c0_i32_2 = arith.constant 0 : i32
    return %c0_i32, %c0_i32_0, %c0_i32_1 : i32, i32, i32
  }
  func.func @transform_10(%arg0: i32) -> (i32, i32, i32) {
    %c0_i32 = arith.constant 0 : i32
    %c0_i32_0 = arith.constant 0 : i32
    %c0_i32_1 = arith.constant 0 : i32
    %c0_i32_2 = arith.constant 0 : i32
    return %c0_i32, %c0_i32_0, %c0_i32_1 : i32, i32, i32
  }
  func.func @transform_11(%arg0: i32) -> (i32, i32, i32) {
    %c0_i32 = arith.constant 0 : i32
    %c0_i32_0 = arith.constant 0 : i32
    %c0_i32_1 = arith.constant 0 : i32
    %c0_i32_2 = arith.constant 0 : i32
    return %c0_i32, %c0_i32_0, %c0_i32_1 : i32, i32, i32
  }
  func.func @transform_12(%arg0: i32) -> (i32, i32, i32) {
    %c0_i32 = arith.constant 0 : i32
    %c0_i32_0 = arith.constant 0 : i32
    %c0_i32_1 = arith.constant 0 : i32
    %c0_i32_2 = arith.constant 0 : i32
    return %c0_i32, %c0_i32_0, %c0_i32_1 : i32, i32, i32
  }
  func.func @transform_13(%arg0: i32) -> (i32, i32, i32) {
    %c0_i32 = arith.constant 0 : i32
    %c0_i32_0 = arith.constant 0 : i32
    %c0_i32_1 = arith.constant 0 : i32
    %c0_i32_2 = arith.constant 0 : i32
    return %c0_i32, %c0_i32_0, %c0_i32_1 : i32, i32, i32
  }
  func.func @transform_14(%arg0: i32) -> (i32, i32, i32) {
    %c0_i32 = arith.constant 0 : i32
    %c0_i32_0 = arith.constant 0 : i32
    %c0_i32_1 = arith.constant 0 : i32
    %c0_i32_2 = arith.constant 0 : i32
    return %c0_i32, %c0_i32_0, %c0_i32_1 : i32, i32, i32
  }
  func.func @transform_15(%arg0: i32) -> (i32, i32, i32) {
    %c0_i32 = arith.constant 0 : i32
    %c0_i32_0 = arith.constant 0 : i32
    %c0_i32_1 = arith.constant 0 : i32
    %c0_i32_2 = arith.constant 0 : i32
    return %c0_i32, %c0_i32_0, %c0_i32_1 : i32, i32, i32
  }
  func.func @transform_16(%arg0: i32) -> (i32, i32, i32) {
    %c0_i32 = arith.constant 0 : i32
    %c0_i32_0 = arith.constant 0 : i32
    %c0_i32_1 = arith.constant 0 : i32
    %c0_i32_2 = arith.constant 0 : i32
    return %c0_i32, %c0_i32_0, %c0_i32_1 : i32, i32, i32
  }
  func.func @transform_17(%arg0: i32) -> (i32, i32, i32) {
    %c0_i32 = arith.constant 0 : i32
    %c0_i32_0 = arith.constant 0 : i32
    %c0_i32_1 = arith.constant 0 : i32
    %c0_i32_2 = arith.constant 0 : i32
    return %c0_i32, %c0_i32_0, %c0_i32_1 : i32, i32, i32
  }
  func.func @transform_18(%arg0: i32) -> (i32, i32, i32) {
    %c0_i32 = arith.constant 0 : i32
    %c0_i32_0 = arith.constant 0 : i32
    %c0_i32_1 = arith.constant 0 : i32
    %c0_i32_2 = arith.constant 0 : i32
    return %c0_i32, %c0_i32_0, %c0_i32_1 : i32, i32, i32
  }
  func.func @transform_19(%arg0: i32) -> (i32, i32, i32) {
    %c0_i32 = arith.constant 0 : i32
    %c0_i32_0 = arith.constant 0 : i32
    %c0_i32_1 = arith.constant 0 : i32
    %c0_i32_2 = arith.constant 0 : i32
    return %c0_i32, %c0_i32_0, %c0_i32_1 : i32, i32, i32
  }
  func.func @transform_20(%arg0: i32) -> (i32, i32, i32) {
    %c0_i32 = arith.constant 0 : i32
    %c0_i32_0 = arith.constant 0 : i32
    %c0_i32_1 = arith.constant 0 : i32
    %c0_i32_2 = arith.constant 0 : i32
    return %c0_i32, %c0_i32_0, %c0_i32_1 : i32, i32, i32
  }
  func.func @transform_21(%arg0: i32) -> (i32, i32, i32) {
    %c0_i32 = arith.constant 0 : i32
    %c0_i32_0 = arith.constant 0 : i32
    %c0_i32_1 = arith.constant 0 : i32
    %c0_i32_2 = arith.constant 0 : i32
    return %c0_i32, %c0_i32_0, %c0_i32_1 : i32, i32, i32
  }
  func.func @transform_22(%arg0: i32) -> (i32, i32, i32) {
    %c0_i32 = arith.constant 0 : i32
    %c0_i32_0 = arith.constant 0 : i32
    %c0_i32_1 = arith.constant 0 : i32
    %c0_i32_2 = arith.constant 0 : i32
    return %c0_i32, %c0_i32_0, %c0_i32_1 : i32, i32, i32
  }
  func.func @transform_23(%arg0: i32) -> (i32, i32, i32) {
    %c0_i32 = arith.constant 0 : i32
    %c0_i32_0 = arith.constant 0 : i32
    %c0_i32_1 = arith.constant 0 : i32
    %c0_i32_2 = arith.constant 0 : i32
    return %c0_i32, %c0_i32_0, %c0_i32_1 : i32, i32, i32
  }
  func.func @transform_24(%arg0: i32) -> (i32, i32, i32) {
    %c0_i32 = arith.constant 0 : i32
    %c0_i32_0 = arith.constant 0 : i32
    %c0_i32_1 = arith.constant 0 : i32
    %c0_i32_2 = arith.constant 0 : i32
    return %c0_i32, %c0_i32_0, %c0_i32_1 : i32, i32, i32
  }
  func.func @transform_25(%arg0: i32) -> (i32, i32) {
    %c0_i32 = arith.constant 0 : i32
    %c0_i32_0 = arith.constant 0 : i32
    %c0_i32_1 = arith.constant 0 : i32
    return %c0_i32, %c0_i32_0 : i32, i32
  }
  func.func @transform_26(%arg0: i32) -> (i32, i32) {
    %c0_i32 = arith.constant 0 : i32
    %c0_i32_0 = arith.constant 0 : i32
    %c0_i32_1 = arith.constant 0 : i32
    return %c0_i32, %c0_i32_0 : i32, i32
  }
  func.func @transform_27(%arg0: i32) -> (i32, i32, i32) {
    %c0_i32 = arith.constant 0 : i32
    %c0_i32_0 = arith.constant 0 : i32
    %c0_i32_1 = arith.constant 0 : i32
    return %arg0, %c0_i32, %c0_i32_0 : i32, i32, i32
  }
}

</mosaic_0001>

<llo_original>
// kernel: image_to_audio_forward.1
$region0: #{image_to_audio_forward.1}
  #allocation0 [shape = 'u32[]', space=smem, size = 0x4, offset = 0x4, fixed_abs, tag = 'smem constant byte address 0x4 - core index']
  #allocation1 [shape = 'u32[144,128]{1,0:T(1,128)}', space=vmem, size = 0x12000, scoped, tag = 'internal scratch']
  %s0 = inlined_call_operand.hbm [shape: f32[2,8,32], index: 0, kind: input, shape index: {}]
  %s1 = inlined_call_operand.vmem [shape: bf16[32,32], index: 1, kind: input, shape index: {}]
  %s2 = inlined_call_operand.hbm [shape: f32[1,32], index: 2, kind: input, shape index: {}]
  %s3 = inlined_call_operand.hbm [shape: f32[1,8,32], index: 3, kind: input, shape index: {}]
  %s4 = inlined_call_operand.hbm [shape: f32[1,8,32], index: 4, kind: input, shape index: {}]
  %s5 = inlined_call_operand.vmem [shape: bf16[2,32,96], index: 5, kind: input, shape index: {}]
  %s6 = inlined_call_operand.vmem [shape: f32[2,1,96], index: 6, kind: input, shape index: {}]
  %s7 = inlined_call_operand.vmem [shape: bf16[2,32,32], index: 7, kind: input, shape index: {}]
  %s8 = inlined_call_operand.vmem [shape: f32[2,1,32], index: 8, kind: input, shape index: {}]
  %s9 = inlined_call_operand.vmem [shape: bf16[2,32,32], index: 9, kind: input, shape index: {}]
  %s10 = inlined_call_operand.hbm [shape: f32[2,1,32], index: 10, kind: input, shape index: {}]
  %s11 = inlined_call_operand.hbm [shape: bf16[2,32,64], index: 11, kind: input, shape index: {}]
  %s12 = inlined_call_operand.hbm [shape: f32[2,1,64], index: 12, kind: input, shape index: {}]
  %s13 = inlined_call_operand.hbm [shape: bf16[2,32,32], index: 13, kind: input, shape index: {}]
  %s14 = inlined_call_operand.hbm [shape: f32[2,1,32], index: 14, kind: input, shape index: {}]
  %s15 = inlined_call_operand.hbm [shape: f32[2,1,32], index: 15, kind: input, shape index: {}]
  %s16 = inlined_call_operand.hbm [shape: f32[2,1,32], index: 16, kind: input, shape index: {}]
  %s17 = inlined_call_operand.hbm [shape: f32[2,1,32], index: 17, kind: input, shape index: {}]
  %s18 = inlined_call_operand.hbm [shape: f32[2,1,32], index: 18, kind: input, shape index: {}]
  %s19 = inlined_call_operand.vmem [shape: f32[2,1,32], index: 19, kind: input, shape index: {}]
  %s20 = inlined_call_operand.hbm [shape: f32[2,1,32], index: 20, kind: input, shape index: {}]
  %s21 = inlined_call_operand.hbm [shape: bf16[2,32,64], index: 21, kind: input, shape index: {}]
  %s22 = inlined_call_operand.hbm [shape: f32[2,1,64], index: 22, kind: input, shape index: {}]
  %s23 = inlined_call_operand.vmem [shape: bf16[2,64,32], index: 23, kind: input, shape index: {}]
  %s24 = inlined_call_operand.hbm [shape: f32[2,1,32], index: 24, kind: input, shape index: {}]
  %s25 = inlined_call_operand.vmem [shape: bf16[32,128], index: 25, kind: input, shape index: {}]
  %s26 = inlined_call_operand.vmem [shape: f32[1,128], index: 26, kind: input, shape index: {}]
  %s27 = inlined_call_operand.hbm [shape: f32[2,8,128], index: 27, kind: output, shape index: {}]
  %s28 = sld [smem:[#allocation0]]
  $region209: #{image_to_audio_forward.1} parent=0
    _
  %s30 = ssub.s32 1, %s28
  %s31 = scalar_select 0, %s30, %s28
  $region1: #{image_to_audio_forward.1} parent=0
    #allocation2 [shape = 'u8[8192]{0}', space=vmem, size = 0x2000, scoped, tag = 'input window, operand 0']
    #allocation3 [shape = 's32[2]{0}', space=sflag, size = 0x8, scoped, tag = 'scoped memory for image_to_audio_forward.1']
    #allocation4 [shape = 's32[2]{0}', space=sflag, size = 0x8, scoped, tag = 'scoped memory for image_to_audio_forward.1']
    #allocation5 [shape = 'u8[512]{0}', space=vmem, size = 0x400, scoped, tag = 'input window, operand 2, single buffered']
    #allocation6 [shape = 's32[1]{0}', space=sflag, size = 0x4, scoped, tag = 'scoped memory for image_to_audio_forward.1']
    #allocation7 [shape = 'u8[4096]{0}', space=vmem, size = 0x1000, scoped, tag = 'input window, operand 3, single buffered']
    #allocation8 [shape = 'u8[4096]{0}', space=vmem, size = 0x1000, scoped, tag = 'input window, operand 4, single buffered']
    #allocation9 [shape = 's32[1]{0}', space=sflag, size = 0x4, scoped, tag = 'scoped memory for image_to_audio_forward.1']
    #allocation10 [shape = 'u8[1024]{0}', space=vmem, size = 0x400, scoped, tag = 'input window, operand 10, single buffered']
    #allocation11 [shape = 'u8[16384]{0}', space=vmem, size = 0x4000, scoped, tag = 'input window, operand 11, single buffered']
    #allocation12 [shape = 's32[1]{0}', space=sflag, size = 0x4, scoped, tag = 'scoped memory for image_to_audio_forward.1']
    #allocation13 [shape = 'u8[1024]{0}', space=vmem, size = 0x400, scoped, tag = 'input window, operand 12, single buffered']
    #allocation14 [shape = 'u8[16384]{0}', space=vmem, size = 0x4000, scoped, tag = 'input window, operand 13, single buffered']
    #allocation15 [shape = 's32[1]{0}', space=sflag, size = 0x4, scoped, tag = 'scoped memory for image_to_audio_forward.1']
    #allocation16 [shape = 'u8[1024]{0}', space=vmem, size = 0x400, scoped, tag = 'input window, operand 14, single buffered']
    #allocation17 [shape = 'u8[1024]{0}', space=vmem, size = 0x400, scoped, tag = 'input window, operand 15, single buffered']
    #allocation18 [shape = 's32[1]{0}', space=sflag, size = 0x4, scoped, tag = 'scoped memory for image_to_audio_forward.1']
    #allocation19 [shape = 'u8[1024]{0}', space=vmem, size = 0x400, scoped, tag = 'input window, operand 16, single buffered']
    #allocation20 [shape = 'u8[1024]{0}', space=vmem, size = 0x400, scoped, tag = 'input window, operand 17, single buffered']
    #allocation21 [shape = 's32[1]{0}', space=sflag, size = 0x4, scoped, tag = 'scoped memory for image_to_audio_forward.1']
    #allocation22 [shape = 'u8[1024]{0}', space=vmem, size = 0x400, scoped, tag = 'input window, operand 18, single buffered']
    #allocation23 [shape = 'u8[1024]{0}', space=vmem, size = 0x400, scoped, tag = 'input window, operand 20, single buffered']
    #allocation24 [shape = 's32[1]{0}', space=sflag, size = 0x4, scoped, tag = 'scoped memory for image_to_audio_forward.1']
    #allocation25 [shape = 'u8[16384]{0}', space=vmem, size = 0x4000, scoped, tag = 'input window, operand 21, single buffered']
    #allocation26 [shape = 'u8[1024]{0}', space=vmem, size = 0x400, scoped, tag = 'input window, operand 22, single buffered']
    #allocation27 [shape = 's32[1]{0}', space=sflag, size = 0x4, scoped, tag = 'scoped memory for image_to_audio_forward.1']
    #allocation28 [shape = 'u8[1024]{0}', space=vmem, size = 0x400, scoped, tag = 'input window, operand 24, single buffered']
    #allocation29 [shape = 'u8[8192]{0}', space=vmem, size = 0x2000, scoped, tag = 'output window, operand 0']
    %32 = vsyncpa [#allocation3], 0
    %s33 = scalar_lea.sflag [#allocation3], 1
    %34 = vsyncpa %s33, 0
    %35 = vsyncpa [#allocation6], 0
    %36 = vsyncpa [#allocation9], 0
    %37 = vsyncpa [#allocation12], 0
    %38 = vsyncpa [#allocation15], 0
    %39 = vsyncpa [#allocation18], 0
    %40 = vsyncpa [#allocation21], 0
    %41 = vsyncpa [#allocation24], 0
    %42 = vsyncpa [#allocation27], 0
    %43 = vsyncpa [#allocation4], 0
    %s44 = scalar_lea.sflag [#allocation4], 1
    %45 = vsyncpa %s44, 0
    loop: start=0, step=1, limit=4
    $region2: #{image_to_audio_forward.1} parent=1 // loop_pre_header
      _
    $region3: #{image_to_audio_forward.1} parent=1 // loop_header
      %s47 = sphi 0, %s51
      %p48 = scmp.ge.s32.totalorder %s47, 4
      %s57 = sphi 0, %s59
      %s60 = sphi 0, %s57
      %s61 = sphi 0, %s60
      %s77 = sphi 0, %s61
      %s81 = sphi 0, %s81
      %s83 = sphi 0, %s81
      %s84 = sphi 0, %s83
      %s98 = sphi 0, %s84
      %s102 = sphi 0, %s102
      %s104 = sphi 0, %s102
      %s105 = sphi 0, %s104
      %s119 = sphi 0, %s105
      %s123 = sphi 0, %s123
      %s125 = sphi 0, %s123
      %s126 = sphi 0, %s125
      %s140 = sphi 0, %s126
      %s144 = sphi 0, %s144
      %s146 = sphi 0, %s144
      %s147 = sphi 0, %s146
      %s161 = sphi 0, %s147
      %s165 = sphi 0, %s165
      %s167 = sphi 0, %s165
      %s168 = sphi 0, %s167
      %s182 = sphi 0, %s168
      %s186 = sphi 0, %s186
      %s188 = sphi 0, %s186
      %s189 = sphi 0, %s188
      %s203 = sphi 0, %s189
      %s207 = sphi 0, %s207
      %s209 = sphi 0, %s207
      %s210 = sphi 0, %s209
      %s224 = sphi 0, %s210
      %s228 = sphi 0, %s228
      %s230 = sphi 0, %s228
      %s231 = sphi 0, %s230
      %s245 = sphi 0, %s231
      %s249 = sphi 0, %s249
      %s251 = sphi 0, %s249
      %s252 = sphi 0, %s251
      %s266 = sphi 0, %s252
      %s270 = sphi 0, %s270
      %s272 = sphi 0, %s270
      %s273 = sphi 0, %s272
      %s287 = sphi 0, %s273
      %s291 = sphi 0, %s291
      %s293 = sphi 0, %s291
      %s294 = sphi 0, %s293
      %s308 = sphi 0, %s294
      %s312 = sphi 0, %s312
      %s314 = sphi 0, %s312
      %s315 = sphi 0, %s314
      %s329 = sphi 0, %s315
      %s333 = sphi 0, %s333
      %s335 = sphi 0, %s333
      %s336 = sphi 0, %s335
      %s350 = sphi 0, %s336
      %s354 = sphi 0, %s354
      %s356 = sphi 0, %s354
      %s357 = sphi 0, %s356
      %s371 = sphi 0, %s357
      %s375 = sphi 0, %s375
      %s377 = sphi 0, %s375
      %s378 = sphi 0, %s377
      %s392 = sphi 0, %s378
      %s396 = sphi 0, %s396
      %s398 = sphi 0, %s396
      %s399 = sphi 0, %s398
      %s413 = sphi 0, %s399
      %s417 = sphi 0, %s417
      %s419 = sphi 0, %s417
      %s420 = sphi 0, %s419
      %s434 = sphi 0, %s420
      %s438 = sphi 0, %s438
      %s440 = sphi 0, %s438
      %s441 = sphi 0, %s440
      %s455 = sphi 0, %s441
      %s459 = sphi 0, %s459
      %s461 = sphi 0, %s459
      %s462 = sphi 0, %s461
      %s476 = sphi 0, %s462
      %s480 = sphi 0, %s480
      %s482 = sphi 0, %s480
      %s483 = sphi 0, %s482
      %s497 = sphi 0, %s483
      %s501 = sphi 0, %s501
      %s503 = sphi 0, %s501
      %s504 = sphi 0, %s503
      %s518 = sphi 0, %s504
      %s522 = sphi 0, %s522
      %s524 = sphi 0, %s522
      %s525 = sphi 0, %s524
      %s539 = sphi 0, %s525
      %s543 = sphi 0, %s543
      %s545 = sphi 0, %s543
      %s546 = sphi 0, %s545
      %s560 = sphi 0, %s546
      %s564 = sphi 0, %s564
      %s566 = sphi 0, %s564
      %s567 = sphi 0, %s566
      %s581 = sphi 0, %s567
      %s585 = sphi 0, %s585
      %s587 = sphi 0, %s585
      %s588 = sphi 0, %s587
      %s602 = sphi 0, %s588
      %s606 = sphi 0, %s606
      %s608 = sphi 0, %s606
      %s609 = sphi 0, %s608
      %s623 = sphi 0, %s609
      %s629 = sphi 0, %s631
      %s632 = sphi 0, %s629
      %s633 = sphi 0, %s632
      %s649 = sphi 0, %s633
    $region4: #{image_to_audio_forward.1} parent=1 // loop_header_branch
      %50 = sbr.rel (%p48) target = $region8
    $region5: #{image_to_audio_forward.1} parent=1 // loop_body
      %s52 = ssub.s32 %s47, 1
      %s53 = ssub.s32 %s47, 2
      %s54 = sadd.s32 %s47, 1
      %s55 = ssub.s32 %s47, %s54
      %p56 = scmp.eq.s32.totalorder %s55, 0
      %s58 = sadd.s32 %s57, 1
      %s59 = scalar_select %p56, %s57, %s58
      %p62 = pneg %p56
      %p63 = scmp.eq.s32.totalorder %s47, 1
      %p64 = por %p62, %p63
      %p65 = scmp.ne.s32.totalorder %s57, %s60
      %p66 = scmp.eq.s32.totalorder %s47, 0
      %p67 = por %p65, %p66
      %p68 = scmp.ne.s32.totalorder %s57, %s60
      %p69 = scmp.eq.s32.totalorder %s52, 1
      %p70 = por %p68, %p69
      %p71 = scmp.ne.s32.totalorder %s60, %s61
      %p72 = scmp.eq.s32.totalorder %s52, 0
      %p73 = por %p71, %p72
      %p74 = scmp.ne.s32.totalorder %s60, %s61
      %p75 = scmp.eq.s32.totalorder %s53, 1
      %p76 = por %p74, %p75
      %p78 = scmp.ne.s32.totalorder %s61, %s77
      %p79 = scmp.eq.s32.totalorder %s53, 0
      %p80 = por %p78, %p79
      %s82 = sadd.s32 %s81, 1
      %p85 = scmp.eq.s32.totalorder %s47, 1
      %p86 = scmp.ne.s32.totalorder %s81, %s83
      %p87 = scmp.eq.s32.totalorder %s47, 0
      %p88 = por %p86, %p87
      %p89 = scmp.ne.s32.totalorder %s81, %s83
      %p90 = scmp.eq.s32.totalorder %s52, 1
      %p91 = por %p89, %p90
      %p92 = scmp.ne.s32.totalorder %s83, %s84
      %p93 = scmp.eq.s32.totalorder %s52, 0
      %p94 = por %p92, %p93
      %p95 = scmp.ne.s32.totalorder %s83, %s84
      %p96 = scmp.eq.s32.totalorder %s53, 1
      %p97 = por %p95, %p96
      %p99 = scmp.ne.s32.totalorder %s84, %s98
      %p100 = scmp.eq.s32.totalorder %s53, 0
      %p101 = por %p99, %p100
      %s103 = sadd.s32 %s102, 1
      %p106 = scmp.eq.s32.totalorder %s47, 1
      %p107 = scmp.ne.s32.totalorder %s102, %s104
      %p108 = scmp.eq.s32.totalorder %s47, 0
      %p109 = por %p107, %p108
      %p110 = scmp.ne.s32.totalorder %s102, %s104
      %p111 = scmp.eq.s32.totalorder %s52, 1
      %p112 = por %p110, %p111
      %p113 = scmp.ne.s32.totalorder %s104, %s105
      %p114 = scmp.eq.s32.totalorder %s52, 0
      %p115 = por %p113, %p114
      %p116 = scmp.ne.s32.totalorder %s104, %s105
      %p117 = scmp.eq.s32.totalorder %s53, 1
      %p118 = por %p116, %p117
      %p120 = scmp.ne.s32.totalorder %s105, %s119
      %p121 = scmp.eq.s32.totalorder %s53, 0
      %p122 = por %p120, %p121
      %s124 = sadd.s32 %s123, 1
      %p127 = scmp.eq.s32.totalorder %s47, 1
      %p128 = scmp.ne.s32.totalorder %s123, %s125
      %p129 = scmp.eq.s32.totalorder %s47, 0
      %p130 = por %p128, %p129
      %p131 = scmp.ne.s32.totalorder %s123, %s125
      %p132 = scmp.eq.s32.totalorder %s52, 1
      %p133 = por %p131, %p132
      %p134 = scmp.ne.s32.totalorder %s125, %s126
      %p135 = scmp.eq.s32.totalorder %s52, 0
      %p136 = por %p134, %p135
      %p137 = scmp.ne.s32.totalorder %s125, %s126
      %p138 = scmp.eq.s32.totalorder %s53, 1
      %p139 = por %p137, %p138
      %p141 = scmp.ne.s32.totalorder %s126, %s140
      %p142 = scmp.eq.s32.totalorder %s53, 0
      %p143 = por %p141, %p142
      %s145 = sadd.s32 %s144, 1
      %p148 = scmp.eq.s32.totalorder %s47, 1
      %p149 = scmp.ne.s32.totalorder %s144, %s146
      %p150 = scmp.eq.s32.totalorder %s47, 0
      %p151 = por %p149, %p150
      %p152 = scmp.ne.s32.totalorder %s144, %s146
      %p153 = scmp.eq.s32.totalorder %s52, 1
      %p154 = por %p152, %p153
      %p155 = scmp.ne.s32.totalorder %s146, %s147
      %p156 = scmp.eq.s32.totalorder %s52, 0
      %p157 = por %p155, %p156
      %p158 = scmp.ne.s32.totalorder %s146, %s147
      %p159 = scmp.eq.s32.totalorder %s53, 1
      %p160 = por %p158, %p159
      %p162 = scmp.ne.s32.totalorder %s147, %s161
      %p163 = scmp.eq.s32.totalorder %s53, 0
      %p164 = por %p162, %p163
      %s166 = sadd.s32 %s165, 1
      %p169 = scmp.eq.s32.totalorder %s47, 1
      %p170 = scmp.ne.s32.totalorder %s165, %s167
      %p171 = scmp.eq.s32.totalorder %s47, 0
      %p172 = por %p170, %p171
      %p173 = scmp.ne.s32.totalorder %s165, %s167
      %p174 = scmp.eq.s32.totalorder %s52, 1
      %p175 = por %p173, %p174
      %p176 = scmp.ne.s32.totalorder %s167, %s168
      %p177 = scmp.eq.s32.totalorder %s52, 0
      %p178 = por %p176, %p177
      %p179 = scmp.ne.s32.totalorder %s167, %s168
      %p180 = scmp.eq.s32.totalorder %s53, 1
      %p181 = por %p179, %p180
      %p183 = scmp.ne.s32.totalorder %s168, %s182
      %p184 = scmp.eq.s32.totalorder %s53, 0
      %p185 = por %p183, %p184
      %s187 = sadd.s32 %s186, 1
      %p190 = scmp.eq.s32.totalorder %s47, 1
      %p191 = scmp.ne.s32.totalorder %s186, %s188
      %p192 = scmp.eq.s32.totalorder %s47, 0
      %p193 = por %p191, %p192
      %p194 = scmp.ne.s32.totalorder %s186, %s188
      %p195 = scmp.eq.s32.totalorder %s52, 1
      %p196 = por %p194, %p195
      %p197 = scmp.ne.s32.totalorder %s188, %s189
      %p198 = scmp.eq.s32.totalorder %s52, 0
      %p199 = por %p197, %p198
      %p200 = scmp.ne.s32.totalorder %s188, %s189
      %p201 = scmp.eq.s32.totalorder %s53, 1
      %p202 = por %p200, %p201
      %p204 = scmp.ne.s32.totalorder %s189, %s203
      %p205 = scmp.eq.s32.totalorder %s53, 0
      %p206 = por %p204, %p205
      %s208 = sadd.s32 %s207, 1
      %p211 = scmp.eq.s32.totalorder %s47, 1
      %p212 = scmp.ne.s32.totalorder %s207, %s209
      %p213 = scmp.eq.s32.totalorder %s47, 0
      %p214 = por %p212, %p213
      %p215 = scmp.ne.s32.totalorder %s207, %s209
      %p216 = scmp.eq.s32.totalorder %s52, 1
      %p217 = por %p215, %p216
      %p218 = scmp.ne.s32.totalorder %s209, %s210
      %p219 = scmp.eq.s32.totalorder %s52, 0
      %p220 = por %p218, %p219
      %p221 = scmp.ne.s32.totalorder %s209, %s210
      %p222 = scmp.eq.s32.totalorder %s53, 1
      %p223 = por %p221, %p222
      %p225 = scmp.ne.s32.totalorder %s210, %s224
      %p226 = scmp.eq.s32.totalorder %s53, 0
      %p227 = por %p225, %p226
      %s229 = sadd.s32 %s228, 1
      %p232 = scmp.eq.s32.totalorder %s47, 1
      %p233 = scmp.ne.s32.totalorder %s228, %s230
      %p234 = scmp.eq.s32.totalorder %s47, 0
      %p235 = por %p233, %p234
      %p236 = scmp.ne.s32.totalorder %s228, %s230
      %p237 = scmp.eq.s32.totalorder %s52, 1
      %p238 = por %p236, %p237
      %p239 = scmp.ne.s32.totalorder %s230, %s231
      %p240 = scmp.eq.s32.totalorder %s52, 0
      %p241 = por %p239, %p240
      %p242 = scmp.ne.s32.totalorder %s230, %s231
      %p243 = scmp.eq.s32.totalorder %s53, 1
      %p244 = por %p242, %p243
      %p246 = scmp.ne.s32.totalorder %s231, %s245
      %p247 = scmp.eq.s32.totalorder %s53, 0
      %p248 = por %p246, %p247
      %s250 = sadd.s32 %s249, 1
      %p253 = scmp.eq.s32.totalorder %s47, 1
      %p254 = scmp.ne.s32.totalorder %s249, %s251
      %p255 = scmp.eq.s32.totalorder %s47, 0
      %p256 = por %p254, %p255
      %p257 = scmp.ne.s32.totalorder %s249, %s251
      %p258 = scmp.eq.s32.totalorder %s52, 1
      %p259 = por %p257, %p258
      %p260 = scmp.ne.s32.totalorder %s251, %s252
      %p261 = scmp.eq.s32.totalorder %s52, 0
      %p262 = por %p260, %p261
      %p263 = scmp.ne.s32.totalorder %s251, %s252
      %p264 = scmp.eq.s32.totalorder %s53, 1
      %p265 = por %p263, %p264
      %p267 = scmp.ne.s32.totalorder %s252, %s266
      %p268 = scmp.eq.s32.totalorder %s53, 0
      %p269 = por %p267, %p268
      %s271 = sadd.s32 %s270, 1
      %p274 = scmp.eq.s32.totalorder %s47, 1
      %p275 = scmp.ne.s32.totalorder %s270, %s272
      %p276 = scmp.eq.s32.totalorder %s47, 0
      %p277 = por %p275, %p276
      %p278 = scmp.ne.s32.totalorder %s270, %s272
      %p279 = scmp.eq.s32.totalorder %s52, 1
      %p280 = por %p278, %p279
      %p281 = scmp.ne.s32.totalorder %s272, %s273
      %p282 = scmp.eq.s32.totalorder %s52, 0
      %p283 = por %p281, %p282
      %p284 = scmp.ne.s32.totalorder %s272, %s273
      %p285 = scmp.eq.s32.totalorder %s53, 1
      %p286 = por %p284, %p285
      %p288 = scmp.ne.s32.totalorder %s273, %s287
      %p289 = scmp.eq.s32.totalorder %s53, 0
      %p290 = por %p288, %p289
      %s292 = sadd.s32 %s291, 1
      %p295 = scmp.eq.s32.totalorder %s47, 1
      %p296 = scmp.ne.s32.totalorder %s291, %s293
      %p297 = scmp.eq.s32.totalorder %s47, 0
      %p298 = por %p296, %p297
      %p299 = scmp.ne.s32.totalorder %s291, %s293
      %p300 = scmp.eq.s32.totalorder %s52, 1
      %p301 = por %p299, %p300
      %p302 = scmp.ne.s32.totalorder %s293, %s294
      %p303 = scmp.eq.s32.totalorder %s52, 0
      %p304 = por %p302, %p303
      %p305 = scmp.ne.s32.totalorder %s293, %s294
      %p306 = scmp.eq.s32.totalorder %s53, 1
      %p307 = por %p305, %p306
      %p309 = scmp.ne.s32.totalorder %s294, %s308
      %p310 = scmp.eq.s32.totalorder %s53, 0
      %p311 = por %p309, %p310
      %s313 = sadd.s32 %s312, 1
      %p316 = scmp.eq.s32.totalorder %s47, 1
      %p317 = scmp.ne.s32.totalorder %s312, %s314
      %p318 = scmp.eq.s32.totalorder %s47, 0
      %p319 = por %p317, %p318
      %p320 = scmp.ne.s32.totalorder %s312, %s314
      %p321 = scmp.eq.s32.totalorder %s52, 1
      %p322 = por %p320, %p321
      %p323 = scmp.ne.s32.totalorder %s314, %s315
      %p324 = scmp.eq.s32.totalorder %s52, 0
      %p325 = por %p323, %p324
      %p326 = scmp.ne.s32.totalorder %s314, %s315
      %p327 = scmp.eq.s32.totalorder %s53, 1
      %p328 = por %p326, %p327
      %p330 = scmp.ne.s32.totalorder %s315, %s329
      %p331 = scmp.eq.s32.totalorder %s53, 0
      %p332 = por %p330, %p331
      %s334 = sadd.s32 %s333, 1
      %p337 = scmp.eq.s32.totalorder %s47, 1
      %p338 = scmp.ne.s32.totalorder %s333, %s335
      %p339 = scmp.eq.s32.totalorder %s47, 0
      %p340 = por %p338, %p339
      %p341 = scmp.ne.s32.totalorder %s333, %s335
      %p342 = scmp.eq.s32.totalorder %s52, 1
      %p343 = por %p341, %p342
      %p344 = scmp.ne.s32.totalorder %s335, %s336
      %p345 = scmp.eq.s32.totalorder %s52, 0
      %p346 = por %p344, %p345
      %p347 = scmp.ne.s32.totalorder %s335, %s336
      %p348 = scmp.eq.s32.totalorder %s53, 1
      %p349 = por %p347, %p348
      %p351 = scmp.ne.s32.totalorder %s336, %s350
      %p352 = scmp.eq.s32.totalorder %s53, 0
      %p353 = por %p351, %p352
      %s355 = sadd.s32 %s354, 1
      %p358 = scmp.eq.s32.totalorder %s47, 1
      %p359 = scmp.ne.s32.totalorder %s354, %s356
      %p360 = scmp.eq.s32.totalorder %s47, 0
      %p361 = por %p359, %p360
      %p362 = scmp.ne.s32.totalorder %s354, %s356
      %p363 = scmp.eq.s32.totalorder %s52, 1
      %p364 = por %p362, %p363
      %p365 = scmp.ne.s32.totalorder %s356, %s357
      %p366 = scmp.eq.s32.totalorder %s52, 0
      %p367 = por %p365, %p366
      %p368 = scmp.ne.s32.totalorder %s356, %s357
      %p369 = scmp.eq.s32.totalorder %s53, 1
      %p370 = por %p368, %p369
      %p372 = scmp.ne.s32.totalorder %s357, %s371
      %p373 = scmp.eq.s32.totalorder %s53, 0
      %p374 = por %p372, %p373
      %s376 = sadd.s32 %s375, 1
      %p379 = scmp.eq.s32.totalorder %s47, 1
      %p380 = scmp.ne.s32.totalorder %s375, %s377
      %p381 = scmp.eq.s32.totalorder %s47, 0
      %p382 = por %p380, %p381
      %p383 = scmp.ne.s32.totalorder %s375, %s377
      %p384 = scmp.eq.s32.totalorder %s52, 1
      %p385 = por %p383, %p384
      %p386 = scmp.ne.s32.totalorder %s377, %s378
      %p387 = scmp.eq.s32.totalorder %s52, 0
      %p388 = por %p386, %p387
      %p389 = scmp.ne.s32.totalorder %s377, %s378
      %p390 = scmp.eq.s32.totalorder %s53, 1
      %p391 = por %p389, %p390
      %p393 = scmp.ne.s32.totalorder %s378, %s392
      %p394 = scmp.eq.s32.totalorder %s53, 0
      %p395 = por %p393, %p394
      %s397 = sadd.s32 %s396, 1
      %p400 = scmp.eq.s32.totalorder %s47, 1
      %p401 = scmp.ne.s32.totalorder %s396, %s398
      %p402 = scmp.eq.s32.totalorder %s47, 0
      %p403 = por %p401, %p402
      %p404 = scmp.ne.s32.totalorder %s396, %s398
      %p405 = scmp.eq.s32.totalorder %s52, 1
      %p406 = por %p404, %p405
      %p407 = scmp.ne.s32.totalorder %s398, %s399
      %p408 = scmp.eq.s32.totalorder %s52, 0
      %p409 = por %p407, %p408
      %p410 = scmp.ne.s32.totalorder %s398, %s399
      %p411 = scmp.eq.s32.totalorder %s53, 1
      %p412 = por %p410, %p411
      %p414 = scmp.ne.s32.totalorder %s399, %s413
      %p415 = scmp.eq.s32.totalorder %s53, 0
      %p416 = por %p414, %p415
      %s418 = sadd.s32 %s417, 1
      %p421 = scmp.eq.s32.totalorder %s47, 1
      %p422 = scmp.ne.s32.totalorder %s417, %s419
      %p423 = scmp.eq.s32.totalorder %s47, 0
      %p424 = por %p422, %p423
      %p425 = scmp.ne.s32.totalorder %s417, %s419
      %p426 = scmp.eq.s32.totalorder %s52, 1
      %p427 = por %p425, %p426
      %p428 = scmp.ne.s32.totalorder %s419, %s420
      %p429 = scmp.eq.s32.totalorder %s52, 0
      %p430 = por %p428, %p429
      %p431 = scmp.ne.s32.totalorder %s419, %s420
      %p432 = scmp.eq.s32.totalorder %s53, 1
      %p433 = por %p431, %p432
      %p435 = scmp.ne.s32.totalorder %s420, %s434
      %p436 = scmp.eq.s32.totalorder %s53, 0
      %p437 = por %p435, %p436
      %s439 = sadd.s32 %s438, 1
      %p442 = scmp.eq.s32.totalorder %s47, 1
      %p443 = scmp.ne.s32.totalorder %s438, %s440
      %p444 = scmp.eq.s32.totalorder %s47, 0
      %p445 = por %p443, %p444
      %p446 = scmp.ne.s32.totalorder %s438, %s440
      %p447 = scmp.eq.s32.totalorder %s52, 1
      %p448 = por %p446, %p447
      %p449 = scmp.ne.s32.totalorder %s440, %s441
      %p450 = scmp.eq.s32.totalorder %s52, 0
      %p451 = por %p449, %p450
      %p452 = scmp.ne.s32.totalorder %s440, %s441
      %p453 = scmp.eq.s32.totalorder %s53, 1
      %p454 = por %p452, %p453
      %p456 = scmp.ne.s32.totalorder %s441, %s455
      %p457 = scmp.eq.s32.totalorder %s53, 0
      %p458 = por %p456, %p457
      %s460 = sadd.s32 %s459, 1
      %p463 = scmp.eq.s32.totalorder %s47, 1
      %p464 = scmp.ne.s32.totalorder %s459, %s461
      %p465 = scmp.eq.s32.totalorder %s47, 0
      %p466 = por %p464, %p465
      %p467 = scmp.ne.s32.totalorder %s459, %s461
      %p468 = scmp.eq.s32.totalorder %s52, 1
      %p469 = por %p467, %p468
      %p470 = scmp.ne.s32.totalorder %s461, %s462
      %p471 = scmp.eq.s32.totalorder %s52, 0
      %p472 = por %p470, %p471
      %p473 = scmp.ne.s32.totalorder %s461, %s462
      %p474 = scmp.eq.s32.totalorder %s53, 1
      %p475 = por %p473, %p474
      %p477 = scmp.ne.s32.totalorder %s462, %s476
      %p478 = scmp.eq.s32.totalorder %s53, 0
      %p479 = por %p477, %p478
      %s481 = sadd.s32 %s480, 1
      %p484 = scmp.eq.s32.totalorder %s47, 1
      %p485 = scmp.ne.s32.totalorder %s480, %s482
      %p486 = scmp.eq.s32.totalorder %s47, 0
      %p487 = por %p485, %p486
      %p488 = scmp.ne.s32.totalorder %s480, %s482
      %p489 = scmp.eq.s32.totalorder %s52, 1
      %p490 = por %p488, %p489
      %p491 = scmp.ne.s32.totalorder %s482, %s483
      %p492 = scmp.eq.s32.totalorder %s52, 0
      %p493 = por %p491, %p492
      %p494 = scmp.ne.s32.totalorder %s482, %s483
      %p495 = scmp.eq.s32.totalorder %s53, 1
      %p496 = por %p494, %p495
      %p498 = scmp.ne.s32.totalorder %s483, %s497
      %p499 = scmp.eq.s32.totalorder %s53, 0
      %p500 = por %p498, %p499
      %s502 = sadd.s32 %s501, 1
      %p505 = scmp.eq.s32.totalorder %s47, 1
      %p506 = scmp.ne.s32.totalorder %s501, %s503
      %p507 = scmp.eq.s32.totalorder %s47, 0
      %p508 = por %p506, %p507
      %p509 = scmp.ne.s32.totalorder %s501, %s503
      %p510 = scmp.eq.s32.totalorder %s52, 1
      %p511 = por %p509, %p510
      %p512 = scmp.ne.s32.totalorder %s503, %s504
      %p513 = scmp.eq.s32.totalorder %s52, 0
      %p514 = por %p512, %p513
      %p515 = scmp.ne.s32.totalorder %s503, %s504
      %p516 = scmp.eq.s32.totalorder %s53, 1
      %p517 = por %p515, %p516
      %p519 = scmp.ne.s32.totalorder %s504, %s518
      %p520 = scmp.eq.s32.totalorder %s53, 0
      %p521 = por %p519, %p520
      %s523 = sadd.s32 %s522, 1
      %p526 = scmp.eq.s32.totalorder %s47, 1
      %p527 = scmp.ne.s32.totalorder %s522, %s524
      %p528 = scmp.eq.s32.totalorder %s47, 0
      %p529 = por %p527, %p528
      %p530 = scmp.ne.s32.totalorder %s522, %s524
      %p531 = scmp.eq.s32.totalorder %s52, 1
      %p532 = por %p530, %p531
      %p533 = scmp.ne.s32.totalorder %s524, %s525
      %p534 = scmp.eq.s32.totalorder %s52, 0
      %p535 = por %p533, %p534
      %p536 = scmp.ne.s32.totalorder %s524, %s525
      %p537 = scmp.eq.s32.totalorder %s53, 1
      %p538 = por %p536, %p537
      %p540 = scmp.ne.s32.totalorder %s525, %s539
      %p541 = scmp.eq.s32.totalorder %s53, 0
      %p542 = por %p540, %p541
      %s544 = sadd.s32 %s543, 1
      %p547 = scmp.eq.s32.totalorder %s47, 1
      %p548 = scmp.ne.s32.totalorder %s543, %s545
      %p549 = scmp.eq.s32.totalorder %s47, 0
      %p550 = por %p548, %p549
      %p551 = scmp.ne.s32.totalorder %s543, %s545
      %p552 = scmp.eq.s32.totalorder %s52, 1
      %p553 = por %p551, %p552
      %p554 = scmp.ne.s32.totalorder %s545, %s546
      %p555 = scmp.eq.s32.totalorder %s52, 0
      %p556 = por %p554, %p555
      %p557 = scmp.ne.s32.totalorder %s545, %s546
      %p558 = scmp.eq.s32.totalorder %s53, 1
      %p559 = por %p557, %p558
      %p561 = scmp.ne.s32.totalorder %s546, %s560
      %p562 = scmp.eq.s32.totalorder %s53, 0
      %p563 = por %p561, %p562
      %s565 = sadd.s32 %s564, 1
      %p568 = scmp.eq.s32.totalorder %s47, 1
      %p569 = scmp.ne.s32.totalorder %s564, %s566
      %p570 = scmp.eq.s32.totalorder %s47, 0
      %p571 = por %p569, %p570
      %p572 = scmp.ne.s32.totalorder %s564, %s566
      %p573 = scmp.eq.s32.totalorder %s52, 1
      %p574 = por %p572, %p573
      %p575 = scmp.ne.s32.totalorder %s566, %s567
      %p576 = scmp.eq.s32.totalorder %s52, 0
      %p577 = por %p575, %p576
      %p578 = scmp.ne.s32.totalorder %s566, %s567
      %p579 = scmp.eq.s32.totalorder %s53, 1
      %p580 = por %p578, %p579
      %p582 = scmp.ne.s32.totalorder %s567, %s581
      %p583 = scmp.eq.s32.totalorder %s53, 0
      %p584 = por %p582, %p583
      %s586 = sadd.s32 %s585, 1
      %p589 = scmp.eq.s32.totalorder %s47, 1
      %p590 = scmp.ne.s32.totalorder %s585, %s587
      %p591 = scmp.eq.s32.totalorder %s47, 0
      %p592 = por %p590, %p591
      %p593 = scmp.ne.s32.totalorder %s585, %s587
      %p594 = scmp.eq.s32.totalorder %s52, 1
      %p595 = por %p593, %p594
      %p596 = scmp.ne.s32.totalorder %s587, %s588
      %p597 = scmp.eq.s32.totalorder %s52, 0
      %p598 = por %p596, %p597
      %p599 = scmp.ne.s32.totalorder %s587, %s588
      %p600 = scmp.eq.s32.totalorder %s53, 1
      %p601 = por %p599, %p600
      %p603 = scmp.ne.s32.totalorder %s588, %s602
      %p604 = scmp.eq.s32.totalorder %s53, 0
      %p605 = por %p603, %p604
      %s607 = sadd.s32 %s606, 1
      %p610 = scmp.eq.s32.totalorder %s47, 1
      %p611 = scmp.ne.s32.totalorder %s606, %s608
      %p612 = scmp.eq.s32.totalorder %s47, 0
      %p613 = por %p611, %p612
      %p614 = scmp.ne.s32.totalorder %s606, %s608
      %p615 = scmp.eq.s32.totalorder %s52, 1
      %p616 = por %p614, %p615
      %p617 = scmp.ne.s32.totalorder %s608, %s609
      %p618 = scmp.eq.s32.totalorder %s52, 0
      %p619 = por %p617, %p618
      %p620 = scmp.ne.s32.totalorder %s608, %s609
      %p621 = scmp.eq.s32.totalorder %s53, 1
      %p622 = por %p620, %p621
      %p624 = scmp.ne.s32.totalorder %s609, %s623
      %p625 = scmp.eq.s32.totalorder %s53, 0
      %p626 = por %p624, %p625
      %s627 = ssub.s32 %s47, %s54
      %p628 = scmp.eq.s32.totalorder %s627, 0
      %s630 = sadd.s32 %s629, 1
      %s631 = scalar_select %p628, %s629, %s630
      %p634 = pneg %p628
      %p635 = scmp.eq.s32.totalorder %s47, 1
      %p636 = por %p634, %p635
      %p637 = scmp.ne.s32.totalorder %s629, %s632
      %p638 = scmp.eq.s32.totalorder %s47, 0
      %p639 = por %p637, %p638
      %p640 = scmp.ne.s32.totalorder %s629, %s632
      %p641 = scmp.eq.s32.totalorder %s52, 1
      %p642 = por %p640, %p641
      %p643 = scmp.ne.s32.totalorder %s632, %s633
      %p644 = scmp.eq.s32.totalorder %s52, 0
      %p645 = por %p643, %p644
      %p646 = scmp.ne.s32.totalorder %s632, %s633
      %p647 = scmp.eq.s32.totalorder %s53, 1
      %p648 = por %p646, %p647
      %p650 = scmp.ne.s32.totalorder %s633, %s649
      %p651 = scmp.eq.s32.totalorder %s53, 0
      %p652 = por %p650, %p651
      %p653 = scmp.le.s32.totalorder 1, %s47
      %p654 = scmp.lt.s32.totalorder %s47, 3
      %p655 = pnand %p653, %p654
      %p656 = pneg %p655
      // Predicated region
      $region9: #{image_to_audio_forward.1} parent=5 // pred_check
        _
      $region10: #{image_to_audio_forward.1} parent=5 // pred_check_branch
        %658 = sbr.rel (%p655) target = $region12
      $region11: #{image_to_audio_forward.1} parent=5 // pred_region
        %s659 = ssub.s32 %s47, 1
        // Predicated region
        $region13: #{image_to_audio_forward.1} parent=11 // pred_check
          %p660 = pneg %p94
        $region14: #{image_to_audio_forward.1} parent=11 // pred_check_branch
          %662 = sbr.rel (%p660) target = $region16
        $region15: #{image_to_audio_forward.1} parent=11 // pred_region
          _
        $region16: #{image_to_audio_forward.1} parent=11 // pred_fallthru
          _
        // Predicated region
        $region17: #{image_to_audio_forward.1} parent=11 // pred_check
          %p663 = pneg %p115
        $region18: #{image_to_audio_forward.1} parent=11 // pred_check_branch
          %665 = sbr.rel (%p663) target = $region20
        $region19: #{image_to_audio_forward.1} parent=11 // pred_region
          %s667 = ssub.s32 16, 16
          %668 = vsyncadd [#allocation6], %s667
          %s670 = sshll.u32 [#allocation5], 4
          %s671 = int_to_ptr.vmem [resolvable:$true] %s670
          %673 = dma.hbm_to_vmem [thread:$0]  %s2, 16, %s671, [#allocation6]
        $region20: #{image_to_audio_forward.1} parent=11 // pred_fallthru
          _
        // Predicated region
        $region21: #{image_to_audio_forward.1} parent=11 // pred_check
          %p674 = pneg %p136
        $region22: #{image_to_audio_forward.1} parent=11 // pred_check_branch
          %676 = sbr.rel (%p674) target = $region24
        $region23: #{image_to_audio_forward.1} parent=11 // pred_region
          %s678 = ssub.s32 128, 128
          %679 = vsyncadd [#allocation6], %s678
          %s681 = sshll.u32 [#allocation7], 4
          %s682 = int_to_ptr.vmem [resolvable:$true] %s681
          %684 = dma.hbm_to_vmem [thread:$0]  %s3, 128, %s682, [#allocation6]
        $region24: #{image_to_audio_forward.1} parent=11 // pred_fallthru
          _
        // Predicated region
        $region25: #{image_to_audio_forward.1} parent=11 // pred_check
          %p685 = pneg %p157
        $region26: #{image_to_audio_forward.1} parent=11 // pred_check_branch
          %687 = sbr.rel (%p685) target = $region28
        $region27: #{image_to_audio_forward.1} parent=11 // pred_region
          %s689 = ssub.s32 128, 128
          %690 = vsyncadd [#allocation9], %s689
          %s692 = sshll.u32 [#allocation8], 4
          %s693 = int_to_ptr.vmem [resolvable:$true] %s692
          %695 = dma.hbm_to_vmem [thread:$0]  %s4, 128, %s693, [#allocation9]
        $region28: #{image_to_audio_forward.1} parent=11 // pred_fallthru
          _
        // Predicated region
        $region29: #{image_to_audio_forward.1} parent=11 // pred_check
          %p696 = pneg %p178
        $region30: #{image_to_audio_forward.1} parent=11 // pred_check_branch
          %698 = sbr.rel (%p696) target = $region32
        $region31: #{image_to_audio_forward.1} parent=11 // pred_region
          _
        $region32: #{image_to_audio_forward.1} parent=11 // pred_fallthru
          _
        // Predicated region
        $region33: #{image_to_audio_forward.1} parent=11 // pred_check
          %p699 = pneg %p199
        $region34: #{image_to_audio_forward.1} parent=11 // pred_check_branch
          %701 = sbr.rel (%p699) target = $region36
        $region35: #{image_to_audio_forward.1} parent=11 // pred_region
          _
        $region36: #{image_to_audio_forward.1} parent=11 // pred_fallthru
          _
        // Predicated region
        $region37: #{image_to_audio_forward.1} parent=11 // pred_check
          %p702 = pneg %p220
        $region38: #{image_to_audio_forward.1} parent=11 // pred_check_branch
          %704 = sbr.rel (%p702) target = $region40
        $region39: #{image_to_audio_forward.1} parent=11 // pred_region
          _
        $region40: #{image_to_audio_forward.1} parent=11 // pred_fallthru
          _
        // Predicated region
        $region41: #{image_to_audio_forward.1} parent=11 // pred_check
          %p705 = pneg %p241
        $region42: #{image_to_audio_forward.1} parent=11 // pred_check_branch
          %707 = sbr.rel (%p705) target = $region44
        $region43: #{image_to_audio_forward.1} parent=11 // pred_region
          _
        $region44: #{image_to_audio_forward.1} parent=11 // pred_fallthru
          _
        // Predicated region
        $region45: #{image_to_audio_forward.1} parent=11 // pred_check
          %p708 = pneg %p262
        $region46: #{image_to_audio_forward.1} parent=11 // pred_check_branch
          %710 = sbr.rel (%p708) target = $region48
        $region47: #{image_to_audio_forward.1} parent=11 // pred_region
          _
        $region48: #{image_to_audio_forward.1} parent=11 // pred_fallthru
          _
        // Predicated region
        $region49: #{image_to_audio_forward.1} parent=11 // pred_check
          %p711 = pneg %p283
        $region50: #{image_to_audio_forward.1} parent=11 // pred_check_branch
          %713 = sbr.rel (%p711) target = $region52
        $region51: #{image_to_audio_forward.1} parent=11 // pred_region
          %s715 = ssub.s32 32, 32
          %716 = vsyncadd [#allocation9], %s715
          %s717 = sshll.u32 [#allocation10], 4
          %s718 = int_to_ptr.vmem [resolvable:$true] %s717
          %723 = dma.hbm_to_vmem [thread:$0]  %s10, 32, %s718, [#allocation9], 16, 16, 1
        $region52: #{image_to_audio_forward.1} parent=11 // pred_fallthru
          _
        // Predicated region
        $region53: #{image_to_audio_forward.1} parent=11 // pred_check
          %p724 = pneg %p304
        $region54: #{image_to_audio_forward.1} parent=11 // pred_check_branch
          %726 = sbr.rel (%p724) target = $region56
        $region55: #{image_to_audio_forward.1} parent=11 // pred_region
          %s728 = ssub.s32 512, 512
          %729 = vsyncadd [#allocation12], %s728
          %s730 = sshll.u32 [#allocation11], 4
          %s731 = int_to_ptr.vmem [resolvable:$true] %s730
          %736 = dma.hbm_to_vmem [thread:$0]  %s11, 512, %s731, [#allocation12], 64, 64, 4
        $region56: #{image_to_audio_forward.1} parent=11 // pred_fallthru
          _
        // Predicated region
        $region57: #{image_to_audio_forward.1} parent=11 // pred_check
          %p737 = pneg %p325
        $region58: #{image_to_audio_forward.1} parent=11 // pred_check_branch
          %739 = sbr.rel (%p737) target = $region60
        $region59: #{image_to_audio_forward.1} parent=11 // pred_region
          %s741 = ssub.s32 32, 32
          %742 = vsyncadd [#allocation12], %s741
          %s743 = sshll.u32 [#allocation13], 4
          %s744 = int_to_ptr.vmem [resolvable:$true] %s743
          %749 = dma.hbm_to_vmem [thread:$0]  %s12, 32, %s744, [#allocation12], 16, 16, 1
        $region60: #{image_to_audio_forward.1} parent=11 // pred_fallthru
          _
        // Predicated region
        $region61: #{image_to_audio_forward.1} parent=11 // pred_check
          %p750 = pneg %p346
        $region62: #{image_to_audio_forward.1} parent=11 // pred_check_branch
          %752 = sbr.rel (%p750) target = $region64
        $region63: #{image_to_audio_forward.1} parent=11 // pred_region
          %s754 = ssub.s32 512, 512
          %755 = vsyncadd [#allocation15], %s754
          %s756 = sshll.u32 [#allocation14], 4
          %s757 = int_to_ptr.vmem [resolvable:$true] %s756
          %762 = dma.hbm_to_vmem [thread:$0]  %s13, 512, %s757, [#allocation15], 64, 64, 4
        $region64: #{image_to_audio_forward.1} parent=11 // pred_fallthru
          _
        // Predicated region
        $region65: #{image_to_audio_forward.1} parent=11 // pred_check
          %p763 = pneg %p367
        $region66: #{image_to_audio_forward.1} parent=11 // pred_check_branch
          %765 = sbr.rel (%p763) target = $region68
        $region67: #{image_to_audio_forward.1} parent=11 // pred_region
          %s767 = ssub.s32 32, 32
          %768 = vsyncadd [#allocation15], %s767
          %s769 = sshll.u32 [#allocation16], 4
          %s770 = int_to_ptr.vmem [resolvable:$true] %s769
          %775 = dma.hbm_to_vmem [thread:$0]  %s14, 32, %s770, [#allocation15], 16, 16, 1
        $region68: #{image_to_audio_forward.1} parent=11 // pred_fallthru
          _
        // Predicated region
        $region69: #{image_to_audio_forward.1} parent=11 // pred_check
          %p776 = pneg %p388
        $region70: #{image_to_audio_forward.1} parent=11 // pred_check_branch
          %778 = sbr.rel (%p776) target = $region72
        $region71: #{image_to_audio_forward.1} parent=11 // pred_region
          %s780 = ssub.s32 32, 32
          %781 = vsyncadd [#allocation18], %s780
          %s782 = sshll.u32 [#allocation17], 4
          %s783 = int_to_ptr.vmem [resolvable:$true] %s782
          %788 = dma.hbm_to_vmem [thread:$0]  %s15, 32, %s783, [#allocation18], 16, 16, 1
        $region72: #{image_to_audio_forward.1} parent=11 // pred_fallthru
          _
        // Predicated region
        $region73: #{image_to_audio_forward.1} parent=11 // pred_check
          %p789 = pneg %p409
        $region74: #{image_to_audio_forward.1} parent=11 // pred_check_branch
          %791 = sbr.rel (%p789) target = $region76
        $region75: #{image_to_audio_forward.1} parent=11 // pred_region
          %s793 = ssub.s32 32, 32
          %794 = vsyncadd [#allocation18], %s793
          %s795 = sshll.u32 [#allocation19], 4
          %s796 = int_to_ptr.vmem [resolvable:$true] %s795
          %801 = dma.hbm_to_vmem [thread:$0]  %s16, 32, %s796, [#allocation18], 16, 16, 1
        $region76: #{image_to_audio_forward.1} parent=11 // pred_fallthru
          _
        // Predicated region
        $region77: #{image_to_audio_forward.1} parent=11 // pred_check
          %p802 = pneg %p430
        $region78: #{image_to_audio_forward.1} parent=11 // pred_check_branch
          %804 = sbr.rel (%p802) target = $region80
        $region79: #{image_to_audio_forward.1} parent=11 // pred_region
          %s806 = ssub.s32 32, 32
          %807 = vsyncadd [#allocation21], %s806
          %s808 = sshll.u32 [#allocation20], 4
          %s809 = int_to_ptr.vmem [resolvable:$true] %s808
          %814 = dma.hbm_to_vmem [thread:$0]  %s17, 32, %s809, [#allocation21], 16, 16, 1
        $region80: #{image_to_audio_forward.1} parent=11 // pred_fallthru
          _
        // Predicated region
        $region81: #{image_to_audio_forward.1} parent=11 // pred_check
          %p815 = pneg %p451
        $region82: #{image_to_audio_forward.1} parent=11 // pred_check_branch
          %817 = sbr.rel (%p815) target = $region84
        $region83: #{image_to_audio_forward.1} parent=11 // pred_region
          %s819 = ssub.s32 32, 32
          %820 = vsyncadd [#allocation21], %s819
          %s821 = sshll.u32 [#allocation22], 4
          %s822 = int_to_ptr.vmem [resolvable:$true] %s821
          %827 = dma.hbm_to_vmem [thread:$0]  %s18, 32, %s822, [#allocation21], 16, 16, 1
        $region84: #{image_to_audio_forward.1} parent=11 // pred_fallthru
          _
        // Predicated region
        $region85: #{image_to_audio_forward.1} parent=11 // pred_check
          %p828 = pneg %p472
        $region86: #{image_to_audio_forward.1} parent=11 // pred_check_branch
          %830 = sbr.rel (%p828) target = $region88
        $region87: #{image_to_audio_forward.1} parent=11 // pred_region
          _
        $region88: #{image_to_audio_forward.1} parent=11 // pred_fallthru
          _
        // Predicated region
        $region89: #{image_to_audio_forward.1} parent=11 // pred_check
          %p831 = pneg %p493
        $region90: #{image_to_audio_forward.1} parent=11 // pred_check_branch
          %833 = sbr.rel (%p831) target = $region92
        $region91: #{image_to_audio_forward.1} parent=11 // pred_region
          %s835 = ssub.s32 32, 32
          %836 = vsyncadd [#allocation24], %s835
          %s837 = sshll.u32 [#allocation23], 4
          %s838 = int_to_ptr.vmem [resolvable:$true] %s837
          %843 = dma.hbm_to_vmem [thread:$0]  %s20, 32, %s838, [#allocation24], 16, 16, 1
        $region92: #{image_to_audio_forward.1} parent=11 // pred_fallthru
          _
        // Predicated region
        $region93: #{image_to_audio_forward.1} parent=11 // pred_check
          %p844 = pneg %p514
        $region94: #{image_to_audio_forward.1} parent=11 // pred_check_branch
          %846 = sbr.rel (%p844) target = $region96
        $region95: #{image_to_audio_forward.1} parent=11 // pred_region
          %s848 = ssub.s32 512, 512
          %849 = vsyncadd [#allocation24], %s848
          %s850 = sshll.u32 [#allocation25], 4
          %s851 = int_to_ptr.vmem [resolvable:$true] %s850
          %856 = dma.hbm_to_vmem [thread:$0]  %s21, 512, %s851, [#allocation24], 64, 64, 4
        $region96: #{image_to_audio_forward.1} parent=11 // pred_fallthru
          _
        // Predicated region
        $region97: #{image_to_audio_forward.1} parent=11 // pred_check
          %p857 = pneg %p535
        $region98: #{image_to_audio_forward.1} parent=11 // pred_check_branch
          %859 = sbr.rel (%p857) target = $region100
        $region99: #{image_to_audio_forward.1} parent=11 // pred_region
          %s861 = ssub.s32 32, 32
          %862 = vsyncadd [#allocation27], %s861
          %s863 = sshll.u32 [#allocation26], 4
          %s864 = int_to_ptr.vmem [resolvable:$true] %s863
          %869 = dma.hbm_to_vmem [thread:$0]  %s22, 32, %s864, [#allocation27], 16, 16, 1
        $region100: #{image_to_audio_forward.1} parent=11 // pred_fallthru
          _
        // Predicated region
        $region101: #{image_to_audio_forward.1} parent=11 // pred_check
          %p870 = pneg %p556
        $region102: #{image_to_audio_forward.1} parent=11 // pred_check_branch
          %872 = sbr.rel (%p870) target = $region104
        $region103: #{image_to_audio_forward.1} parent=11 // pred_region
          _
        $region104: #{image_to_audio_forward.1} parent=11 // pred_fallthru
          _
        // Predicated region
        $region105: #{image_to_audio_forward.1} parent=11 // pred_check
          %p873 = pneg %p577
        $region106: #{image_to_audio_forward.1} parent=11 // pred_check_branch
          %875 = sbr.rel (%p873) target = $region108
        $region107: #{image_to_audio_forward.1} parent=11 // pred_region
          %s877 = ssub.s32 32, 32
          %878 = vsyncadd [#allocation27], %s877
          %s879 = sshll.u32 [#allocation28], 4
          %s880 = int_to_ptr.vmem [resolvable:$true] %s879
          %885 = dma.hbm_to_vmem [thread:$0]  %s24, 32, %s880, [#allocation27], 16, 16, 1
        $region108: #{image_to_audio_forward.1} parent=11 // pred_fallthru
          _
        // Predicated region
        $region109: #{image_to_audio_forward.1} parent=11 // pred_check
          %p886 = pneg %p598
        $region110: #{image_to_audio_forward.1} parent=11 // pred_check_branch
          %888 = sbr.rel (%p886) target = $region112
        $region111: #{image_to_audio_forward.1} parent=11 // pred_region
          _
        $region112: #{image_to_audio_forward.1} parent=11 // pred_fallthru
          _
        // Predicated region
        $region113: #{image_to_audio_forward.1} parent=11 // pred_check
          %p889 = pneg %p619
        $region114: #{image_to_audio_forward.1} parent=11 // pred_check_branch
          %891 = sbr.rel (%p889) target = $region116
        $region115: #{image_to_audio_forward.1} parent=11 // pred_region
          _
        $region116: #{image_to_audio_forward.1} parent=11 // pred_fallthru
          _
      $region12: #{image_to_audio_forward.1} parent=5 // pred_fallthru
        _
      %p892 = scmp.lt.s32.totalorder %s47, 2
      // Predicated region
      $region117: #{image_to_audio_forward.1} parent=5 // pred_check
        %p893 = pneg %p892
      $region118: #{image_to_audio_forward.1} parent=5 // pred_check_branch
        %895 = sbr.rel (%p893) target = $region120
      $region119: #{image_to_audio_forward.1} parent=5 // pred_region
        // Predicated region
        $region121: #{image_to_audio_forward.1} parent=119 // pred_check
          %p896 = pneg %p67
        $region122: #{image_to_audio_forward.1} parent=119 // pred_check_branch
          %898 = sbr.rel (%p896) target = $region124
        $region123: #{image_to_audio_forward.1} parent=119 // pred_region
          %s899 = sand.u32 %s57, 1
          %s900 = scalar_lea.sflag [#allocation3], %s899
          %s901 = sand.u32 %s57, 1
          %s902 = smul.addr %s901, 8
          %s903 = scalar_lea.vmem [#allocation2], %s902
          %s905 = ssub.s32 128, 128
          %906 = vsyncadd %s900, %s905
          %s907 = smul.addr %s47, 128
          %s908 = scalar_lea.hbm %s0, %s907
          %s910 = sshll.u32 %s903, 4
          %s911 = int_to_ptr.vmem [resolvable:$true] %s910
          %913 = dma.hbm_to_vmem [thread:$0]  %s908, 128, %s911, %s900
        $region124: #{image_to_audio_forward.1} parent=119 // pred_fallthru
          _
      $region120: #{image_to_audio_forward.1} parent=5 // pred_fallthru
        _
      %p914 = scmp.le.s32.totalorder 1, %s47
      %p915 = scmp.lt.s32.totalorder %s47, 3
      %p916 = pnand %p914, %p915
      %p917 = pneg %p916
      // Predicated region
      $region125: #{image_to_audio_forward.1} parent=5 // pred_check
        _
      $region126: #{image_to_audio_forward.1} parent=5 // pred_check_branch
        %919 = sbr.rel (%p916) target = $region128
      $region127: #{image_to_audio_forward.1} parent=5 // pred_region
        %s920 = ssub.s32 %s47, 1
        %s921 = sand.u32 %s60, 1
        %s922 = scalar_lea.sflag [#allocation3], %s921
        %s923 = sand.u32 %s60, 1
        %s924 = smul.addr %s923, 8
        %s925 = scalar_lea.vmem [#allocation2], %s924
        // Predicated region
        $region129: #{image_to_audio_forward.1} parent=127 // pred_check
          %p926 = pneg %p73
        $region130: #{image_to_audio_forward.1} parent=127 // pred_check_branch
          %928 = sbr.rel (%p926) target = $region132
        $region131: #{image_to_audio_forward.1} parent=127 // pred_region
          %929 = dma.done %s922, 128
        $region132: #{image_to_audio_forward.1} parent=127 // pred_fallthru
          _
        // Predicated region
        $region133: #{image_to_audio_forward.1} parent=127 // pred_check
          %p930 = pneg %p115
        $region134: #{image_to_audio_forward.1} parent=127 // pred_check_branch
          %932 = sbr.rel (%p930) target = $region136
        $region135: #{image_to_audio_forward.1} parent=127 // pred_region
          %933 = dma.done [#allocation6], 16
        $region136: #{image_to_audio_forward.1} parent=127 // pred_fallthru
          _
        // Predicated region
        $region137: #{image_to_audio_forward.1} parent=127 // pred_check
          %p934 = pneg %p136
        $region138: #{image_to_audio_forward.1} parent=127 // pred_check_branch
          %936 = sbr.rel (%p934) target = $region140
        $region139: #{image_to_audio_forward.1} parent=127 // pred_region
          %937 = dma.done [#allocation6], 128
        $region140: #{image_to_audio_forward.1} parent=127 // pred_fallthru
          _
        // Predicated region
        $region141: #{image_to_audio_forward.1} parent=127 // pred_check
          %p938 = pneg %p157
        $region142: #{image_to_audio_forward.1} parent=127 // pred_check_branch
          %940 = sbr.rel (%p938) target = $region144
        $region143: #{image_to_audio_forward.1} parent=127 // pred_region
          %941 = dma.done [#allocation9], 128
        $region144: #{image_to_audio_forward.1} parent=127 // pred_fallthru
          _
        // Predicated region
        $region145: #{image_to_audio_forward.1} parent=127 // pred_check
          %p942 = pneg %p283
        $region146: #{image_to_audio_forward.1} parent=127 // pred_check_branch
          %944 = sbr.rel (%p942) target = $region148
        $region147: #{image_to_audio_forward.1} parent=127 // pred_region
          %945 = dma.done [#allocation9], 32
        $region148: #{image_to_audio_forward.1} parent=127 // pred_fallthru
          _
        // Predicated region
        $region149: #{image_to_audio_forward.1} parent=127 // pred_check
          %p946 = pneg %p304
        $region150: #{image_to_audio_forward.1} parent=127 // pred_check_branch
          %948 = sbr.rel (%p946) target = $region152
        $region151: #{image_to_audio_forward.1} parent=127 // pred_region
          %949 = dma.done [#allocation12], 512
        $region152: #{image_to_audio_forward.1} parent=127 // pred_fallthru
          _
        // Predicated region
        $region153: #{image_to_audio_forward.1} parent=127 // pred_check
          %p950 = pneg %p325
        $region154: #{image_to_audio_forward.1} parent=127 // pred_check_branch
          %952 = sbr.rel (%p950) target = $region156
        $region155: #{image_to_audio_forward.1} parent=127 // pred_region
          %953 = dma.done [#allocation12], 32
        $region156: #{image_to_audio_forward.1} parent=127 // pred_fallthru
          _
        // Predicated region
        $region157: #{image_to_audio_forward.1} parent=127 // pred_check
          %p954 = pneg %p346
        $region158: #{image_to_audio_forward.1} parent=127 // pred_check_branch
          %956 = sbr.rel (%p954) target = $region160
        $region159: #{image_to_audio_forward.1} parent=127 // pred_region
          %957 = dma.done [#allocation15], 512
        $region160: #{image_to_audio_forward.1} parent=127 // pred_fallthru
          _
        // Predicated region
        $region161: #{image_to_audio_forward.1} parent=127 // pred_check
          %p958 = pneg %p367
        $region162: #{image_to_audio_forward.1} parent=127 // pred_check_branch
          %960 = sbr.rel (%p958) target = $region164
        $region163: #{image_to_audio_forward.1} parent=127 // pred_region
          %961 = dma.done [#allocation15], 32
        $region164: #{image_to_audio_forward.1} parent=127 // pred_fallthru
          _
        // Predicated region
        $region165: #{image_to_audio_forward.1} parent=127 // pred_check
          %p962 = pneg %p388
        $region166: #{image_to_audio_forward.1} parent=127 // pred_check_branch
          %964 = sbr.rel (%p962) target = $region168
        $region167: #{image_to_audio_forward.1} parent=127 // pred_region
          %965 = dma.done [#allocation18], 32
        $region168: #{image_to_audio_forward.1} parent=127 // pred_fallthru
          _
        // Predicated region
        $region169: #{image_to_audio_forward.1} parent=127 // pred_check
          %p966 = pneg %p409
        $region170: #{image_to_audio_forward.1} parent=127 // pred_check_branch
          %968 = sbr.rel (%p966) target = $region172
        $region171: #{image_to_audio_forward.1} parent=127 // pred_region
          %969 = dma.done [#allocation18], 32
        $region172: #{image_to_audio_forward.1} parent=127 // pred_fallthru
          _
        // Predicated region
        $region173: #{image_to_audio_forward.1} parent=127 // pred_check
          %p970 = pneg %p430
        $region174: #{image_to_audio_forward.1} parent=127 // pred_check_branch
          %972 = sbr.rel (%p970) target = $region176
        $region175: #{image_to_audio_forward.1} parent=127 // pred_region
          %973 = dma.done [#allocation21], 32
        $region176: #{image_to_audio_forward.1} parent=127 // pred_fallthru
          _
        // Predicated region
        $region177: #{image_to_audio_forward.1} parent=127 // pred_check
          %p974 = pneg %p451
        $region178: #{image_to_audio_forward.1} parent=127 // pred_check_branch
          %976 = sbr.rel (%p974) target = $region180
        $region179: #{image_to_audio_forward.1} parent=127 // pred_region
          %977 = dma.done [#allocation21], 32
        $region180: #{image_to_audio_forward.1} parent=127 // pred_fallthru
          _
        // Predicated region
        $region181: #{image_to_audio_forward.1} parent=127 // pred_check
          %p978 = pneg %p493
        $region182: #{image_to_audio_forward.1} parent=127 // pred_check_branch
          %980 = sbr.rel (%p978) target = $region184
        $region183: #{image_to_audio_forward.1} parent=127 // pred_region
          %981 = dma.done [#allocation24], 32
        $region184: #{image_to_audio_forward.1} parent=127 // pred_fallthru
          _
        // Predicated region
        $region185: #{image_to_audio_forward.1} parent=127 // pred_check
          %p982 = pneg %p514
        $region186: #{image_to_audio_forward.1} parent=127 // pred_check_branch
          %984 = sbr.rel (%p982) target = $region188
        $region187: #{image_to_audio_forward.1} parent=127 // pred_region
          %985 = dma.done [#allocation24], 512
        $region188: #{image_to_audio_forward.1} parent=127 // pred_fallthru
          _
        // Predicated region
        $region189: #{image_to_audio_forward.1} parent=127 // pred_check
          %p986 = pneg %p535
        $region190: #{image_to_audio_forward.1} parent=127 // pred_check_branch
          %988 = sbr.rel (%p986) target = $region192
        $region191: #{image_to_audio_forward.1} parent=127 // pred_region
          %989 = dma.done [#allocation27], 32
        $region192: #{image_to_audio_forward.1} parent=127 // pred_fallthru
          _
        // Predicated region
        $region193: #{image_to_audio_forward.1} parent=127 // pred_check
          %p990 = pneg %p577
        $region194: #{image_to_audio_forward.1} parent=127 // pred_check_branch
          %992 = sbr.rel (%p990) target = $region196
        $region195: #{image_to_audio_forward.1} parent=127 // pred_region
          %993 = dma.done [#allocation27], 32
        $region196: #{image_to_audio_forward.1} parent=127 // pred_fallthru
          _
        %s994 = sand.u32 %s60, 1
        %s995 = scalar_lea.sflag [#allocation3], %s994
        %s996 = sand.u32 %s60, 1
        %s997 = smul.addr %s996, 8
        %s998 = scalar_lea.vmem [#allocation2], %s997
        %p999 = pneg %p73
        %p1000 = pneg %p70
        %p1001 = pneg %p94
        %p1002 = pneg %p91
        %p1003 = pneg %p115
        %p1004 = pneg %p112
        %p1005 = pneg %p136
        %p1006 = pneg %p133
        %p1007 = pneg %p157
        %p1008 = pneg %p154
        %p1009 = pneg %p178
        %p1010 = pneg %p175
        %p1011 = pneg %p199
        %p1012 = pneg %p196
        %p1013 = pneg %p220
        %p1014 = pneg %p217
        %p1015 = pneg %p241
        %p1016 = pneg %p238
        %p1017 = pneg %p262
        %p1018 = pneg %p259
        %p1019 = pneg %p283
        %p1020 = pneg %p280
        %p1021 = pneg %p304
        %p1022 = pneg %p301
        %p1023 = pneg %p325
        %p1024 = pneg %p322
        %p1025 = pneg %p346
        %p1026 = pneg %p343
        %p1027 = pneg %p367
        %p1028 = pneg %p364
        %p1029 = pneg %p388
        %p1030 = pneg %p385
        %p1031 = pneg %p409
        %p1032 = pneg %p406
        %p1033 = pneg %p430
        %p1034 = pneg %p427
        %p1035 = pneg %p451
        %p1036 = pneg %p448
        %p1037 = pneg %p472
        %p1038 = pneg %p469
        %p1039 = pneg %p493
        %p1040 = pneg %p490
        %p1041 = pneg %p514
        %p1042 = pneg %p511
        %p1043 = pneg %p535
        %p1044 = pneg %p532
        %p1045 = pneg %p556
        %p1046 = pneg %p553
        %p1047 = pneg %p577
        %p1048 = pneg %p574
        %p1049 = pneg %p598
        %p1050 = pneg %p595
        %p1051 = pneg %p619
        %p1052 = pneg %p616
        %p1053 = pneg %p645
        %p1054 = pneg %p642
        %s1055 = sand.u32 %s632, 1
        %s1056 = scalar_lea.sflag [#allocation4], %s1055
        %s1057 = sand.u32 %s632, 1
        %s1058 = smul.addr %s1057, 8
        %s1059 = scalar_lea.vmem [#allocation29], %s1058
        %v1061 = vlaneseq
        %v1062 = vshrl.u32 %v1061, 7
        %v1063 = vlaneseq
        %v1064 = vand.u32 %v1063, 127
        %vm1065 = vcmp.le.s32.totalorder %v1064, %v1062
        %v1066 = vsel %vm1065, 0.0, -inf
        %v1067 = vld [vmem:[%s925] sm:$0xff]
        %v1068 = vld [vmem:[%s1] sm:$0xf]
        %v1069 = vld [vmem:[%s1 + $0x4] sm:$0xf]
        %v1070 = vld [vmem:[%s1 + $0x8] sm:$0xf]
        %v1071 = vld [vmem:[%s1 + $0xc] sm:$0xf]
        %v1072 = vpack.c.bf16 %v1067, %v1067
        %v1073 = vld [vmem:[#allocation5] sm:$0x1]
        %v1075 = vlaneseq
        %v1076 = vshrl.u32 %v1075, 7
        %v1077 = vsub.s32 0, %v1076
        %v1078 = vrot.slane %v1073, %v1077
        %v1084 = vunpack.c.l.b16 %v1068
        %v1085 = vunpack.c.l.b16 %v1069
        %v1086 = vunpack.c.l.b16 %v1070
        %v1087 = vunpack.c.l.b16 %v1071
        %v1088 = vpack.c.b16 %v1085, %v1084
        %v1089 = vpack.c.b16 %v1087, %v1086
        %vm1092 = vcmask 261120
        %v1094 = vsel %vm1092, %v1072, 0
        %1096 = vmatprep.subr.bf16.mxu0 0
        %1097 = vmatpush1.bf16.msra.mxu0 %v1088
        %1098 = vmatprep.subr.bf16.mxu0 0
        %1099 = vmatpush1.bf16.msra.mxu0 %v1089
        %1100 = vmatprep.subr.bf16.mxu0 0
        %1101 = vmatpush1.bf16.msra.mxu0 0
        %1102 = vmatprep.subr.bf16.mxu0 0
        %1103 = vmatpush1.bf16.msra.mxu0 0
        %1104 = vmatprep.subr.bf16.mxu0 0
        %1105 = vmatpush1.bf16.msra.mxu0 0
        %1106 = vmatprep.subr.bf16.mxu0 0
        %1107 = vmatpush1.bf16.msra.mxu0 0
        %1108 = vmatprep.subr.bf16.mxu0 0
        %1109 = vmatpush1.bf16.msra.mxu0 0
        %1110 = vmatprep.subr.bf16.mxu0 0
        %1111 = vmatpush1.bf16.msra.mxu0 0
        %1112 = vmatprep.subr.bf16.mxu0 0
        %1113 = vmatpush1.bf16.msra.mxu0 0
        %1114 = vmatprep.subr.bf16.mxu0 0
        %1115 = vmatpush1.bf16.msra.mxu0 0
        %1116 = vmatprep.subr.bf16.mxu0 0
        %1117 = vmatpush1.bf16.msra.mxu0 0
        %1118 = vmatprep.subr.bf16.mxu0 0
        %1119 = vmatpush1.bf16.msra.mxu0 0
        %1120 = vmatprep.subr.bf16.mxu0 0
        %1121 = vmatpush1.bf16.msra.mxu0 0
        %1122 = vmatprep.subr.bf16.mxu0 0
        %1123 = vmatpush1.bf16.msra.mxu0 0
        %1124 = vmatprep.subr.bf16.mxu0 0
        %1125 = vmatpush1.bf16.msra.mxu0 0
        %1126 = vmatprep.subr.bf16.mxu0 0
        %1127 = vmatpush1.bf16.msra.mxu0 0
        %1128 = vmatprep.mubr.bf16.mxu0 0
        %1129 = vmatmul.mubr.bf16.gmra.mrb[0].mxu0 %v1094
        %v1130 = vpop.f32.mrb[0].mxu0
        %v1131 = vadd.f32 %v1078, %v1130
        %v1132 = vpop.f32.mrb[0].mxu0
        %v1133 = vpop.f32.mrb[0].mxu0
        %v1134 = vpop.f32.mrb[0].mxu0
        %1135 = vdwg.mxu0
        %v1136 = vld [vmem:[#allocation7] sm:$0xff]
        %v1137 = vadd.f32 %v1131, %v1136
        %v1138 = vpack.c.bf16 %v1137, %v1137
        %v1139 = vld [vmem:[#allocation8] sm:$0xff]
        %v1140 = vld [vmem:[%s5] sm:$0xf]
        %v1141 = vld [vmem:[%s5 + $0x4] sm:$0xf]
        %v1142 = vld [vmem:[%s5 + $0x8] sm:$0xf]
        %v1143 = vld [vmem:[%s5 + $0xc] sm:$0xf]
        %v1144 = vpack.c.bf16 %v1139, %v1139
        %v1145 = vld [vmem:[%s6] sm:$0x1]
        %v1147 = vlaneseq
        %v1148 = vshrl.u32 %v1147, 7
        %v1149 = vsub.s32 0, %v1148
        %v1150 = vrot.slane %v1145, %v1149
        %v1156 = vunpack.c.l.b16 %v1140
        %v1157 = vunpack.c.l.b16 %v1141
        %v1158 = vunpack.c.l.b16 %v1142
        %v1159 = vunpack.c.l.b16 %v1143
        %v1160 = vpack.c.b16 %v1157, %v1156
        %v1161 = vpack.c.b16 %v1159, %v1158
        %v1165 = vsel %vm1092, %v1144, 0
        %1167 = vmatprep.subr.bf16.mxu0 0
        %1168 = vmatpush1.bf16.msra.mxu0 %v1160
        %1169 = vmatprep.subr.bf16.mxu0 0
        %1170 = vmatpush1.bf16.msra.mxu0 %v1161
        %1171 = vmatprep.subr.bf16.mxu0 0
        %1172 = vmatpush1.bf16.msra.mxu0 0
        %1173 = vmatprep.subr.bf16.mxu0 0
        %1174 = vmatpush1.bf16.msra.mxu0 0
        %1175 = vmatprep.subr.bf16.mxu0 0
        %1176 = vmatpush1.bf16.msra.mxu0 0
        %1177 = vmatprep.subr.bf16.mxu0 0
        %1178 = vmatpush1.bf16.msra.mxu0 0
        %1179 = vmatprep.subr.bf16.mxu0 0
        %1180 = vmatpush1.bf16.msra.mxu0 0
        %1181 = vmatprep.subr.bf16.mxu0 0
        %1182 = vmatpush1.bf16.msra.mxu0 0
        %1183 = vmatprep.subr.bf16.mxu0 0
        %1184 = vmatpush1.bf16.msra.mxu0 0
        %1185 = vmatprep.subr.bf16.mxu0 0
        %1186 = vmatpush1.bf16.msra.mxu0 0
        %1187 = vmatprep.subr.bf16.mxu0 0
        %1188 = vmatpush1.bf16.msra.mxu0 0
        %1189 = vmatprep.subr.bf16.mxu0 0
        %1190 = vmatpush1.bf16.msra.mxu0 0
        %1191 = vmatprep.subr.bf16.mxu0 0
        %1192 = vmatpush1.bf16.msra.mxu0 0
        %1193 = vmatprep.subr.bf16.mxu0 0
        %1194 = vmatpush1.bf16.msra.mxu0 0
        %1195 = vmatprep.subr.bf16.mxu0 0
        %1196 = vmatpush1.bf16.msra.mxu0 0
        %1197 = vmatprep.subr.bf16.mxu0 0
        %1198 = vmatpush1.bf16.msra.mxu0 0
        %1199 = vmatprep.mubr.bf16.mxu0 0
        %1200 = vmatmul.mubr.bf16.gmra.mrb[0].mxu0 %v1165
        %v1201 = vpop.f32.mrb[0].mxu0
        %v1202 = vadd.f32 %v1150, %v1201
        %v1203 = vpop.f32.mrb[0].mxu0
        %v1204 = vpop.f32.mrb[0].mxu0
        %v1205 = vpop.f32.mrb[0].mxu0
        %1206 = vdwg.mxu0
        %v1207 = vmul.f32 %v1202, 0.35355338
        %v1208 = vpack.c.bf16 %v1207, %v1207
        %v1209 = vpack.c.bf16 %v1202, %v1202
        %1211 = vrot.lane.b32.xlu0 %v1209, 96
        %v1212 = vpop.permute.xlu0 %1211
        %vm1213 = vcmask 64512
        %v1215 = vsel %vm1213, %v1208, 0
        %v1218 = vsel %vm1213, %v1212, 0
        %1220 = vmatprep.subr.bf16.mxu0 0
        %1221 = vmatpush1.bf16.xpose.msra.mxu0 %v1218
        %1222 = vmatprep.subr.bf16.mxu0 0
        %1223 = vmatpush1.bf16.xpose.msra.mxu0 0
        %1224 = vmatprep.subr.bf16.mxu0 0
        %1225 = vmatpush1.bf16.xpose.msra.mxu0 0
        %1226 = vmatprep.subr.bf16.mxu0 0
        %1227 = vmatpush1.bf16.xpose.msra.mxu0 0
        %1228 = vmatprep.subr.bf16.mxu0 0
        %1229 = vmatpush1.bf16.xpose.msra.mxu0 0
        %1230 = vmatprep.subr.bf16.mxu0 0
        %1231 = vmatpush1.bf16.xpose.msra.mxu0 0
        %1232 = vmatprep.subr.bf16.mxu0 0
        %1233 = vmatpush1.bf16.xpose.msra.mxu0 0
        %1234 = vmatprep.subr.bf16.mxu0 0
        %1235 = vmatpush1.bf16.xpose.msra.mxu0 0
        %1236 = vmatprep.subr.bf16.mxu0 0
        %1237 = vmatpush1.bf16.xpose.msra.mxu0 0
        %1238 = vmatprep.subr.bf16.mxu0 0
        %1239 = vmatpush1.bf16.xpose.msra.mxu0 0
        %1240 = vmatprep.subr.bf16.mxu0 0
        %1241 = vmatpush1.bf16.xpose.msra.mxu0 0
        %1242 = vmatprep.subr.bf16.mxu0 0
        %1243 = vmatpush1.bf16.xpose.msra.mxu0 0
        %1244 = vmatprep.subr.bf16.mxu0 0
        %1245 = vmatpush1.bf16.xpose.msra.mxu0 0
        %1246 = vmatprep.subr.bf16.mxu0 0
        %1247 = vmatpush1.bf16.xpose.msra.mxu0 0
        %1248 = vmatprep.subr.bf16.mxu0 0
        %1249 = vmatpush1.bf16.xpose.msra.mxu0 0
        %1250 = vmatprep.subr.bf16.mxu0 0
        %1251 = vmatpush1.bf16.xpose.msra.mxu0 0
        %1252 = vmatprep.mubr.bf16.mxu0 0
        %1253 = vmatmul.mubr.bf16.gmra.mrb[0].mxu0 %v1215
        %v1254 = vpop.f32.mrb[0].mxu0
        %v1255 = vadd.f32 %v1066, %v1254
        %v1256 = vpop.f32.mrb[0].mxu0
        %v1257 = vpop.f32.mrb[0].mxu0
        %v1258 = vpop.f32.mrb[0].mxu0
        %1259 = vdwg.mxu0
        %v1260 = vsel %vm1213, %v1255, -inf
        %1261 = vmax.xlane.f32.xlu0 %v1260
        %v1262 = vpop.xlane.xlu0 %1261
        %v1263 = vsub.f32 %v1255, %v1262
        %v1264 = vmul.f32 %v1263, 1.442695
        %v1265 = vpow.pop %v1264
        %v1266 = vsel %vm1213, %v1265, 0.0
        %1267 = vadd.xlane.f32.xlu0 %v1266
        %v1268 = vpop.xlane.xlu0 %1267
        %v1269 = vrcp.pop %v1268
        %v1270 = vmul.f32 %v1265, %v1269
        %v1271 = vpack.c.bf16 %v1270, %v1270
        %1272 = vrot.lane.b32.xlu0 %v1209, 64
        %v1273 = vpop.permute.xlu0 %1272
        %v1275 = vsel %vm1213, %v1271, 0
        %vm1277 = vcmask 1043456
        %v1279 = vsel %vm1277, %v1273, 0
        %1281 = vmatprep.subr.bf16.mxu0 0
        %1282 = vmatpush1.bf16.msra.mxu0 %v1279
        %1283 = vmatprep.subr.bf16.mxu0 0
        %1284 = vmatpush1.bf16.msra.mxu0 0
        %1285 = vmatprep.subr.bf16.mxu0 0
        %1286 = vmatpush1.bf16.msra.mxu0 0
        %1287 = vmatprep.subr.bf16.mxu0 0
        %1288 = vmatpush1.bf16.msra.mxu0 0
        %1289 = vmatprep.subr.bf16.mxu0 0
        %1290 = vmatpush1.bf16.msra.mxu0 0
        %1291 = vmatprep.subr.bf16.mxu0 0
        %1292 = vmatpush1.bf16.msra.mxu0 0
        %1293 = vmatprep.subr.bf16.mxu0 0
        %1294 = vmatpush1.bf16.msra.mxu0 0
        %1295 = vmatprep.subr.bf16.mxu0 0
        %1296 = vmatpush1.bf16.msra.mxu0 0
        %1297 = vmatprep.subr.bf16.mxu0 0
        %1298 = vmatpush1.bf16.msra.mxu0 0
        %1299 = vmatprep.subr.bf16.mxu0 0
        %1300 = vmatpush1.bf16.msra.mxu0 0
        %1301 = vmatprep.subr.bf16.mxu0 0
        %1302 = vmatpush1.bf16.msra.mxu0 0
        %1303 = vmatprep.subr.bf16.mxu0 0
        %1304 = vmatpush1.bf16.msra.mxu0 0
        %1305 = vmatprep.subr.bf16.mxu0 0
        %1306 = vmatpush1.bf16.msra.mxu0 0
        %1307 = vmatprep.subr.bf16.mxu0 0
        %1308 = vmatpush1.bf16.msra.mxu0 0
        %1309 = vmatprep.subr.bf16.mxu0 0
        %1310 = vmatpush1.bf16.msra.mxu0 0
        %1311 = vmatprep.subr.bf16.mxu0 0
        %1312 = vmatpush1.bf16.msra.mxu0 0
        %1313 = vmatprep.mubr.bf16.mxu0 0
        %1314 = vmatmul.mubr.bf16.gmra.mrb[0].mxu0 %v1275
        %v1315 = vpop.f32.mrb[0].mxu0
        %v1316 = vadd.f32 0.0, %v1315
        %v1317 = vpop.f32.mrb[0].mxu0
        %v1318 = vpop.f32.mrb[0].mxu0
        %v1319 = vpop.f32.mrb[0].mxu0
        %1320 = vdwg.mxu0
        %1322 = vrot.lane.b32.xlu0 %v1208, 120
        %v1323 = vpop.permute.xlu0 %1322
        %1324 = vrot.lane.b32.xlu0 %v1209, 88
        %v1325 = vpop.permute.xlu0 %1324
        %v1327 = vsel %vm1213, %v1323, 0
        %v1330 = vsel %vm1213, %v1325, 0
        %1332 = vmatprep.subr.bf16.mxu0 0
        %1333 = vmatpush1.bf16.xpose.msra.mxu0 %v1330
        %1334 = vmatprep.subr.bf16.mxu0 0
        %1335 = vmatpush1.bf16.xpose.msra.mxu0 0
        %1336 = vmatprep.subr.bf16.mxu0 0
        %1337 = vmatpush1.bf16.xpose.msra.mxu0 0
        %1338 = vmatprep.subr.bf16.mxu0 0
        %1339 = vmatpush1.bf16.xpose.msra.mxu0 0
        %1340 = vmatprep.subr.bf16.mxu0 0
        %1341 = vmatpush1.bf16.xpose.msra.mxu0 0
        %1342 = vmatprep.subr.bf16.mxu0 0
        %1343 = vmatpush1.bf16.xpose.msra.mxu0 0
        %1344 = vmatprep.subr.bf16.mxu0 0
        %1345 = vmatpush1.bf16.xpose.msra.mxu0 0
        %1346 = vmatprep.subr.bf16.mxu0 0
        %1347 = vmatpush1.bf16.xpose.msra.mxu0 0
        %1348 = vmatprep.subr.bf16.mxu0 0
        %1349 = vmatpush1.bf16.xpose.msra.mxu0 0
        %1350 = vmatprep.subr.bf16.mxu0 0
        %1351 = vmatpush1.bf16.xpose.msra.mxu0 0
        %1352 = vmatprep.subr.bf16.mxu0 0
        %1353 = vmatpush1.bf16.xpose.msra.mxu0 0
        %1354 = vmatprep.subr.bf16.mxu0 0
        %1355 = vmatpush1.bf16.xpose.msra.mxu0 0
        %1356 = vmatprep.subr.bf16.mxu0 0
        %1357 = vmatpush1.bf16.xpose.msra.mxu0 0
        %1358 = vmatprep.subr.bf16.mxu0 0
        %1359 = vmatpush1.bf16.xpose.msra.mxu0 0
        %1360 = vmatprep.subr.bf16.mxu0 0
        %1361 = vmatpush1.bf16.xpose.msra.mxu0 0
        %1362 = vmatprep.subr.bf16.mxu0 0
        %1363 = vmatpush1.bf16.xpose.msra.mxu0 0
        %1364 = vmatprep.mubr.bf16.mxu0 0
        %1365 = vmatmul.mubr.bf16.gmra.mrb[0].mxu0 %v1327
        %v1366 = vpop.f32.mrb[0].mxu0
        %v1367 = vadd.f32 %v1066, %v1366
        %v1368 = vpop.f32.mrb[0].mxu0
        %v1369 = vpop.f32.mrb[0].mxu0
        %v1370 = vpop.f32.mrb[0].mxu0
        %1371 = vdwg.mxu0
        %v1372 = vsel %vm1213, %v1367, -inf
        %1373 = vmax.xlane.f32.xlu0 %v1372
        %v1374 = vpop.xlane.xlu0 %1373
        %v1375 = vsub.f32 %v1367, %v1374
        %v1376 = vmul.f32 %v1375, 1.442695
        %v1377 = vpow.pop %v1376
        %v1378 = vsel %vm1213, %v1377, 0.0
        %1379 = vadd.xlane.f32.xlu0 %v1378
        %v1380 = vpop.xlane.xlu0 %1379
        %v1381 = vrcp.pop %v1380
        %v1382 = vmul.f32 %v1377, %v1381
        %v1383 = vpack.c.bf16 %v1382, %v1382
        %1384 = vrot.lane.b32.xlu0 %v1209, 56
        %v1385 = vpop.permute.xlu0 %1384
        %v1387 = vsel %vm1213, %v1383, 0
        %v1390 = vsel %vm1277, %v1385, 0
        %1392 = vmatprep.subr.bf16.mxu0 0
        %1393 = vmatpush1.bf16.msra.mxu0 %v1390
        %1394 = vmatprep.subr.bf16.mxu0 0
        %1395 = vmatpush1.bf16.msra.mxu0 0
        %1396 = vmatprep.subr.bf16.mxu0 0
        %1397 = vmatpush1.bf16.msra.mxu0 0
        %1398 = vmatprep.subr.bf16.mxu0 0
        %1399 = vmatpush1.bf16.msra.mxu0 0
        %1400 = vmatprep.subr.bf16.mxu0 0
        %1401 = vmatpush1.bf16.msra.mxu0 0
        %1402 = vmatprep.subr.bf16.mxu0 0
        %1403 = vmatpush1.bf16.msra.mxu0 0
        %1404 = vmatprep.subr.bf16.mxu0 0
        %1405 = vmatpush1.bf16.msra.mxu0 0
        %1406 = vmatprep.subr.bf16.mxu0 0
        %1407 = vmatpush1.bf16.msra.mxu0 0
        %1408 = vmatprep.subr.bf16.mxu0 0
        %1409 = vmatpush1.bf16.msra.mxu0 0
        %1410 = vmatprep.subr.bf16.mxu0 0
        %1411 = vmatpush1.bf16.msra.mxu0 0
        %1412 = vmatprep.subr.bf16.mxu0 0
        %1413 = vmatpush1.bf16.msra.mxu0 0
        %1414 = vmatprep.subr.bf16.mxu0 0
        %1415 = vmatpush1.bf16.msra.mxu0 0
        %1416 = vmatprep.subr.bf16.mxu0 0
        %1417 = vmatpush1.bf16.msra.mxu0 0
        %1418 = vmatprep.subr.bf16.mxu0 0
        %1419 = vmatpush1.bf16.msra.mxu0 0
        %1420 = vmatprep.subr.bf16.mxu0 0
        %1421 = vmatpush1.bf16.msra.mxu0 0
        %1422 = vmatprep.subr.bf16.mxu0 0
        %1423 = vmatpush1.bf16.msra.mxu0 0
        %1424 = vmatprep.mubr.bf16.mxu0 0
        %1425 = vmatmul.mubr.bf16.gmra.mrb[0].mxu0 %v1387
        %v1426 = vpop.f32.mrb[0].mxu0
        %v1427 = vadd.f32 0.0, %v1426
        %v1428 = vpop.f32.mrb[0].mxu0
        %v1429 = vpop.f32.mrb[0].mxu0
        %v1430 = vpop.f32.mrb[0].mxu0
        %1431 = vdwg.mxu0
        %1432 = vrot.lane.b32.xlu0 %v1208, 112
        %v1433 = vpop.permute.xlu0 %1432
        %1434 = vrot.lane.b32.xlu0 %v1209, 80
        %v1435 = vpop.permute.xlu0 %1434
        %v1437 = vsel %vm1213, %v1433, 0
        %v1440 = vsel %vm1213, %v1435, 0
        %1442 = vmatprep.subr.bf16.mxu0 0
        %1443 = vmatpush1.bf16.xpose.msra.mxu0 %v1440
        %1444 = vmatprep.subr.bf16.mxu0 0
        %1445 = vmatpush1.bf16.xpose.msra.mxu0 0
        %1446 = vmatprep.subr.bf16.mxu0 0
        %1447 = vmatpush1.bf16.xpose.msra.mxu0 0
        %1448 = vmatprep.subr.bf16.mxu0 0
        %1449 = vmatpush1.bf16.xpose.msra.mxu0 0
        %1450 = vmatprep.subr.bf16.mxu0 0
        %1451 = vmatpush1.bf16.xpose.msra.mxu0 0
        %1452 = vmatprep.subr.bf16.mxu0 0
        %1453 = vmatpush1.bf16.xpose.msra.mxu0 0
        %1454 = vmatprep.subr.bf16.mxu0 0
        %1455 = vmatpush1.bf16.xpose.msra.mxu0 0
        %1456 = vmatprep.subr.bf16.mxu0 0
        %1457 = vmatpush1.bf16.xpose.msra.mxu0 0
        %1458 = vmatprep.subr.bf16.mxu0 0
        %1459 = vmatpush1.bf16.xpose.msra.mxu0 0
        %1460 = vmatprep.subr.bf16.mxu0 0
        %1461 = vmatpush1.bf16.xpose.msra.mxu0 0
        %1462 = vmatprep.subr.bf16.mxu0 0
        %1463 = vmatpush1.bf16.xpose.msra.mxu0 0
        %1464 = vmatprep.subr.bf16.mxu0 0
        %1465 = vmatpush1.bf16.xpose.msra.mxu0 0
        %1466 = vmatprep.subr.bf16.mxu0 0
        %1467 = vmatpush1.bf16.xpose.msra.mxu0 0
        %1468 = vmatprep.subr.bf16.mxu0 0
        %1469 = vmatpush1.bf16.xpose.msra.mxu0 0
        %1470 = vmatprep.subr.bf16.mxu0 0
        %1471 = vmatpush1.bf16.xpose.msra.mxu0 0
        %1472 = vmatprep.subr.bf16.mxu0 0
        %1473 = vmatpush1.bf16.xpose.msra.mxu0 0
        %1474 = vmatprep.mubr.bf16.mxu0 0
        %1475 = vmatmul.mubr.bf16.gmra.mrb[0].mxu0 %v1437
        %v1476 = vpop.f32.mrb[0].mxu0
        %v1477 = vadd.f32 %v1066, %v1476
        %v1478 = vpop.f32.mrb[0].mxu0
        %v1479 = vpop.f32.mrb[0].mxu0
        %v1480 = vpop.f32.mrb[0].mxu0
        %1481 = vdwg.mxu0
        %v1482 = vsel %vm1213, %v1477, -inf
        %1483 = vmax.xlane.f32.xlu0 %v1482
        %v1484 = vpop.xlane.xlu0 %1483
        %v1485 = vsub.f32 %v1477, %v1484
        %v1486 = vmul.f32 %v1485, 1.442695
        %v1487 = vpow.pop %v1486
        %v1488 = vsel %vm1213, %v1487, 0.0
        %1489 = vadd.xlane.f32.xlu0 %v1488
        %v1490 = vpop.xlane.xlu0 %1489
        %v1491 = vrcp.pop %v1490
        %v1492 = vmul.f32 %v1487, %v1491
        %v1493 = vpack.c.bf16 %v1492, %v1492
        %1494 = vrot.lane.b32.xlu0 %v1209, 48
        %v1495 = vpop.permute.xlu0 %1494
        %v1497 = vsel %vm1213, %v1493, 0
        %v1500 = vsel %vm1277, %v1495, 0
        %1502 = vmatprep.subr.bf16.mxu0 0
        %1503 = vmatpush1.bf16.msra.mxu0 %v1500
        %1504 = vmatprep.subr.bf16.mxu0 0
        %1505 = vmatpush1.bf16.msra.mxu0 0
        %1506 = vmatprep.subr.bf16.mxu0 0
        %1507 = vmatpush1.bf16.msra.mxu0 0
        %1508 = vmatprep.subr.bf16.mxu0 0
        %1509 = vmatpush1.bf16.msra.mxu0 0
        %1510 = vmatprep.subr.bf16.mxu0 0
        %1511 = vmatpush1.bf16.msra.mxu0 0
        %1512 = vmatprep.subr.bf16.mxu0 0
        %1513 = vmatpush1.bf16.msra.mxu0 0
        %1514 = vmatprep.subr.bf16.mxu0 0
        %1515 = vmatpush1.bf16.msra.mxu0 0
        %1516 = vmatprep.subr.bf16.mxu0 0
        %1517 = vmatpush1.bf16.msra.mxu0 0
        %1518 = vmatprep.subr.bf16.mxu0 0
        %1519 = vmatpush1.bf16.msra.mxu0 0
        %1520 = vmatprep.subr.bf16.mxu0 0
        %1521 = vmatpush1.bf16.msra.mxu0 0
        %1522 = vmatprep.subr.bf16.mxu0 0
        %1523 = vmatpush1.bf16.msra.mxu0 0
        %1524 = vmatprep.subr.bf16.mxu0 0
        %1525 = vmatpush1.bf16.msra.mxu0 0
        %1526 = vmatprep.subr.bf16.mxu0 0
        %1527 = vmatpush1.bf16.msra.mxu0 0
        %1528 = vmatprep.subr.bf16.mxu0 0
        %1529 = vmatpush1.bf16.msra.mxu0 0
        %1530 = vmatprep.subr.bf16.mxu0 0
        %1531 = vmatpush1.bf16.msra.mxu0 0
        %1532 = vmatprep.subr.bf16.mxu0 0
        %1533 = vmatpush1.bf16.msra.mxu0 0
        %1534 = vmatprep.mubr.bf16.mxu0 0
        %1535 = vmatmul.mubr.bf16.gmra.mrb[0].mxu0 %v1497
        %v1536 = vpop.f32.mrb[0].mxu0
        %v1537 = vadd.f32 0.0, %v1536
        %v1538 = vpop.f32.mrb[0].mxu0
        %v1539 = vpop.f32.mrb[0].mxu0
        %v1540 = vpop.f32.mrb[0].mxu0
        %1541 = vdwg.mxu0
        %1542 = vrot.lane.b32.xlu0 %v1208, 104
        %v1543 = vpop.permute.xlu0 %1542
        %1544 = vrot.lane.b32.xlu0 %v1209, 72
        %v1545 = vpop.permute.xlu0 %1544
        %v1547 = vsel %vm1213, %v1543, 0
        %v1550 = vsel %vm1213, %v1545, 0
        %1552 = vmatprep.subr.bf16.mxu0 0
        %1553 = vmatpush1.bf16.xpose.msra.mxu0 %v1550
        %1554 = vmatprep.subr.bf16.mxu0 0
        %1555 = vmatpush1.bf16.xpose.msra.mxu0 0
        %1556 = vmatprep.subr.bf16.mxu0 0
        %1557 = vmatpush1.bf16.xpose.msra.mxu0 0
        %1558 = vmatprep.subr.bf16.mxu0 0
        %1559 = vmatpush1.bf16.xpose.msra.mxu0 0
        %1560 = vmatprep.subr.bf16.mxu0 0
        %1561 = vmatpush1.bf16.xpose.msra.mxu0 0
        %1562 = vmatprep.subr.bf16.mxu0 0
        %1563 = vmatpush1.bf16.xpose.msra.mxu0 0
        %1564 = vmatprep.subr.bf16.mxu0 0
        %1565 = vmatpush1.bf16.xpose.msra.mxu0 0
        %1566 = vmatprep.subr.bf16.mxu0 0
        %1567 = vmatpush1.bf16.xpose.msra.mxu0 0
        %1568 = vmatprep.subr.bf16.mxu0 0
        %1569 = vmatpush1.bf16.xpose.msra.mxu0 0
        %1570 = vmatprep.subr.bf16.mxu0 0
        %1571 = vmatpush1.bf16.xpose.msra.mxu0 0
        %1572 = vmatprep.subr.bf16.mxu0 0
        %1573 = vmatpush1.bf16.xpose.msra.mxu0 0
        %1574 = vmatprep.subr.bf16.mxu0 0
        %1575 = vmatpush1.bf16.xpose.msra.mxu0 0
        %1576 = vmatprep.subr.bf16.mxu0 0
        %1577 = vmatpush1.bf16.xpose.msra.mxu0 0
        %1578 = vmatprep.subr.bf16.mxu0 0
        %1579 = vmatpush1.bf16.xpose.msra.mxu0 0
        %1580 = vmatprep.subr.bf16.mxu0 0
        %1581 = vmatpush1.bf16.xpose.msra.mxu0 0
        %1582 = vmatprep.subr.bf16.mxu0 0
        %1583 = vmatpush1.bf16.xpose.msra.mxu0 0
        %1584 = vmatprep.mubr.bf16.mxu0 0
        %1585 = vmatmul.mubr.bf16.gmra.mrb[0].mxu0 %v1547
        %v1586 = vpop.f32.mrb[0].mxu0
        %v1587 = vadd.f32 %v1066, %v1586
        %v1588 = vpop.f32.mrb[0].mxu0
        %v1589 = vpop.f32.mrb[0].mxu0
        %v1590 = vpop.f32.mrb[0].mxu0
        %1591 = vdwg.mxu0
        %v1592 = vsel %vm1213, %v1587, -inf
        %1593 = vmax.xlane.f32.xlu0 %v1592
        %v1594 = vpop.xlane.xlu0 %1593
        %v1595 = vsub.f32 %v1587, %v1594
        %v1596 = vmul.f32 %v1595, 1.442695
        %v1597 = vpow.pop %v1596
        %v1598 = vsel %vm1213, %v1597, 0.0
        %1599 = vadd.xlane.f32.xlu0 %v1598
        %v1600 = vpop.xlane.xlu0 %1599
        %v1601 = vrcp.pop %v1600
        %v1602 = vmul.f32 %v1597, %v1601
        %v1603 = vpack.c.bf16 %v1602, %v1602
        %1604 = vrot.lane.b32.xlu0 %v1209, 40
        %v1605 = vpop.permute.xlu0 %1604
        %v1607 = vsel %vm1213, %v1603, 0
        %v1610 = vsel %vm1277, %v1605, 0
        %1612 = vmatprep.subr.bf16.mxu0 0
        %1613 = vmatpush1.bf16.msra.mxu0 %v1610
        %1614 = vmatprep.subr.bf16.mxu0 0
        %1615 = vmatpush1.bf16.msra.mxu0 0
        %1616 = vmatprep.subr.bf16.mxu0 0
        %1617 = vmatpush1.bf16.msra.mxu0 0
        %1618 = vmatprep.subr.bf16.mxu0 0
        %1619 = vmatpush1.bf16.msra.mxu0 0
        %1620 = vmatprep.subr.bf16.mxu0 0
        %1621 = vmatpush1.bf16.msra.mxu0 0
        %1622 = vmatprep.subr.bf16.mxu0 0
        %1623 = vmatpush1.bf16.msra.mxu0 0
        %1624 = vmatprep.subr.bf16.mxu0 0
        %1625 = vmatpush1.bf16.msra.mxu0 0
        %1626 = vmatprep.subr.bf16.mxu0 0
        %1627 = vmatpush1.bf16.msra.mxu0 0
        %1628 = vmatprep.subr.bf16.mxu0 0
        %1629 = vmatpush1.bf16.msra.mxu0 0
        %1630 = vmatprep.subr.bf16.mxu0 0
        %1631 = vmatpush1.bf16.msra.mxu0 0
        %1632 = vmatprep.subr.bf16.mxu0 0
        %1633 = vmatpush1.bf16.msra.mxu0 0
        %1634 = vmatprep.subr.bf16.mxu0 0
        %1635 = vmatpush1.bf16.msra.mxu0 0
        %1636 = vmatprep.subr.bf16.mxu0 0
        %1637 = vmatpush1.bf16.msra.mxu0 0
        %1638 = vmatprep.subr.bf16.mxu0 0
        %1639 = vmatpush1.bf16.msra.mxu0 0
        %1640 = vmatprep.subr.bf16.mxu0 0
        %1641 = vmatpush1.bf16.msra.mxu0 0
        %1642 = vmatprep.subr.bf16.mxu0 0
        %1643 = vmatpush1.bf16.msra.mxu0 0
        %1644 = vmatprep.mubr.bf16.mxu0 0
        %1645 = vmatmul.mubr.bf16.gmra.mrb[0].mxu0 %v1607
        %v1646 = vpop.f32.mrb[0].mxu0
        %v1647 = vadd.f32 0.0, %v1646
        %v1648 = vpop.f32.mrb[0].mxu0
        %v1649 = vpop.f32.mrb[0].mxu0
        %v1650 = vpop.f32.mrb[0].mxu0
        %1651 = vdwg.mxu0
        %1653 = vrot.lane.b32.xlu0 %v1427, 8
        %v1654 = vpop.permute.xlu0 %1653
        %1657 = vrot.lane.b32.xlu0 %v1537, 16
        %v1658 = vpop.permute.xlu0 %1657
        %1661 = vrot.lane.b32.xlu0 %v1647, 24
        %v1662 = vpop.permute.xlu0 %1661
        %v1664 = vsel %vm1213, %v1316, %v1654
        %vm1665 = vcmask 130048
        %v1666 = vsel %vm1665, %v1664, %v1658
        %vm1667 = vcmask 195584
        %v1668 = vsel %vm1667, %v1666, %v1662
        %v1669 = vld [vmem:[%s7] sm:$0xf]
        %v1670 = vld [vmem:[%s7 + $0x4] sm:$0xf]
        %v1671 = vld [vmem:[%s7 + $0x8] sm:$0xf]
        %v1672 = vld [vmem:[%s7 + $0xc] sm:$0xf]
        %v1673 = vpack.c.bf16 %v1668, %v1668
        %v1674 = vld [vmem:[%s8] sm:$0x1]
        %v1676 = vlaneseq
        %v1677 = vshrl.u32 %v1676, 7
        %v1678 = vsub.s32 0, %v1677
        %v1679 = vrot.slane %v1674, %v1678
        %v1685 = vunpack.c.l.b16 %v1669
        %v1686 = vunpack.c.l.b16 %v1670
        %v1687 = vunpack.c.l.b16 %v1671
        %v1688 = vunpack.c.l.b16 %v1672
        %v1689 = vpack.c.b16 %v1686, %v1685
        %v1690 = vpack.c.b16 %v1688, %v1687
        %v1694 = vsel %vm1092, %v1673, 0
        %1696 = vmatprep.subr.bf16.mxu0 0
        %1697 = vmatpush1.bf16.msra.mxu0 %v1689
        %1698 = vmatprep.subr.bf16.mxu0 0
        %1699 = vmatpush1.bf16.msra.mxu0 %v1690
        %1700 = vmatprep.subr.bf16.mxu0 0
        %1701 = vmatpush1.bf16.msra.mxu0 0
        %1702 = vmatprep.subr.bf16.mxu0 0
        %1703 = vmatpush1.bf16.msra.mxu0 0
        %1704 = vmatprep.subr.bf16.mxu0 0
        %1705 = vmatpush1.bf16.msra.mxu0 0
        %1706 = vmatprep.subr.bf16.mxu0 0
        %1707 = vmatpush1.bf16.msra.mxu0 0
        %1708 = vmatprep.subr.bf16.mxu0 0
        %1709 = vmatpush1.bf16.msra.mxu0 0
        %1710 = vmatprep.subr.bf16.mxu0 0
        %1711 = vmatpush1.bf16.msra.mxu0 0
        %1712 = vmatprep.subr.bf16.mxu0 0
        %1713 = vmatpush1.bf16.msra.mxu0 0
        %1714 = vmatprep.subr.bf16.mxu0 0
        %1715 = vmatpush1.bf16.msra.mxu0 0
        %1716 = vmatprep.subr.bf16.mxu0 0
        %1717 = vmatpush1.bf16.msra.mxu0 0
        %1718 = vmatprep.subr.bf16.mxu0 0
        %1719 = vmatpush1.bf16.msra.mxu0 0
        %1720 = vmatprep.subr.bf16.mxu0 0
        %1721 = vmatpush1.bf16.msra.mxu0 0
        %1722 = vmatprep.subr.bf16.mxu0 0
        %1723 = vmatpush1.bf16.msra.mxu0 0
        %1724 = vmatprep.subr.bf16.mxu0 0
        %1725 = vmatpush1.bf16.msra.mxu0 0
        %1726 = vmatprep.subr.bf16.mxu0 0
        %1727 = vmatpush1.bf16.msra.mxu0 0
        %1728 = vmatprep.mubr.bf16.mxu0 0
        %1729 = vmatmul.mubr.bf16.gmra.mrb[0].mxu0 %v1694
        %v1730 = vpop.f32.mrb[0].mxu0
        %v1731 = vadd.f32 %v1679, %v1730
        %v1732 = vpop.f32.mrb[0].mxu0
        %v1733 = vpop.f32.mrb[0].mxu0
        %v1734 = vpop.f32.mrb[0].mxu0
        %1735 = vdwg.mxu0
        %v1736 = vadd.f32 %v1139, %v1731
        %v1737 = vld [vmem:[#allocation17] sm:$0x1]
        %v1738 = vld [vmem:[#allocation19] sm:$0x1]
        %v1739 = vsel %vm1092, %v1736, 0.0
        %1740 = vadd.xlane.f32.xlu0 %v1739
        %v1741 = vpop.xlane.xlu0 %1740
        %v1742 = vrcp.pop 32.0
        %v1743 = vmul.f32 %v1741, %v1742
        %v1744 = vsub.f32 %v1736, %v1743
        %v1745 = vmul.f32 %v1744, %v1744
        %v1746 = vsel %vm1092, %v1745, 0.0
        %1747 = vadd.xlane.f32.xlu0 %v1746
        %v1748 = vpop.xlane.xlu0 %1747
        %v1749 = vmul.f32 %v1748, %v1742
        %v1750 = vadd.f32 %v1749, 1e-05
        %v1751 = vrsqrt.pop %v1750
        %v1752 = vmul.f32 %v1744, %v1751
        %v1754 = vlaneseq
        %v1755 = vshrl.u32 %v1754, 7
        %v1756 = vsub.s32 0, %v1755
        %v1757 = vrot.slane %v1737, %v1756
        %v1759 = vmul.f32 %v1752, %v1757
        %v1761 = vlaneseq
        %v1762 = vshrl.u32 %v1761, 7
        %v1763 = vsub.s32 0, %v1762
        %v1764 = vrot.slane %v1738, %v1763
        %v1766 = vadd.f32 %v1759, %v1764
        %v1767 = vld [vmem:[%s9] sm:$0xf]
        %v1768 = vld [vmem:[%s9 + $0x4] sm:$0xf]
        %v1769 = vld [vmem:[%s9 + $0x8] sm:$0xf]
        %v1770 = vld [vmem:[%s9 + $0xc] sm:$0xf]
        %v1771 = vpack.c.bf16 %v1766, %v1766
        %v1772 = vld [vmem:[#allocation10] sm:$0x1]
        %v1774 = vlaneseq
        %v1775 = vshrl.u32 %v1774, 7
        %v1776 = vsub.s32 0, %v1775
        %v1777 = vrot.slane %v1772, %v1776
        %v1783 = vunpack.c.l.b16 %v1767
        %v1784 = vunpack.c.l.b16 %v1768
        %v1785 = vunpack.c.l.b16 %v1769
        %v1786 = vunpack.c.l.b16 %v1770
        %v1787 = vpack.c.b16 %v1784, %v1783
        %v1788 = vpack.c.b16 %v1786, %v1785
        %v1792 = vsel %vm1092, %v1771, 0
        %1794 = vmatprep.subr.bf16.mxu0 0
        %1795 = vmatpush1.bf16.msra.mxu0 %v1787
        %1796 = vmatprep.subr.bf16.mxu0 0
        %1797 = vmatpush1.bf16.msra.mxu0 %v1788
        %1798 = vmatprep.subr.bf16.mxu0 0
        %1799 = vmatpush1.bf16.msra.mxu0 0
        %1800 = vmatprep.subr.bf16.mxu0 0
        %1801 = vmatpush1.bf16.msra.mxu0 0
        %1802 = vmatprep.subr.bf16.mxu0 0
        %1803 = vmatpush1.bf16.msra.mxu0 0
        %1804 = vmatprep.subr.bf16.mxu0 0
        %1805 = vmatpush1.bf16.msra.mxu0 0
        %1806 = vmatprep.subr.bf16.mxu0 0
        %1807 = vmatpush1.bf16.msra.mxu0 0
        %1808 = vmatprep.subr.bf16.mxu0 0
        %1809 = vmatpush1.bf16.msra.mxu0 0
        %1810 = vmatprep.subr.bf16.mxu0 0
        %1811 = vmatpush1.bf16.msra.mxu0 0
        %1812 = vmatprep.subr.bf16.mxu0 0
        %1813 = vmatpush1.bf16.msra.mxu0 0
        %1814 = vmatprep.subr.bf16.mxu0 0
        %1815 = vmatpush1.bf16.msra.mxu0 0
        %1816 = vmatprep.subr.bf16.mxu0 0
        %1817 = vmatpush1.bf16.msra.mxu0 0
        %1818 = vmatprep.subr.bf16.mxu0 0
        %1819 = vmatpush1.bf16.msra.mxu0 0
        %1820 = vmatprep.subr.bf16.mxu0 0
        %1821 = vmatpush1.bf16.msra.mxu0 0
        %1822 = vmatprep.subr.bf16.mxu0 0
        %1823 = vmatpush1.bf16.msra.mxu0 0
        %1824 = vmatprep.subr.bf16.mxu0 0
        %1825 = vmatpush1.bf16.msra.mxu0 0
        %1826 = vmatprep.mubr.bf16.mxu0 0
        %1827 = vmatmul.mubr.bf16.gmra.mrb[0].mxu0 %v1792
        %v1828 = vpop.f32.mrb[0].mxu0
        %v1829 = vadd.f32 %v1777, %v1828
        %v1830 = vpop.f32.mrb[0].mxu0
        %v1831 = vpop.f32.mrb[0].mxu0
        %v1832 = vpop.f32.mrb[0].mxu0
        %1833 = vdwg.mxu0
        %v1834 = vmul.f32 %v1829, 0.35355338
        %v1835 = vld [vmem:[#allocation11] sm:$0xf]
        %v1836 = vld [vmem:[#allocation11 + $0x4] sm:$0xf]
        %v1837 = vld [vmem:[#allocation11 + $0x8] sm:$0xf]
        %v1838 = vld [vmem:[#allocation11 + $0xc] sm:$0xf]
        %v1839 = vld [vmem:[#allocation13] sm:$0x1]
        %v1841 = vlaneseq
        %v1842 = vshrl.u32 %v1841, 7
        %v1843 = vsub.s32 0, %v1842
        %v1844 = vrot.slane %v1839, %v1843
        %v1850 = vunpack.c.l.b16 %v1835
        %v1851 = vunpack.c.l.b16 %v1836
        %v1852 = vunpack.c.l.b16 %v1837
        %v1853 = vunpack.c.l.b16 %v1838
        %v1854 = vpack.c.b16 %v1851, %v1850
        %v1855 = vpack.c.b16 %v1853, %v1852
        %v1859 = vsel %vm1092, %v1138, 0
        %1861 = vmatprep.subr.bf16.mxu0 0
        %1862 = vmatpush1.bf16.msra.mxu0 %v1854
        %1863 = vmatprep.subr.bf16.mxu0 0
        %1864 = vmatpush1.bf16.msra.mxu0 %v1855
        %1865 = vmatprep.subr.bf16.mxu0 0
        %1866 = vmatpush1.bf16.msra.mxu0 0
        %1867 = vmatprep.subr.bf16.mxu0 0
        %1868 = vmatpush1.bf16.msra.mxu0 0
        %1869 = vmatprep.subr.bf16.mxu0 0
        %1870 = vmatpush1.bf16.msra.mxu0 0
        %1871 = vmatprep.subr.bf16.mxu0 0
        %1872 = vmatpush1.bf16.msra.mxu0 0
        %1873 = vmatprep.subr.bf16.mxu0 0
        %1874 = vmatpush1.bf16.msra.mxu0 0
        %1875 = vmatprep.subr.bf16.mxu0 0
        %1876 = vmatpush1.bf16.msra.mxu0 0
        %1877 = vmatprep.subr.bf16.mxu0 0
        %1878 = vmatpush1.bf16.msra.mxu0 0
        %1879 = vmatprep.subr.bf16.mxu0 0
        %1880 = vmatpush1.bf16.msra.mxu0 0
        %1881 = vmatprep.subr.bf16.mxu0 0
        %1882 = vmatpush1.bf16.msra.mxu0 0
        %1883 = vmatprep.subr.bf16.mxu0 0
        %1884 = vmatpush1.bf16.msra.mxu0 0
        %1885 = vmatprep.subr.bf16.mxu0 0
        %1886 = vmatpush1.bf16.msra.mxu0 0
        %1887 = vmatprep.subr.bf16.mxu0 0
        %1888 = vmatpush1.bf16.msra.mxu0 0
        %1889 = vmatprep.subr.bf16.mxu0 0
        %1890 = vmatpush1.bf16.msra.mxu0 0
        %1891 = vmatprep.subr.bf16.mxu0 0
        %1892 = vmatpush1.bf16.msra.mxu0 0
        %1893 = vmatprep.mubr.bf16.mxu0 0
        %1894 = vmatmul.mubr.bf16.gmra.mrb[0].mxu0 %v1859
        %v1895 = vpop.f32.mrb[0].mxu0
        %v1896 = vadd.f32 %v1844, %v1895
        %v1897 = vpop.f32.mrb[0].mxu0
        %v1898 = vpop.f32.mrb[0].mxu0
        %v1899 = vpop.f32.mrb[0].mxu0
        %1900 = vdwg.mxu0
        %v1901 = vpack.c.bf16 %v1834, %v1834
        %v1902 = vpack.c.bf16 %v1896, %v1896
        %v1904 = vsel %vm1213, %v1901, 0
        %v1907 = vsel %vm1213, %v1902, 0
        %1909 = vmatprep.subr.bf16.mxu0 0
        %1910 = vmatpush1.bf16.xpose.msra.mxu0 %v1907
        %1911 = vmatprep.subr.bf16.mxu0 0
        %1912 = vmatpush1.bf16.xpose.msra.mxu0 0
        %1913 = vmatprep.subr.bf16.mxu0 0
        %1914 = vmatpush1.bf16.xpose.msra.mxu0 0
        %1915 = vmatprep.subr.bf16.mxu0 0
        %1916 = vmatpush1.bf16.xpose.msra.mxu0 0
        %1917 = vmatprep.subr.bf16.mxu0 0
        %1918 = vmatpush1.bf16.xpose.msra.mxu0 0
        %1919 = vmatprep.subr.bf16.mxu0 0
        %1920 = vmatpush1.bf16.xpose.msra.mxu0 0
        %1921 = vmatprep.subr.bf16.mxu0 0
        %1922 = vmatpush1.bf16.xpose.msra.mxu0 0
        %1923 = vmatprep.subr.bf16.mxu0 0
        %1924 = vmatpush1.bf16.xpose.msra.mxu0 0
        %1925 = vmatprep.subr.bf16.mxu0 0
        %1926 = vmatpush1.bf16.xpose.msra.mxu0 0
        %1927 = vmatprep.subr.bf16.mxu0 0
        %1928 = vmatpush1.bf16.xpose.msra.mxu0 0
        %1929 = vmatprep.subr.bf16.mxu0 0
        %1930 = vmatpush1.bf16.xpose.msra.mxu0 0
        %1931 = vmatprep.subr.bf16.mxu0 0
        %1932 = vmatpush1.bf16.xpose.msra.mxu0 0
        %1933 = vmatprep.subr.bf16.mxu0 0
        %1934 = vmatpush1.bf16.xpose.msra.mxu0 0
        %1935 = vmatprep.subr.bf16.mxu0 0
        %1936 = vmatpush1.bf16.xpose.msra.mxu0 0
        %1937 = vmatprep.subr.bf16.mxu0 0
        %1938 = vmatpush1.bf16.xpose.msra.mxu0 0
        %1939 = vmatprep.subr.bf16.mxu0 0
        %1940 = vmatpush1.bf16.xpose.msra.mxu0 0
        %1941 = vmatprep.mubr.bf16.mxu0 0
        %1942 = vmatmul.mubr.bf16.gmra.mrb[0].mxu0 %v1904
        %v1943 = vpop.f32.mrb[0].mxu0
        %v1944 = vadd.f32 0.0, %v1943
        %v1945 = vpop.f32.mrb[0].mxu0
        %v1946 = vpop.f32.mrb[0].mxu0
        %v1947 = vpop.f32.mrb[0].mxu0
        %1948 = vdwg.mxu0
        %v1949 = vsel %vm1213, %v1944, -inf
        %1950 = vmax.xlane.f32.xlu0 %v1949
        %v1951 = vpop.xlane.xlu0 %1950
        %v1952 = vsub.f32 %v1944, %v1951
        %v1953 = vmul.f32 %v1952, 1.442695
        %v1954 = vpow.pop %v1953
        %v1955 = vsel %vm1213, %v1954, 0.0
        %1956 = vadd.xlane.f32.xlu0 %v1955
        %v1957 = vpop.xlane.xlu0 %1956
        %v1958 = vrcp.pop %v1957
        %v1959 = vmul.f32 %v1954, %v1958
        %v1960 = vpack.c.bf16 %v1959, %v1959
        %1962 = vrot.lane.b32.xlu0 %v1902, 96
        %v1963 = vpop.permute.xlu0 %1962
        %v1965 = vsel %vm1213, %v1960, 0
        %v1968 = vsel %vm1277, %v1963, 0
        %1970 = vmatprep.subr.bf16.mxu0 0
        %1971 = vmatpush1.bf16.msra.mxu0 %v1968
        %1972 = vmatprep.subr.bf16.mxu0 0
        %1973 = vmatpush1.bf16.msra.mxu0 0
        %1974 = vmatprep.subr.bf16.mxu0 0
        %1975 = vmatpush1.bf16.msra.mxu0 0
        %1976 = vmatprep.subr.bf16.mxu0 0
        %1977 = vmatpush1.bf16.msra.mxu0 0
        %1978 = vmatprep.subr.bf16.mxu0 0
        %1979 = vmatpush1.bf16.msra.mxu0 0
        %1980 = vmatprep.subr.bf16.mxu0 0
        %1981 = vmatpush1.bf16.msra.mxu0 0
        %1982 = vmatprep.subr.bf16.mxu0 0
        %1983 = vmatpush1.bf16.msra.mxu0 0
        %1984 = vmatprep.subr.bf16.mxu0 0
        %1985 = vmatpush1.bf16.msra.mxu0 0
        %1986 = vmatprep.subr.bf16.mxu0 0
        %1987 = vmatpush1.bf16.msra.mxu0 0
        %1988 = vmatprep.subr.bf16.mxu0 0
        %1989 = vmatpush1.bf16.msra.mxu0 0
        %1990 = vmatprep.subr.bf16.mxu0 0
        %1991 = vmatpush1.bf16.msra.mxu0 0
        %1992 = vmatprep.subr.bf16.mxu0 0
        %1993 = vmatpush1.bf16.msra.mxu0 0
        %1994 = vmatprep.subr.bf16.mxu0 0
        %1995 = vmatpush1.bf16.msra.mxu0 0
        %1996 = vmatprep.subr.bf16.mxu0 0
        %1997 = vmatpush1.bf16.msra.mxu0 0
        %1998 = vmatprep.subr.bf16.mxu0 0
        %1999 = vmatpush1.bf16.msra.mxu0 0
        %2000 = vmatprep.subr.bf16.mxu0 0
        %2001 = vmatpush1.bf16.msra.mxu0 0
        %2002 = vmatprep.mubr.bf16.mxu0 0
        %2003 = vmatmul.mubr.bf16.gmra.mrb[0].mxu0 %v1965
        %v2004 = vpop.f32.mrb[0].mxu0
        %v2005 = vadd.f32 0.0, %v2004
        %v2006 = vpop.f32.mrb[0].mxu0
        %v2007 = vpop.f32.mrb[0].mxu0
        %v2008 = vpop.f32.mrb[0].mxu0
        %2009 = vdwg.mxu0
        %2011 = vrot.lane.b32.xlu0 %v1901, 120
        %v2012 = vpop.permute.xlu0 %2011
        %2013 = vrot.lane.b32.xlu0 %v1902, 120
        %v2014 = vpop.permute.xlu0 %2013
        %v2016 = vsel %vm1213, %v2012, 0
        %v2019 = vsel %vm1213, %v2014, 0
        %2021 = vmatprep.subr.bf16.mxu0 0
        %2022 = vmatpush1.bf16.xpose.msra.mxu0 %v2019
        %2023 = vmatprep.subr.bf16.mxu0 0
        %2024 = vmatpush1.bf16.xpose.msra.mxu0 0
        %2025 = vmatprep.subr.bf16.mxu0 0
        %2026 = vmatpush1.bf16.xpose.msra.mxu0 0
        %2027 = vmatprep.subr.bf16.mxu0 0
        %2028 = vmatpush1.bf16.xpose.msra.mxu0 0
        %2029 = vmatprep.subr.bf16.mxu0 0
        %2030 = vmatpush1.bf16.xpose.msra.mxu0 0
        %2031 = vmatprep.subr.bf16.mxu0 0
        %2032 = vmatpush1.bf16.xpose.msra.mxu0 0
        %2033 = vmatprep.subr.bf16.mxu0 0
        %2034 = vmatpush1.bf16.xpose.msra.mxu0 0
        %2035 = vmatprep.subr.bf16.mxu0 0
        %2036 = vmatpush1.bf16.xpose.msra.mxu0 0
        %2037 = vmatprep.subr.bf16.mxu0 0
        %2038 = vmatpush1.bf16.xpose.msra.mxu0 0
        %2039 = vmatprep.subr.bf16.mxu0 0
        %2040 = vmatpush1.bf16.xpose.msra.mxu0 0
        %2041 = vmatprep.subr.bf16.mxu0 0
        %2042 = vmatpush1.bf16.xpose.msra.mxu0 0
        %2043 = vmatprep.subr.bf16.mxu0 0
        %2044 = vmatpush1.bf16.xpose.msra.mxu0 0
        %2045 = vmatprep.subr.bf16.mxu0 0
        %2046 = vmatpush1.bf16.xpose.msra.mxu0 0
        %2047 = vmatprep.subr.bf16.mxu0 0
        %2048 = vmatpush1.bf16.xpose.msra.mxu0 0
        %2049 = vmatprep.subr.bf16.mxu0 0
        %2050 = vmatpush1.bf16.xpose.msra.mxu0 0
        %2051 = vmatprep.subr.bf16.mxu0 0
        %2052 = vmatpush1.bf16.xpose.msra.mxu0 0
        %2053 = vmatprep.mubr.bf16.mxu0 0
        %2054 = vmatmul.mubr.bf16.gmra.mrb[0].mxu0 %v2016
        %v2055 = vpop.f32.mrb[0].mxu0
        %v2056 = vadd.f32 0.0, %v2055
        %v2057 = vpop.f32.mrb[0].mxu0
        %v2058 = vpop.f32.mrb[0].mxu0
        %v2059 = vpop.f32.mrb[0].mxu0
        %2060 = vdwg.mxu0
        %v2061 = vsel %vm1213, %v2056, -inf
        %2062 = vmax.xlane.f32.xlu0 %v2061
        %v2063 = vpop.xlane.xlu0 %2062
        %v2064 = vsub.f32 %v2056, %v2063
        %v2065 = vmul.f32 %v2064, 1.442695
        %v2066 = vpow.pop %v2065
        %v2067 = vsel %vm1213, %v2066, 0.0
        %2068 = vadd.xlane.f32.xlu0 %v2067
        %v2069 = vpop.xlane.xlu0 %2068
        %v2070 = vrcp.pop %v2069
        %v2071 = vmul.f32 %v2066, %v2070
        %v2072 = vpack.c.bf16 %v2071, %v2071
        %2073 = vrot.lane.b32.xlu0 %v1902, 88
        %v2074 = vpop.permute.xlu0 %2073
        %v2076 = vsel %vm1213, %v2072, 0
        %v2079 = vsel %vm1277, %v2074, 0
        %2081 = vmatprep.subr.bf16.mxu0 0
        %2082 = vmatpush1.bf16.msra.mxu0 %v2079
        %2083 = vmatprep.subr.bf16.mxu0 0
        %2084 = vmatpush1.bf16.msra.mxu0 0
        %2085 = vmatprep.subr.bf16.mxu0 0
        %2086 = vmatpush1.bf16.msra.mxu0 0
        %2087 = vmatprep.subr.bf16.mxu0 0
        %2088 = vmatpush1.bf16.msra.mxu0 0
        %2089 = vmatprep.subr.bf16.mxu0 0
        %2090 = vmatpush1.bf16.msra.mxu0 0
        %2091 = vmatprep.subr.bf16.mxu0 0
        %2092 = vmatpush1.bf16.msra.mxu0 0
        %2093 = vmatprep.subr.bf16.mxu0 0
        %2094 = vmatpush1.bf16.msra.mxu0 0
        %2095 = vmatprep.subr.bf16.mxu0 0
        %2096 = vmatpush1.bf16.msra.mxu0 0
        %2097 = vmatprep.subr.bf16.mxu0 0
        %2098 = vmatpush1.bf16.msra.mxu0 0
        %2099 = vmatprep.subr.bf16.mxu0 0
        %2100 = vmatpush1.bf16.msra.mxu0 0
        %2101 = vmatprep.subr.bf16.mxu0 0
        %2102 = vmatpush1.bf16.msra.mxu0 0
        %2103 = vmatprep.subr.bf16.mxu0 0
        %2104 = vmatpush1.bf16.msra.mxu0 0
        %2105 = vmatprep.subr.bf16.mxu0 0
        %2106 = vmatpush1.bf16.msra.mxu0 0
        %2107 = vmatprep.subr.bf16.mxu0 0
        %2108 = vmatpush1.bf16.msra.mxu0 0
        %2109 = vmatprep.subr.bf16.mxu0 0
        %2110 = vmatpush1.bf16.msra.mxu0 0
        %2111 = vmatprep.subr.bf16.mxu0 0
        %2112 = vmatpush1.bf16.msra.mxu0 0
        %2113 = vmatprep.mubr.bf16.mxu0 0
        %2114 = vmatmul.mubr.bf16.gmra.mrb[0].mxu0 %v2076
        %v2115 = vpop.f32.mrb[0].mxu0
        %v2116 = vadd.f32 0.0, %v2115
        %v2117 = vpop.f32.mrb[0].mxu0
        %v2118 = vpop.f32.mrb[0].mxu0
        %v2119 = vpop.f32.mrb[0].mxu0
        %2120 = vdwg.mxu0
        %2121 = vrot.lane.b32.xlu0 %v1901, 112
        %v2122 = vpop.permute.xlu0 %2121
        %2123 = vrot.lane.b32.xlu0 %v1902, 112
        %v2124 = vpop.permute.xlu0 %2123
        %v2126 = vsel %vm1213, %v2122, 0
        %v2129 = vsel %vm1213, %v2124, 0
        %2131 = vmatprep.subr.bf16.mxu0 0
        %2132 = vmatpush1.bf16.xpose.msra.mxu0 %v2129
        %2133 = vmatprep.subr.bf16.mxu0 0
        %2134 = vmatpush1.bf16.xpose.msra.mxu0 0
        %2135 = vmatprep.subr.bf16.mxu0 0
        %2136 = vmatpush1.bf16.xpose.msra.mxu0 0
        %2137 = vmatprep.subr.bf16.mxu0 0
        %2138 = vmatpush1.bf16.xpose.msra.mxu0 0
        %2139 = vmatprep.subr.bf16.mxu0 0
        %2140 = vmatpush1.bf16.xpose.msra.mxu0 0
        %2141 = vmatprep.subr.bf16.mxu0 0
        %2142 = vmatpush1.bf16.xpose.msra.mxu0 0
        %2143 = vmatprep.subr.bf16.mxu0 0
        %2144 = vmatpush1.bf16.xpose.msra.mxu0 0
        %2145 = vmatprep.subr.bf16.mxu0 0
        %2146 = vmatpush1.bf16.xpose.msra.mxu0 0
        %2147 = vmatprep.subr.bf16.mxu0 0
        %2148 = vmatpush1.bf16.xpose.msra.mxu0 0
        %2149 = vmatprep.subr.bf16.mxu0 0
        %2150 = vmatpush1.bf16.xpose.msra.mxu0 0
        %2151 = vmatprep.subr.bf16.mxu0 0
        %2152 = vmatpush1.bf16.xpose.msra.mxu0 0
        %2153 = vmatprep.subr.bf16.mxu0 0
        %2154 = vmatpush1.bf16.xpose.msra.mxu0 0
        %2155 = vmatprep.subr.bf16.mxu0 0
        %2156 = vmatpush1.bf16.xpose.msra.mxu0 0
        %2157 = vmatprep.subr.bf16.mxu0 0
        %2158 = vmatpush1.bf16.xpose.msra.mxu0 0
        %2159 = vmatprep.subr.bf16.mxu0 0
        %2160 = vmatpush1.bf16.xpose.msra.mxu0 0
        %2161 = vmatprep.subr.bf16.mxu0 0
        %2162 = vmatpush1.bf16.xpose.msra.mxu0 0
        %2163 = vmatprep.mubr.bf16.mxu0 0
        %2164 = vmatmul.mubr.bf16.gmra.mrb[0].mxu0 %v2126
        %v2165 = vpop.f32.mrb[0].mxu0
        %v2166 = vadd.f32 0.0, %v2165
        %v2167 = vpop.f32.mrb[0].mxu0
        %v2168 = vpop.f32.mrb[0].mxu0
        %v2169 = vpop.f32.mrb[0].mxu0
        %2170 = vdwg.mxu0
        %v2171 = vsel %vm1213, %v2166, -inf
        %2172 = vmax.xlane.f32.xlu0 %v2171
        %v2173 = vpop.xlane.xlu0 %2172
        %v2174 = vsub.f32 %v2166, %v2173
        %v2175 = vmul.f32 %v2174, 1.442695
        %v2176 = vpow.pop %v2175
        %v2177 = vsel %vm1213, %v2176, 0.0
        %2178 = vadd.xlane.f32.xlu0 %v2177
        %v2179 = vpop.xlane.xlu0 %2178
        %v2180 = vrcp.pop %v2179
        %v2181 = vmul.f32 %v2176, %v2180
        %v2182 = vpack.c.bf16 %v2181, %v2181
        %2183 = vrot.lane.b32.xlu0 %v1902, 80
        %v2184 = vpop.permute.xlu0 %2183
        %v2186 = vsel %vm1213, %v2182, 0
        %v2189 = vsel %vm1277, %v2184, 0
        %2191 = vmatprep.subr.bf16.mxu0 0
        %2192 = vmatpush1.bf16.msra.mxu0 %v2189
        %2193 = vmatprep.subr.bf16.mxu0 0
        %2194 = vmatpush1.bf16.msra.mxu0 0
        %2195 = vmatprep.subr.bf16.mxu0 0
        %2196 = vmatpush1.bf16.msra.mxu0 0
        %2197 = vmatprep.subr.bf16.mxu0 0
        %2198 = vmatpush1.bf16.msra.mxu0 0
        %2199 = vmatprep.subr.bf16.mxu0 0
        %2200 = vmatpush1.bf16.msra.mxu0 0
        %2201 = vmatprep.subr.bf16.mxu0 0
        %2202 = vmatpush1.bf16.msra.mxu0 0
        %2203 = vmatprep.subr.bf16.mxu0 0
        %2204 = vmatpush1.bf16.msra.mxu0 0
        %2205 = vmatprep.subr.bf16.mxu0 0
        %2206 = vmatpush1.bf16.msra.mxu0 0
        %2207 = vmatprep.subr.bf16.mxu0 0
        %2208 = vmatpush1.bf16.msra.mxu0 0
        %2209 = vmatprep.subr.bf16.mxu0 0
        %2210 = vmatpush1.bf16.msra.mxu0 0
        %2211 = vmatprep.subr.bf16.mxu0 0
        %2212 = vmatpush1.bf16.msra.mxu0 0
        %2213 = vmatprep.subr.bf16.mxu0 0
        %2214 = vmatpush1.bf16.msra.mxu0 0
        %2215 = vmatprep.subr.bf16.mxu0 0
        %2216 = vmatpush1.bf16.msra.mxu0 0
        %2217 = vmatprep.subr.bf16.mxu0 0
        %2218 = vmatpush1.bf16.msra.mxu0 0
        %2219 = vmatprep.subr.bf16.mxu0 0
        %2220 = vmatpush1.bf16.msra.mxu0 0
        %2221 = vmatprep.subr.bf16.mxu0 0
        %2222 = vmatpush1.bf16.msra.mxu0 0
        %2223 = vmatprep.mubr.bf16.mxu0 0
        %2224 = vmatmul.mubr.bf16.gmra.mrb[0].mxu0 %v2186
        %v2225 = vpop.f32.mrb[0].mxu0
        %v2226 = vadd.f32 0.0, %v2225
        %v2227 = vpop.f32.mrb[0].mxu0
        %v2228 = vpop.f32.mrb[0].mxu0
        %v2229 = vpop.f32.mrb[0].mxu0
        %2230 = vdwg.mxu0
        %2231 = vrot.lane.b32.xlu0 %v1901, 104
        %v2232 = vpop.permute.xlu0 %2231
        %2233 = vrot.lane.b32.xlu0 %v1902, 104
        %v2234 = vpop.permute.xlu0 %2233
        %v2236 = vsel %vm1213, %v2232, 0
        %v2239 = vsel %vm1213, %v2234, 0
        %2241 = vmatprep.subr.bf16.mxu0 0
        %2242 = vmatpush1.bf16.xpose.msra.mxu0 %v2239
        %2243 = vmatprep.subr.bf16.mxu0 0
        %2244 = vmatpush1.bf16.xpose.msra.mxu0 0
        %2245 = vmatprep.subr.bf16.mxu0 0
        %2246 = vmatpush1.bf16.xpose.msra.mxu0 0
        %2247 = vmatprep.subr.bf16.mxu0 0
        %2248 = vmatpush1.bf16.xpose.msra.mxu0 0
        %2249 = vmatprep.subr.bf16.mxu0 0
        %2250 = vmatpush1.bf16.xpose.msra.mxu0 0
        %2251 = vmatprep.subr.bf16.mxu0 0
        %2252 = vmatpush1.bf16.xpose.msra.mxu0 0
        %2253 = vmatprep.subr.bf16.mxu0 0
        %2254 = vmatpush1.bf16.xpose.msra.mxu0 0
        %2255 = vmatprep.subr.bf16.mxu0 0
        %2256 = vmatpush1.bf16.xpose.msra.mxu0 0
        %2257 = vmatprep.subr.bf16.mxu0 0
        %2258 = vmatpush1.bf16.xpose.msra.mxu0 0
        %2259 = vmatprep.subr.bf16.mxu0 0
        %2260 = vmatpush1.bf16.xpose.msra.mxu0 0
        %2261 = vmatprep.subr.bf16.mxu0 0
        %2262 = vmatpush1.bf16.xpose.msra.mxu0 0
        %2263 = vmatprep.subr.bf16.mxu0 0
        %2264 = vmatpush1.bf16.xpose.msra.mxu0 0
        %2265 = vmatprep.subr.bf16.mxu0 0
        %2266 = vmatpush1.bf16.xpose.msra.mxu0 0
        %2267 = vmatprep.subr.bf16.mxu0 0
        %2268 = vmatpush1.bf16.xpose.msra.mxu0 0
        %2269 = vmatprep.subr.bf16.mxu0 0
        %2270 = vmatpush1.bf16.xpose.msra.mxu0 0
        %2271 = vmatprep.subr.bf16.mxu0 0
        %2272 = vmatpush1.bf16.xpose.msra.mxu0 0
        %2273 = vmatprep.mubr.bf16.mxu0 0
        %2274 = vmatmul.mubr.bf16.gmra.mrb[0].mxu0 %v2236
        %v2275 = vpop.f32.mrb[0].mxu0
        %v2276 = vadd.f32 0.0, %v2275
        %v2277 = vpop.f32.mrb[0].mxu0
        %v2278 = vpop.f32.mrb[0].mxu0
        %v2279 = vpop.f32.mrb[0].mxu0
        %2280 = vdwg.mxu0
        %v2281 = vsel %vm1213, %v2276, -inf
        %2282 = vmax.xlane.f32.xlu0 %v2281
        %v2283 = vpop.xlane.xlu0 %2282
        %v2284 = vsub.f32 %v2276, %v2283
        %v2285 = vmul.f32 %v2284, 1.442695
        %v2286 = vpow.pop %v2285
        %v2287 = vsel %vm1213, %v2286, 0.0
        %2288 = vadd.xlane.f32.xlu0 %v2287
        %v2289 = vpop.xlane.xlu0 %2288
        %v2290 = vrcp.pop %v2289
        %v2291 = vmul.f32 %v2286, %v2290
        %v2292 = vpack.c.bf16 %v2291, %v2291
        %2293 = vrot.lane.b32.xlu0 %v1902, 72
        %v2294 = vpop.permute.xlu0 %2293
        %v2296 = vsel %vm1213, %v2292, 0
        %v2299 = vsel %vm1277, %v2294, 0
        %2301 = vmatprep.subr.bf16.mxu0 0
        %2302 = vmatpush1.bf16.msra.mxu0 %v2299
        %2303 = vmatprep.subr.bf16.mxu0 0
        %2304 = vmatpush1.bf16.msra.mxu0 0
        %2305 = vmatprep.subr.bf16.mxu0 0
        %2306 = vmatpush1.bf16.msra.mxu0 0
        %2307 = vmatprep.subr.bf16.mxu0 0
        %2308 = vmatpush1.bf16.msra.mxu0 0
        %2309 = vmatprep.subr.bf16.mxu0 0
        %2310 = vmatpush1.bf16.msra.mxu0 0
        %2311 = vmatprep.subr.bf16.mxu0 0
        %2312 = vmatpush1.bf16.msra.mxu0 0
        %2313 = vmatprep.subr.bf16.mxu0 0
        %2314 = vmatpush1.bf16.msra.mxu0 0
        %2315 = vmatprep.subr.bf16.mxu0 0
        %2316 = vmatpush1.bf16.msra.mxu0 0
        %2317 = vmatprep.subr.bf16.mxu0 0
        %2318 = vmatpush1.bf16.msra.mxu0 0
        %2319 = vmatprep.subr.bf16.mxu0 0
        %2320 = vmatpush1.bf16.msra.mxu0 0
        %2321 = vmatprep.subr.bf16.mxu0 0
        %2322 = vmatpush1.bf16.msra.mxu0 0
        %2323 = vmatprep.subr.bf16.mxu0 0
        %2324 = vmatpush1.bf16.msra.mxu0 0
        %2325 = vmatprep.subr.bf16.mxu0 0
        %2326 = vmatpush1.bf16.msra.mxu0 0
        %2327 = vmatprep.subr.bf16.mxu0 0
        %2328 = vmatpush1.bf16.msra.mxu0 0
        %2329 = vmatprep.subr.bf16.mxu0 0
        %2330 = vmatpush1.bf16.msra.mxu0 0
        %2331 = vmatprep.subr.bf16.mxu0 0
        %2332 = vmatpush1.bf16.msra.mxu0 0
        %2333 = vmatprep.mubr.bf16.mxu0 0
        %2334 = vmatmul.mubr.bf16.gmra.mrb[0].mxu0 %v2296
        %v2335 = vpop.f32.mrb[0].mxu0
        %v2336 = vadd.f32 0.0, %v2335
        %v2337 = vpop.f32.mrb[0].mxu0
        %v2338 = vpop.f32.mrb[0].mxu0
        %v2339 = vpop.f32.mrb[0].mxu0
        %2340 = vdwg.mxu0
        %2342 = vrot.lane.b32.xlu0 %v2116, 8
        %v2343 = vpop.permute.xlu0 %2342
        %2346 = vrot.lane.b32.xlu0 %v2226, 16
        %v2347 = vpop.permute.xlu0 %2346
        %2350 = vrot.lane.b32.xlu0 %v2336, 24
        %v2351 = vpop.permute.xlu0 %2350
        %v2353 = vsel %vm1213, %v2005, %v2343
        %v2354 = vsel %vm1665, %v2353, %v2347
        %v2355 = vsel %vm1667, %v2354, %v2351
        %v2356 = vld [vmem:[#allocation14] sm:$0xf]
        %v2357 = vld [vmem:[#allocation14 + $0x4] sm:$0xf]
        %v2358 = vld [vmem:[#allocation14 + $0x8] sm:$0xf]
        %v2359 = vld [vmem:[#allocation14 + $0xc] sm:$0xf]
        %v2360 = vpack.c.bf16 %v2355, %v2355
        %v2361 = vld [vmem:[#allocation16] sm:$0x1]
        %v2363 = vlaneseq
        %v2364 = vshrl.u32 %v2363, 7
        %v2365 = vsub.s32 0, %v2364
        %v2366 = vrot.slane %v2361, %v2365
        %v2372 = vunpack.c.l.b16 %v2356
        %v2373 = vunpack.c.l.b16 %v2357
        %v2374 = vunpack.c.l.b16 %v2358
        %v2375 = vunpack.c.l.b16 %v2359
        %v2376 = vpack.c.b16 %v2373, %v2372
        %v2377 = vpack.c.b16 %v2375, %v2374
        %v2381 = vsel %vm1092, %v2360, 0
        %2383 = vmatprep.subr.bf16.mxu0 0
        %2384 = vmatpush1.bf16.msra.mxu0 %v2376
        %2385 = vmatprep.subr.bf16.mxu0 0
        %2386 = vmatpush1.bf16.msra.mxu0 %v2377
        %2387 = vmatprep.subr.bf16.mxu0 0
        %2388 = vmatpush1.bf16.msra.mxu0 0
        %2389 = vmatprep.subr.bf16.mxu0 0
        %2390 = vmatpush1.bf16.msra.mxu0 0
        %2391 = vmatprep.subr.bf16.mxu0 0
        %2392 = vmatpush1.bf16.msra.mxu0 0
        %2393 = vmatprep.subr.bf16.mxu0 0
        %2394 = vmatpush1.bf16.msra.mxu0 0
        %2395 = vmatprep.subr.bf16.mxu0 0
        %2396 = vmatpush1.bf16.msra.mxu0 0
        %2397 = vmatprep.subr.bf16.mxu0 0
        %2398 = vmatpush1.bf16.msra.mxu0 0
        %2399 = vmatprep.subr.bf16.mxu0 0
        %2400 = vmatpush1.bf16.msra.mxu0 0
        %2401 = vmatprep.subr.bf16.mxu0 0
        %2402 = vmatpush1.bf16.msra.mxu0 0
        %2403 = vmatprep.subr.bf16.mxu0 0
        %2404 = vmatpush1.bf16.msra.mxu0 0
        %2405 = vmatprep.subr.bf16.mxu0 0
        %2406 = vmatpush1.bf16.msra.mxu0 0
        %2407 = vmatprep.subr.bf16.mxu0 0
        %2408 = vmatpush1.bf16.msra.mxu0 0
        %2409 = vmatprep.subr.bf16.mxu0 0
        %2410 = vmatpush1.bf16.msra.mxu0 0
        %2411 = vmatprep.subr.bf16.mxu0 0
        %2412 = vmatpush1.bf16.msra.mxu0 0
        %2413 = vmatprep.subr.bf16.mxu0 0
        %2414 = vmatpush1.bf16.msra.mxu0 0
        %2415 = vmatprep.mubr.bf16.mxu0 0
        %2416 = vmatmul.mubr.bf16.gmra.mrb[0].mxu0 %v2381
        %v2417 = vpop.f32.mrb[0].mxu0
        %v2418 = vadd.f32 %v2366, %v2417
        %v2419 = vpop.f32.mrb[0].mxu0
        %v2420 = vpop.f32.mrb[0].mxu0
        %v2421 = vpop.f32.mrb[0].mxu0
        %2422 = vdwg.mxu0
        %v2423 = vadd.f32 %v1766, %v2418
        %v2424 = vld [vmem:[#allocation20] sm:$0x1]
        %v2425 = vld [vmem:[#allocation22] sm:$0x1]
        %v2426 = vsel %vm1092, %v2423, 0.0
        %2427 = vadd.xlane.f32.xlu0 %v2426
        %v2428 = vpop.xlane.xlu0 %2427
        %v2429 = vmul.f32 %v2428, %v1742
        %v2430 = vsub.f32 %v2423, %v2429
        %v2431 = vmul.f32 %v2430, %v2430
        %v2432 = vsel %vm1092, %v2431, 0.0
        %2433 = vadd.xlane.f32.xlu0 %v2432
        %v2434 = vpop.xlane.xlu0 %2433
        %v2435 = vmul.f32 %v2434, %v1742
        %v2436 = vadd.f32 %v2435, 1e-05
        %v2437 = vrsqrt.pop %v2436
        %v2438 = vmul.f32 %v2430, %v2437
        %v2440 = vlaneseq
        %v2441 = vshrl.u32 %v2440, 7
        %v2442 = vsub.s32 0, %v2441
        %v2443 = vrot.slane %v2424, %v2442
        %v2445 = vmul.f32 %v2438, %v2443
        %v2447 = vlaneseq
        %v2448 = vshrl.u32 %v2447, 7
        %v2449 = vsub.s32 0, %v2448
        %v2450 = vrot.slane %v2425, %v2449
        %v2452 = vadd.f32 %v2445, %v2450
        %v2453 = vld [vmem:[#allocation25] sm:$0xf]
        %v2454 = vld [vmem:[#allocation25 + $0x4] sm:$0xf]
        %v2455 = vld [vmem:[#allocation25 + $0x8] sm:$0xf]
        %v2456 = vld [vmem:[#allocation25 + $0xc] sm:$0xf]
        %v2457 = vpack.c.bf16 %v2452, %v2452
        %v2458 = vld [vmem:[#allocation26] sm:$0x1]
        %v2460 = vlaneseq
        %v2461 = vshrl.u32 %v2460, 7
        %v2462 = vsub.s32 0, %v2461
        %v2463 = vrot.slane %v2458, %v2462
        %v2469 = vunpack.c.l.b16 %v2453
        %v2470 = vunpack.c.l.b16 %v2454
        %v2471 = vunpack.c.l.b16 %v2455
        %v2472 = vunpack.c.l.b16 %v2456
        %v2473 = vpack.c.b16 %v2470, %v2469
        %v2474 = vpack.c.b16 %v2472, %v2471
        %v2478 = vsel %vm1092, %v2457, 0
        %2480 = vmatprep.subr.bf16.mxu0 0
        %2481 = vmatpush1.bf16.msra.mxu0 %v2473
        %2482 = vmatprep.subr.bf16.mxu0 0
        %2483 = vmatpush1.bf16.msra.mxu0 %v2474
        %2484 = vmatprep.subr.bf16.mxu0 0
        %2485 = vmatpush1.bf16.msra.mxu0 0
        %2486 = vmatprep.subr.bf16.mxu0 0
        %2487 = vmatpush1.bf16.msra.mxu0 0
        %2488 = vmatprep.subr.bf16.mxu0 0
        %2489 = vmatpush1.bf16.msra.mxu0 0
        %2490 = vmatprep.subr.bf16.mxu0 0
        %2491 = vmatpush1.bf16.msra.mxu0 0
        %2492 = vmatprep.subr.bf16.mxu0 0
        %2493 = vmatpush1.bf16.msra.mxu0 0
        %2494 = vmatprep.subr.bf16.mxu0 0
        %2495 = vmatpush1.bf16.msra.mxu0 0
        %2496 = vmatprep.subr.bf16.mxu0 0
        %2497 = vmatpush1.bf16.msra.mxu0 0
        %2498 = vmatprep.subr.bf16.mxu0 0
        %2499 = vmatpush1.bf16.msra.mxu0 0
        %2500 = vmatprep.subr.bf16.mxu0 0
        %2501 = vmatpush1.bf16.msra.mxu0 0
        %2502 = vmatprep.subr.bf16.mxu0 0
        %2503 = vmatpush1.bf16.msra.mxu0 0
        %2504 = vmatprep.subr.bf16.mxu0 0
        %2505 = vmatpush1.bf16.msra.mxu0 0
        %2506 = vmatprep.subr.bf16.mxu0 0
        %2507 = vmatpush1.bf16.msra.mxu0 0
        %2508 = vmatprep.subr.bf16.mxu0 0
        %2509 = vmatpush1.bf16.msra.mxu0 0
        %2510 = vmatprep.subr.bf16.mxu0 0
        %2511 = vmatpush1.bf16.msra.mxu0 0
        %2512 = vmatprep.mubr.bf16.mxu0 0
        %2513 = vmatmul.mubr.bf16.gmra.mrb[0].mxu0 %v2478
        %v2514 = vpop.f32.mrb[0].mxu0
        %v2515 = vadd.f32 %v2463, %v2514
        %v2516 = vpop.f32.mrb[0].mxu0
        %v2517 = vpop.f32.mrb[0].mxu0
        %v2518 = vpop.f32.mrb[0].mxu0
        %2519 = vdwg.mxu0
        %v2520 = vmax.f32 %v2515, 0.0
        %v2521 = vld [vmem:[%s23] sm:$0xf]
        %v2522 = vld [vmem:[%s23 + $0x4] sm:$0xf]
        %v2523 = vld [vmem:[%s23 + $0x8] sm:$0xf]
        %v2524 = vld [vmem:[%s23 + $0xc] sm:$0xf]
        %v2525 = vld [vmem:[%s23 + $0x10] sm:$0xf]
        %v2526 = vld [vmem:[%s23 + $0x14] sm:$0xf]
        %v2527 = vld [vmem:[%s23 + $0x18] sm:$0xf]
        %v2528 = vld [vmem:[%s23 + $0x1c] sm:$0xf]
        %v2529 = vpack.c.bf16 %v2520, %v2520
        %v2530 = vld [vmem:[#allocation28] sm:$0x1]
        %v2532 = vlaneseq
        %v2533 = vshrl.u32 %v2532, 7
        %v2534 = vsub.s32 0, %v2533
        %v2535 = vrot.slane %v2530, %v2534
        %v2545 = vunpack.c.l.b16 %v2521
        %v2546 = vunpack.c.l.b16 %v2522
        %v2547 = vunpack.c.l.b16 %v2523
        %v2548 = vunpack.c.l.b16 %v2524
        %v2549 = vunpack.c.l.b16 %v2525
        %v2550 = vunpack.c.l.b16 %v2526
        %v2551 = vunpack.c.l.b16 %v2527
        %v2552 = vunpack.c.l.b16 %v2528
        %v2553 = vpack.c.b16 %v2546, %v2545
        %v2554 = vpack.c.b16 %v2548, %v2547
        %v2555 = vpack.c.b16 %v2550, %v2549
        %v2556 = vpack.c.b16 %v2552, %v2551
        %vm2561 = vcmask 523264
        %v2563 = vsel %vm2561, %v2529, 0
        %2565 = vmatprep.subr.bf16.mxu0 0
        %2566 = vmatpush1.bf16.msra.mxu0 %v2553
        %2567 = vmatprep.subr.bf16.mxu0 0
        %2568 = vmatpush1.bf16.msra.mxu0 %v2554
        %2569 = vmatprep.subr.bf16.mxu0 0
        %2570 = vmatpush1.bf16.msra.mxu0 %v2555
        %2571 = vmatprep.subr.bf16.mxu0 0
        %2572 = vmatpush1.bf16.msra.mxu0 %v2556
        %2573 = vmatprep.subr.bf16.mxu0 0
        %2574 = vmatpush1.bf16.msra.mxu0 0
        %2575 = vmatprep.subr.bf16.mxu0 0
        %2576 = vmatpush1.bf16.msra.mxu0 0
        %2577 = vmatprep.subr.bf16.mxu0 0
        %2578 = vmatpush1.bf16.msra.mxu0 0
        %2579 = vmatprep.subr.bf16.mxu0 0
        %2580 = vmatpush1.bf16.msra.mxu0 0
        %2581 = vmatprep.subr.bf16.mxu0 0
        %2582 = vmatpush1.bf16.msra.mxu0 0
        %2583 = vmatprep.subr.bf16.mxu0 0
        %2584 = vmatpush1.bf16.msra.mxu0 0
        %2585 = vmatprep.subr.bf16.mxu0 0
        %2586 = vmatpush1.bf16.msra.mxu0 0
        %2587 = vmatprep.subr.bf16.mxu0 0
        %2588 = vmatpush1.bf16.msra.mxu0 0
        %2589 = vmatprep.subr.bf16.mxu0 0
        %2590 = vmatpush1.bf16.msra.mxu0 0
        %2591 = vmatprep.subr.bf16.mxu0 0
        %2592 = vmatpush1.bf16.msra.mxu0 0
        %2593 = vmatprep.subr.bf16.mxu0 0
        %2594 = vmatpush1.bf16.msra.mxu0 0
        %2595 = vmatprep.subr.bf16.mxu0 0
        %2596 = vmatpush1.bf16.msra.mxu0 0
        %2597 = vmatprep.mubr.bf16.mxu0 0
        %2598 = vmatmul.mubr.bf16.gmra.mrb[0].mxu0 %v2563
        %v2599 = vpop.f32.mrb[0].mxu0
        %v2600 = vadd.f32 %v2535, %v2599
        %v2601 = vpop.f32.mrb[0].mxu0
        %v2602 = vpop.f32.mrb[0].mxu0
        %v2603 = vpop.f32.mrb[0].mxu0
        %2604 = vdwg.mxu0
        %v2605 = vadd.f32 %v2452, %v2600
        %v2606 = vld [vmem:[%s19] sm:$0x1]
        %v2607 = vld [vmem:[#allocation23] sm:$0x1]
        %v2608 = vsel %vm1092, %v2605, 0.0
        %2609 = vadd.xlane.f32.xlu0 %v2608
        %v2610 = vpop.xlane.xlu0 %2609
        %v2611 = vmul.f32 %v2610, %v1742
        %v2612 = vsub.f32 %v2605, %v2611
        %v2613 = vmul.f32 %v2612, %v2612
        %v2614 = vsel %vm1092, %v2613, 0.0
        %2615 = vadd.xlane.f32.xlu0 %v2614
        %v2616 = vpop.xlane.xlu0 %2615
        %v2617 = vmul.f32 %v2616, %v1742
        %v2618 = vadd.f32 %v2617, 1e-05
        %v2619 = vrsqrt.pop %v2618
        %v2620 = vmul.f32 %v2612, %v2619
        %v2622 = vlaneseq
        %v2623 = vshrl.u32 %v2622, 7
        %v2624 = vsub.s32 0, %v2623
        %v2625 = vrot.slane %v2606, %v2624
        %v2627 = vmul.f32 %v2620, %v2625
        %v2629 = vlaneseq
        %v2630 = vshrl.u32 %v2629, 7
        %v2631 = vsub.s32 0, %v2630
        %v2632 = vrot.slane %v2607, %v2631
        %v2634 = vadd.f32 %v2627, %v2632
        %s2635 = scalar_lea.vmem %s5, 16
        %v2636 = vld [vmem:[%s2635] sm:$0xf]
        %v2637 = vld [vmem:[%s2635 + $0x4] sm:$0xf]
        %v2638 = vld [vmem:[%s2635 + $0x8] sm:$0xf]
        %v2639 = vld [vmem:[%s2635 + $0xc] sm:$0xf]
        %v2640 = vpack.c.bf16 %v2634, %v2634
        %s2641 = scalar_lea.vmem %s6, 1
        %v2642 = vld [vmem:[%s2641] sm:$0x1]
        %v2644 = vlaneseq
        %v2645 = vshrl.u32 %v2644, 7
        %v2646 = vsub.s32 0, %v2645
        %v2647 = vrot.slane %v2642, %v2646
        %v2653 = vunpack.c.l.b16 %v2636
        %v2654 = vunpack.c.l.b16 %v2637
        %v2655 = vunpack.c.l.b16 %v2638
        %v2656 = vunpack.c.l.b16 %v2639
        %v2657 = vpack.c.b16 %v2654, %v2653
        %v2658 = vpack.c.b16 %v2656, %v2655
        %v2662 = vsel %vm1092, %v2640, 0
        %2664 = vmatprep.subr.bf16.mxu0 0
        %2665 = vmatpush1.bf16.msra.mxu0 %v2657
        %2666 = vmatprep.subr.bf16.mxu0 0
        %2667 = vmatpush1.bf16.msra.mxu0 %v2658
        %2668 = vmatprep.subr.bf16.mxu0 0
        %2669 = vmatpush1.bf16.msra.mxu0 0
        %2670 = vmatprep.subr.bf16.mxu0 0
        %2671 = vmatpush1.bf16.msra.mxu0 0
        %2672 = vmatprep.subr.bf16.mxu0 0
        %2673 = vmatpush1.bf16.msra.mxu0 0
        %2674 = vmatprep.subr.bf16.mxu0 0
        %2675 = vmatpush1.bf16.msra.mxu0 0
        %2676 = vmatprep.subr.bf16.mxu0 0
        %2677 = vmatpush1.bf16.msra.mxu0 0
        %2678 = vmatprep.subr.bf16.mxu0 0
        %2679 = vmatpush1.bf16.msra.mxu0 0
        %2680 = vmatprep.subr.bf16.mxu0 0
        %2681 = vmatpush1.bf16.msra.mxu0 0
        %2682 = vmatprep.subr.bf16.mxu0 0
        %2683 = vmatpush1.bf16.msra.mxu0 0
        %2684 = vmatprep.subr.bf16.mxu0 0
        %2685 = vmatpush1.bf16.msra.mxu0 0
        %2686 = vmatprep.subr.bf16.mxu0 0
        %2687 = vmatpush1.bf16.msra.mxu0 0
        %2688 = vmatprep.subr.bf16.mxu0 0
        %2689 = vmatpush1.bf16.msra.mxu0 0
        %2690 = vmatprep.subr.bf16.mxu0 0
        %2691 = vmatpush1.bf16.msra.mxu0 0
        %2692 = vmatprep.subr.bf16.mxu0 0
        %2693 = vmatpush1.bf16.msra.mxu0 0
        %2694 = vmatprep.subr.bf16.mxu0 0
        %2695 = vmatpush1.bf16.msra.mxu0 0
        %2696 = vmatprep.mubr.bf16.mxu0 0
        %2697 = vmatmul.mubr.bf16.gmra.mrb[0].mxu0 %v2662
        %v2698 = vpop.f32.mrb[0].mxu0
        %v2699 = vadd.f32 %v2647, %v2698
        %v2700 = vpop.f32.mrb[0].mxu0
        %v2701 = vpop.f32.mrb[0].mxu0
        %v2702 = vpop.f32.mrb[0].mxu0
        %2703 = vdwg.mxu0
        %v2704 = vmul.f32 %v2699, 0.35355338
        %v2705 = vpack.c.bf16 %v2704, %v2704
        %v2706 = vpack.c.bf16 %v2699, %v2699
        %2708 = vrot.lane.b32.xlu0 %v2706, 96
        %v2709 = vpop.permute.xlu0 %2708
        %v2711 = vsel %vm1213, %v2705, 0
        %v2714 = vsel %vm1213, %v2709, 0
        %2716 = vmatprep.subr.bf16.mxu0 0
        %2717 = vmatpush1.bf16.xpose.msra.mxu0 %v2714
        %2718 = vmatprep.subr.bf16.mxu0 0
        %2719 = vmatpush1.bf16.xpose.msra.mxu0 0
        %2720 = vmatprep.subr.bf16.mxu0 0
        %2721 = vmatpush1.bf16.xpose.msra.mxu0 0
        %2722 = vmatprep.subr.bf16.mxu0 0
        %2723 = vmatpush1.bf16.xpose.msra.mxu0 0
        %2724 = vmatprep.subr.bf16.mxu0 0
        %2725 = vmatpush1.bf16.xpose.msra.mxu0 0
        %2726 = vmatprep.subr.bf16.mxu0 0
        %2727 = vmatpush1.bf16.xpose.msra.mxu0 0
        %2728 = vmatprep.subr.bf16.mxu0 0
        %2729 = vmatpush1.bf16.xpose.msra.mxu0 0
        %2730 = vmatprep.subr.bf16.mxu0 0
        %2731 = vmatpush1.bf16.xpose.msra.mxu0 0
        %2732 = vmatprep.subr.bf16.mxu0 0
        %2733 = vmatpush1.bf16.xpose.msra.mxu0 0
        %2734 = vmatprep.subr.bf16.mxu0 0
        %2735 = vmatpush1.bf16.xpose.msra.mxu0 0
        %2736 = vmatprep.subr.bf16.mxu0 0
        %2737 = vmatpush1.bf16.xpose.msra.mxu0 0
        %2738 = vmatprep.subr.bf16.mxu0 0
        %2739 = vmatpush1.bf16.xpose.msra.mxu0 0
        %2740 = vmatprep.subr.bf16.mxu0 0
        %2741 = vmatpush1.bf16.xpose.msra.mxu0 0
        %2742 = vmatprep.subr.bf16.mxu0 0
        %2743 = vmatpush1.bf16.xpose.msra.mxu0 0
        %2744 = vmatprep.subr.bf16.mxu0 0
        %2745 = vmatpush1.bf16.xpose.msra.mxu0 0
        %2746 = vmatprep.subr.bf16.mxu0 0
        %2747 = vmatpush1.bf16.xpose.msra.mxu0 0
        %2748 = vmatprep.mubr.bf16.mxu0 0
        %2749 = vmatmul.mubr.bf16.gmra.mrb[0].mxu0 %v2711
        %v2750 = vpop.f32.mrb[0].mxu0
        %v2751 = vadd.f32 %v1066, %v2750
        %v2752 = vpop.f32.mrb[0].mxu0
        %v2753 = vpop.f32.mrb[0].mxu0
        %v2754 = vpop.f32.mrb[0].mxu0
        %2755 = vdwg.mxu0
        %v2756 = vsel %vm1213, %v2751, -inf
        %2757 = vmax.xlane.f32.xlu0 %v2756
        %v2758 = vpop.xlane.xlu0 %2757
        %v2759 = vsub.f32 %v2751, %v2758
        %v2760 = vmul.f32 %v2759, 1.442695
        %v2761 = vpow.pop %v2760
        %v2762 = vsel %vm1213, %v2761, 0.0
        %2763 = vadd.xlane.f32.xlu0 %v2762
        %v2764 = vpop.xlane.xlu0 %2763
        %v2765 = vrcp.pop %v2764
        %v2766 = vmul.f32 %v2761, %v2765
        %v2767 = vpack.c.bf16 %v2766, %v2766
        %2768 = vrot.lane.b32.xlu0 %v2706, 64
        %v2769 = vpop.permute.xlu0 %2768
        %v2771 = vsel %vm1213, %v2767, 0
        %v2774 = vsel %vm1277, %v2769, 0
        %2776 = vmatprep.subr.bf16.mxu0 0
        %2777 = vmatpush1.bf16.msra.mxu0 %v2774
        %2778 = vmatprep.subr.bf16.mxu0 0
        %2779 = vmatpush1.bf16.msra.mxu0 0
        %2780 = vmatprep.subr.bf16.mxu0 0
        %2781 = vmatpush1.bf16.msra.mxu0 0
        %2782 = vmatprep.subr.bf16.mxu0 0
        %2783 = vmatpush1.bf16.msra.mxu0 0
        %2784 = vmatprep.subr.bf16.mxu0 0
        %2785 = vmatpush1.bf16.msra.mxu0 0
        %2786 = vmatprep.subr.bf16.mxu0 0
        %2787 = vmatpush1.bf16.msra.mxu0 0
        %2788 = vmatprep.subr.bf16.mxu0 0
        %2789 = vmatpush1.bf16.msra.mxu0 0
        %2790 = vmatprep.subr.bf16.mxu0 0
        %2791 = vmatpush1.bf16.msra.mxu0 0
        %2792 = vmatprep.subr.bf16.mxu0 0
        %2793 = vmatpush1.bf16.msra.mxu0 0
        %2794 = vmatprep.subr.bf16.mxu0 0
        %2795 = vmatpush1.bf16.msra.mxu0 0
        %2796 = vmatprep.subr.bf16.mxu0 0
        %2797 = vmatpush1.bf16.msra.mxu0 0
        %2798 = vmatprep.subr.bf16.mxu0 0
        %2799 = vmatpush1.bf16.msra.mxu0 0
        %2800 = vmatprep.subr.bf16.mxu0 0
        %2801 = vmatpush1.bf16.msra.mxu0 0
        %2802 = vmatprep.subr.bf16.mxu0 0
        %2803 = vmatpush1.bf16.msra.mxu0 0
        %2804 = vmatprep.subr.bf16.mxu0 0
        %2805 = vmatpush1.bf16.msra.mxu0 0
        %2806 = vmatprep.subr.bf16.mxu0 0
        %2807 = vmatpush1.bf16.msra.mxu0 0
        %2808 = vmatprep.mubr.bf16.mxu0 0
        %2809 = vmatmul.mubr.bf16.gmra.mrb[0].mxu0 %v2771
        %v2810 = vpop.f32.mrb[0].mxu0
        %v2811 = vadd.f32 0.0, %v2810
        %v2812 = vpop.f32.mrb[0].mxu0
        %v2813 = vpop.f32.mrb[0].mxu0
        %v2814 = vpop.f32.mrb[0].mxu0
        %2815 = vdwg.mxu0
        %2817 = vrot.lane.b32.xlu0 %v2705, 120
        %v2818 = vpop.permute.xlu0 %2817
        %2819 = vrot.lane.b32.xlu0 %v2706, 88
        %v2820 = vpop.permute.xlu0 %2819
        %v2822 = vsel %vm1213, %v2818, 0
        %v2825 = vsel %vm1213, %v2820, 0
        %2827 = vmatprep.subr.bf16.mxu0 0
        %2828 = vmatpush1.bf16.xpose.msra.mxu0 %v2825
        %2829 = vmatprep.subr.bf16.mxu0 0
        %2830 = vmatpush1.bf16.xpose.msra.mxu0 0
        %2831 = vmatprep.subr.bf16.mxu0 0
        %2832 = vmatpush1.bf16.xpose.msra.mxu0 0
        %2833 = vmatprep.subr.bf16.mxu0 0
        %2834 = vmatpush1.bf16.xpose.msra.mxu0 0
        %2835 = vmatprep.subr.bf16.mxu0 0
        %2836 = vmatpush1.bf16.xpose.msra.mxu0 0
        %2837 = vmatprep.subr.bf16.mxu0 0
        %2838 = vmatpush1.bf16.xpose.msra.mxu0 0
        %2839 = vmatprep.subr.bf16.mxu0 0
        %2840 = vmatpush1.bf16.xpose.msra.mxu0 0
        %2841 = vmatprep.subr.bf16.mxu0 0
        %2842 = vmatpush1.bf16.xpose.msra.mxu0 0
        %2843 = vmatprep.subr.bf16.mxu0 0
        %2844 = vmatpush1.bf16.xpose.msra.mxu0 0
        %2845 = vmatprep.subr.bf16.mxu0 0
        %2846 = vmatpush1.bf16.xpose.msra.mxu0 0
        %2847 = vmatprep.subr.bf16.mxu0 0
        %2848 = vmatpush1.bf16.xpose.msra.mxu0 0
        %2849 = vmatprep.subr.bf16.mxu0 0
        %2850 = vmatpush1.bf16.xpose.msra.mxu0 0
        %2851 = vmatprep.subr.bf16.mxu0 0
        %2852 = vmatpush1.bf16.xpose.msra.mxu0 0
        %2853 = vmatprep.subr.bf16.mxu0 0
        %2854 = vmatpush1.bf16.xpose.msra.mxu0 0
        %2855 = vmatprep.subr.bf16.mxu0 0
        %2856 = vmatpush1.bf16.xpose.msra.mxu0 0
        %2857 = vmatprep.subr.bf16.mxu0 0
        %2858 = vmatpush1.bf16.xpose.msra.mxu0 0
        %2859 = vmatprep.mubr.bf16.mxu0 0
        %2860 = vmatmul.mubr.bf16.gmra.mrb[0].mxu0 %v2822
        %v2861 = vpop.f32.mrb[0].mxu0
        %v2862 = vadd.f32 %v1066, %v2861
        %v2863 = vpop.f32.mrb[0].mxu0
        %v2864 = vpop.f32.mrb[0].mxu0
        %v2865 = vpop.f32.mrb[0].mxu0
        %2866 = vdwg.mxu0
        %v2867 = vsel %vm1213, %v2862, -inf
        %2868 = vmax.xlane.f32.xlu0 %v2867
        %v2869 = vpop.xlane.xlu0 %2868
        %v2870 = vsub.f32 %v2862, %v2869
        %v2871 = vmul.f32 %v2870, 1.442695
        %v2872 = vpow.pop %v2871
        %v2873 = vsel %vm1213, %v2872, 0.0
        %2874 = vadd.xlane.f32.xlu0 %v2873
        %v2875 = vpop.xlane.xlu0 %2874
        %v2876 = vrcp.pop %v2875
        %v2877 = vmul.f32 %v2872, %v2876
        %v2878 = vpack.c.bf16 %v2877, %v2877
        %2879 = vrot.lane.b32.xlu0 %v2706, 56
        %v2880 = vpop.permute.xlu0 %2879
        %v2882 = vsel %vm1213, %v2878, 0
        %v2885 = vsel %vm1277, %v2880, 0
        %2887 = vmatprep.subr.bf16.mxu0 0
        %2888 = vmatpush1.bf16.msra.mxu0 %v2885
        %2889 = vmatprep.subr.bf16.mxu0 0
        %2890 = vmatpush1.bf16.msra.mxu0 0
        %2891 = vmatprep.subr.bf16.mxu0 0
        %2892 = vmatpush1.bf16.msra.mxu0 0
        %2893 = vmatprep.subr.bf16.mxu0 0
        %2894 = vmatpush1.bf16.msra.mxu0 0
        %2895 = vmatprep.subr.bf16.mxu0 0
        %2896 = vmatpush1.bf16.msra.mxu0 0
        %2897 = vmatprep.subr.bf16.mxu0 0
        %2898 = vmatpush1.bf16.msra.mxu0 0
        %2899 = vmatprep.subr.bf16.mxu0 0
        %2900 = vmatpush1.bf16.msra.mxu0 0
        %2901 = vmatprep.subr.bf16.mxu0 0
        %2902 = vmatpush1.bf16.msra.mxu0 0
        %2903 = vmatprep.subr.bf16.mxu0 0
        %2904 = vmatpush1.bf16.msra.mxu0 0
        %2905 = vmatprep.subr.bf16.mxu0 0
        %2906 = vmatpush1.bf16.msra.mxu0 0
        %2907 = vmatprep.subr.bf16.mxu0 0
        %2908 = vmatpush1.bf16.msra.mxu0 0
        %2909 = vmatprep.subr.bf16.mxu0 0
        %2910 = vmatpush1.bf16.msra.mxu0 0
        %2911 = vmatprep.subr.bf16.mxu0 0
        %2912 = vmatpush1.bf16.msra.mxu0 0
        %2913 = vmatprep.subr.bf16.mxu0 0
        %2914 = vmatpush1.bf16.msra.mxu0 0
        %2915 = vmatprep.subr.bf16.mxu0 0
        %2916 = vmatpush1.bf16.msra.mxu0 0
        %2917 = vmatprep.subr.bf16.mxu0 0
        %2918 = vmatpush1.bf16.msra.mxu0 0
        %2919 = vmatprep.mubr.bf16.mxu0 0
        %2920 = vmatmul.mubr.bf16.gmra.mrb[0].mxu0 %v2882
        %v2921 = vpop.f32.mrb[0].mxu0
        %v2922 = vadd.f32 0.0, %v2921
        %v2923 = vpop.f32.mrb[0].mxu0
        %v2924 = vpop.f32.mrb[0].mxu0
        %v2925 = vpop.f32.mrb[0].mxu0
        %2926 = vdwg.mxu0
        %2927 = vrot.lane.b32.xlu0 %v2705, 112
        %v2928 = vpop.permute.xlu0 %2927
        %2929 = vrot.lane.b32.xlu0 %v2706, 80
        %v2930 = vpop.permute.xlu0 %2929
        %v2932 = vsel %vm1213, %v2928, 0
        %v2935 = vsel %vm1213, %v2930, 0
        %2937 = vmatprep.subr.bf16.mxu0 0
        %2938 = vmatpush1.bf16.xpose.msra.mxu0 %v2935
        %2939 = vmatprep.subr.bf16.mxu0 0
        %2940 = vmatpush1.bf16.xpose.msra.mxu0 0
        %2941 = vmatprep.subr.bf16.mxu0 0
        %2942 = vmatpush1.bf16.xpose.msra.mxu0 0
        %2943 = vmatprep.subr.bf16.mxu0 0
        %2944 = vmatpush1.bf16.xpose.msra.mxu0 0
        %2945 = vmatprep.subr.bf16.mxu0 0
        %2946 = vmatpush1.bf16.xpose.msra.mxu0 0
        %2947 = vmatprep.subr.bf16.mxu0 0
        %2948 = vmatpush1.bf16.xpose.msra.mxu0 0
        %2949 = vmatprep.subr.bf16.mxu0 0
        %2950 = vmatpush1.bf16.xpose.msra.mxu0 0
        %2951 = vmatprep.subr.bf16.mxu0 0
        %2952 = vmatpush1.bf16.xpose.msra.mxu0 0
        %2953 = vmatprep.subr.bf16.mxu0 0
        %2954 = vmatpush1.bf16.xpose.msra.mxu0 0
        %2955 = vmatprep.subr.bf16.mxu0 0
        %2956 = vmatpush1.bf16.xpose.msra.mxu0 0
        %2957 = vmatprep.subr.bf16.mxu0 0
        %2958 = vmatpush1.bf16.xpose.msra.mxu0 0
        %2959 = vmatprep.subr.bf16.mxu0 0
        %2960 = vmatpush1.bf16.xpose.msra.mxu0 0
        %2961 = vmatprep.subr.bf16.mxu0 0
        %2962 = vmatpush1.bf16.xpose.msra.mxu0 0
        %2963 = vmatprep.subr.bf16.mxu0 0
        %2964 = vmatpush1.bf16.xpose.msra.mxu0 0
        %2965 = vmatprep.subr.bf16.mxu0 0
        %2966 = vmatpush1.bf16.xpose.msra.mxu0 0
        %2967 = vmatprep.subr.bf16.mxu0 0
        %2968 = vmatpush1.bf16.xpose.msra.mxu0 0
        %2969 = vmatprep.mubr.bf16.mxu0 0
        %2970 = vmatmul.mubr.bf16.gmra.mrb[0].mxu0 %v2932
        %v2971 = vpop.f32.mrb[0].mxu0
        %v2972 = vadd.f32 %v1066, %v2971
        %v2973 = vpop.f32.mrb[0].mxu0
        %v2974 = vpop.f32.mrb[0].mxu0
        %v2975 = vpop.f32.mrb[0].mxu0
        %2976 = vdwg.mxu0
        %v2977 = vsel %vm1213, %v2972, -inf
        %2978 = vmax.xlane.f32.xlu0 %v2977
        %v2979 = vpop.xlane.xlu0 %2978
        %v2980 = vsub.f32 %v2972, %v2979
        %v2981 = vmul.f32 %v2980, 1.442695
        %v2982 = vpow.pop %v2981
        %v2983 = vsel %vm1213, %v2982, 0.0
        %2984 = vadd.xlane.f32.xlu0 %v2983
        %v2985 = vpop.xlane.xlu0 %2984
        %v2986 = vrcp.pop %v2985
        %v2987 = vmul.f32 %v2982, %v2986
        %v2988 = vpack.c.bf16 %v2987, %v2987
        %2989 = vrot.lane.b32.xlu0 %v2706, 48
        %v2990 = vpop.permute.xlu0 %2989
        %v2992 = vsel %vm1213, %v2988, 0
        %v2995 = vsel %vm1277, %v2990, 0
        %2997 = vmatprep.subr.bf16.mxu0 0
        %2998 = vmatpush1.bf16.msra.mxu0 %v2995
        %2999 = vmatprep.subr.bf16.mxu0 0
        %3000 = vmatpush1.bf16.msra.mxu0 0
        %3001 = vmatprep.subr.bf16.mxu0 0
        %3002 = vmatpush1.bf16.msra.mxu0 0
        %3003 = vmatprep.subr.bf16.mxu0 0
        %3004 = vmatpush1.bf16.msra.mxu0 0
        %3005 = vmatprep.subr.bf16.mxu0 0
        %3006 = vmatpush1.bf16.msra.mxu0 0
        %3007 = vmatprep.subr.bf16.mxu0 0
        %3008 = vmatpush1.bf16.msra.mxu0 0
        %3009 = vmatprep.subr.bf16.mxu0 0
        %3010 = vmatpush1.bf16.msra.mxu0 0
        %3011 = vmatprep.subr.bf16.mxu0 0
        %3012 = vmatpush1.bf16.msra.mxu0 0
        %3013 = vmatprep.subr.bf16.mxu0 0
        %3014 = vmatpush1.bf16.msra.mxu0 0
        %3015 = vmatprep.subr.bf16.mxu0 0
        %3016 = vmatpush1.bf16.msra.mxu0 0
        %3017 = vmatprep.subr.bf16.mxu0 0
        %3018 = vmatpush1.bf16.msra.mxu0 0
        %3019 = vmatprep.subr.bf16.mxu0 0
        %3020 = vmatpush1.bf16.msra.mxu0 0
        %3021 = vmatprep.subr.bf16.mxu0 0
        %3022 = vmatpush1.bf16.msra.mxu0 0
        %3023 = vmatprep.subr.bf16.mxu0 0
        %3024 = vmatpush1.bf16.msra.mxu0 0
        %3025 = vmatprep.subr.bf16.mxu0 0
        %3026 = vmatpush1.bf16.msra.mxu0 0
        %3027 = vmatprep.subr.bf16.mxu0 0
        %3028 = vmatpush1.bf16.msra.mxu0 0
        %3029 = vmatprep.mubr.bf16.mxu0 0
        %3030 = vmatmul.mubr.bf16.gmra.mrb[0].mxu0 %v2992
        %v3031 = vpop.f32.mrb[0].mxu0
        %v3032 = vadd.f32 0.0, %v3031
        %v3033 = vpop.f32.mrb[0].mxu0
        %v3034 = vpop.f32.mrb[0].mxu0
        %v3035 = vpop.f32.mrb[0].mxu0
        %3036 = vdwg.mxu0
        %3037 = vrot.lane.b32.xlu0 %v2705, 104
        %v3038 = vpop.permute.xlu0 %3037
        %3039 = vrot.lane.b32.xlu0 %v2706, 72
        %v3040 = vpop.permute.xlu0 %3039
        %v3042 = vsel %vm1213, %v3038, 0
        %v3045 = vsel %vm1213, %v3040, 0
        %3047 = vmatprep.subr.bf16.mxu0 0
        %3048 = vmatpush1.bf16.xpose.msra.mxu0 %v3045
        %3049 = vmatprep.subr.bf16.mxu0 0
        %3050 = vmatpush1.bf16.xpose.msra.mxu0 0
        %3051 = vmatprep.subr.bf16.mxu0 0
        %3052 = vmatpush1.bf16.xpose.msra.mxu0 0
        %3053 = vmatprep.subr.bf16.mxu0 0
        %3054 = vmatpush1.bf16.xpose.msra.mxu0 0
        %3055 = vmatprep.subr.bf16.mxu0 0
        %3056 = vmatpush1.bf16.xpose.msra.mxu0 0
        %3057 = vmatprep.subr.bf16.mxu0 0
        %3058 = vmatpush1.bf16.xpose.msra.mxu0 0
        %3059 = vmatprep.subr.bf16.mxu0 0
        %3060 = vmatpush1.bf16.xpose.msra.mxu0 0
        %3061 = vmatprep.subr.bf16.mxu0 0
        %3062 = vmatpush1.bf16.xpose.msra.mxu0 0
        %3063 = vmatprep.subr.bf16.mxu0 0
        %3064 = vmatpush1.bf16.xpose.msra.mxu0 0
        %3065 = vmatprep.subr.bf16.mxu0 0
        %3066 = vmatpush1.bf16.xpose.msra.mxu0 0
        %3067 = vmatprep.subr.bf16.mxu0 0
        %3068 = vmatpush1.bf16.xpose.msra.mxu0 0
        %3069 = vmatprep.subr.bf16.mxu0 0
        %3070 = vmatpush1.bf16.xpose.msra.mxu0 0
        %3071 = vmatprep.subr.bf16.mxu0 0
        %3072 = vmatpush1.bf16.xpose.msra.mxu0 0
        %3073 = vmatprep.subr.bf16.mxu0 0
        %3074 = vmatpush1.bf16.xpose.msra.mxu0 0
        %3075 = vmatprep.subr.bf16.mxu0 0
        %3076 = vmatpush1.bf16.xpose.msra.mxu0 0
        %3077 = vmatprep.subr.bf16.mxu0 0
        %3078 = vmatpush1.bf16.xpose.msra.mxu0 0
        %3079 = vmatprep.mubr.bf16.mxu0 0
        %3080 = vmatmul.mubr.bf16.gmra.mrb[0].mxu0 %v3042
        %v3081 = vpop.f32.mrb[0].mxu0
        %v3082 = vadd.f32 %v1066, %v3081
        %v3083 = vpop.f32.mrb[0].mxu0
        %v3084 = vpop.f32.mrb[0].mxu0
        %v3085 = vpop.f32.mrb[0].mxu0
        %3086 = vdwg.mxu0
        %v3087 = vsel %vm1213, %v3082, -inf
        %3088 = vmax.xlane.f32.xlu0 %v3087
        %v3089 = vpop.xlane.xlu0 %3088
        %v3090 = vsub.f32 %v3082, %v3089
        %v3091 = vmul.f32 %v3090, 1.442695
        %v3092 = vpow.pop %v3091
        %v3093 = vsel %vm1213, %v3092, 0.0
        %3094 = vadd.xlane.f32.xlu0 %v3093
        %v3095 = vpop.xlane.xlu0 %3094
        %v3096 = vrcp.pop %v3095
        %v3097 = vmul.f32 %v3092, %v3096
        %v3098 = vpack.c.bf16 %v3097, %v3097
        %3099 = vrot.lane.b32.xlu0 %v2706, 40
        %v3100 = vpop.permute.xlu0 %3099
        %v3102 = vsel %vm1213, %v3098, 0
        %v3105 = vsel %vm1277, %v3100, 0
        %3107 = vmatprep.subr.bf16.mxu0 0
        %3108 = vmatpush1.bf16.msra.mxu0 %v3105
        %3109 = vmatprep.subr.bf16.mxu0 0
        %3110 = vmatpush1.bf16.msra.mxu0 0
        %3111 = vmatprep.subr.bf16.mxu0 0
        %3112 = vmatpush1.bf16.msra.mxu0 0
        %3113 = vmatprep.subr.bf16.mxu0 0
        %3114 = vmatpush1.bf16.msra.mxu0 0
        %3115 = vmatprep.subr.bf16.mxu0 0
        %3116 = vmatpush1.bf16.msra.mxu0 0
        %3117 = vmatprep.subr.bf16.mxu0 0
        %3118 = vmatpush1.bf16.msra.mxu0 0
        %3119 = vmatprep.subr.bf16.mxu0 0
        %3120 = vmatpush1.bf16.msra.mxu0 0
        %3121 = vmatprep.subr.bf16.mxu0 0
        %3122 = vmatpush1.bf16.msra.mxu0 0
        %3123 = vmatprep.subr.bf16.mxu0 0
        %3124 = vmatpush1.bf16.msra.mxu0 0
        %3125 = vmatprep.subr.bf16.mxu0 0
        %3126 = vmatpush1.bf16.msra.mxu0 0
        %3127 = vmatprep.subr.bf16.mxu0 0
        %3128 = vmatpush1.bf16.msra.mxu0 0
        %3129 = vmatprep.subr.bf16.mxu0 0
        %3130 = vmatpush1.bf16.msra.mxu0 0
        %3131 = vmatprep.subr.bf16.mxu0 0
        %3132 = vmatpush1.bf16.msra.mxu0 0
        %3133 = vmatprep.subr.bf16.mxu0 0
        %3134 = vmatpush1.bf16.msra.mxu0 0
        %3135 = vmatprep.subr.bf16.mxu0 0
        %3136 = vmatpush1.bf16.msra.mxu0 0
        %3137 = vmatprep.subr.bf16.mxu0 0
        %3138 = vmatpush1.bf16.msra.mxu0 0
        %3139 = vmatprep.mubr.bf16.mxu0 0
        %3140 = vmatmul.mubr.bf16.gmra.mrb[0].mxu0 %v3102
        %v3141 = vpop.f32.mrb[0].mxu0
        %v3142 = vadd.f32 0.0, %v3141
        %v3143 = vpop.f32.mrb[0].mxu0
        %v3144 = vpop.f32.mrb[0].mxu0
        %v3145 = vpop.f32.mrb[0].mxu0
        %3146 = vdwg.mxu0
        %3148 = vrot.lane.b32.xlu0 %v2922, 8
        %v3149 = vpop.permute.xlu0 %3148
        %3152 = vrot.lane.b32.xlu0 %v3032, 16
        %v3153 = vpop.permute.xlu0 %3152
        %3156 = vrot.lane.b32.xlu0 %v3142, 24
        %v3157 = vpop.permute.xlu0 %3156
        %v3159 = vsel %vm1213, %v2811, %v3149
        %v3160 = vsel %vm1665, %v3159, %v3153
        %v3161 = vsel %vm1667, %v3160, %v3157
        %s3162 = scalar_lea.vmem %s7, 16
        %v3163 = vld [vmem:[%s3162] sm:$0xf]
        %v3164 = vld [vmem:[%s3162 + $0x4] sm:$0xf]
        %v3165 = vld [vmem:[%s3162 + $0x8] sm:$0xf]
        %v3166 = vld [vmem:[%s3162 + $0xc] sm:$0xf]
        %v3167 = vpack.c.bf16 %v3161, %v3161
        %s3168 = scalar_lea.vmem %s8, 1
        %v3169 = vld [vmem:[%s3168] sm:$0x1]
        %v3171 = vlaneseq
        %v3172 = vshrl.u32 %v3171, 7
        %v3173 = vsub.s32 0, %v3172
        %v3174 = vrot.slane %v3169, %v3173
        %v3180 = vunpack.c.l.b16 %v3163
        %v3181 = vunpack.c.l.b16 %v3164
        %v3182 = vunpack.c.l.b16 %v3165
        %v3183 = vunpack.c.l.b16 %v3166
        %v3184 = vpack.c.b16 %v3181, %v3180
        %v3185 = vpack.c.b16 %v3183, %v3182
        %v3189 = vsel %vm1092, %v3167, 0
        %3191 = vmatprep.subr.bf16.mxu0 0
        %3192 = vmatpush1.bf16.msra.mxu0 %v3184
        %3193 = vmatprep.subr.bf16.mxu0 0
        %3194 = vmatpush1.bf16.msra.mxu0 %v3185
        %3195 = vmatprep.subr.bf16.mxu0 0
        %3196 = vmatpush1.bf16.msra.mxu0 0
        %3197 = vmatprep.subr.bf16.mxu0 0
        %3198 = vmatpush1.bf16.msra.mxu0 0
        %3199 = vmatprep.subr.bf16.mxu0 0
        %3200 = vmatpush1.bf16.msra.mxu0 0
        %3201 = vmatprep.subr.bf16.mxu0 0
        %3202 = vmatpush1.bf16.msra.mxu0 0
        %3203 = vmatprep.subr.bf16.mxu0 0
        %3204 = vmatpush1.bf16.msra.mxu0 0
        %3205 = vmatprep.subr.bf16.mxu0 0
        %3206 = vmatpush1.bf16.msra.mxu0 0
        %3207 = vmatprep.subr.bf16.mxu0 0
        %3208 = vmatpush1.bf16.msra.mxu0 0
        %3209 = vmatprep.subr.bf16.mxu0 0
        %3210 = vmatpush1.bf16.msra.mxu0 0
        %3211 = vmatprep.subr.bf16.mxu0 0
        %3212 = vmatpush1.bf16.msra.mxu0 0
        %3213 = vmatprep.subr.bf16.mxu0 0
        %3214 = vmatpush1.bf16.msra.mxu0 0
        %3215 = vmatprep.subr.bf16.mxu0 0
        %3216 = vmatpush1.bf16.msra.mxu0 0
        %3217 = vmatprep.subr.bf16.mxu0 0
        %3218 = vmatpush1.bf16.msra.mxu0 0
        %3219 = vmatprep.subr.bf16.mxu0 0
        %3220 = vmatpush1.bf16.msra.mxu0 0
        %3221 = vmatprep.subr.bf16.mxu0 0
        %3222 = vmatpush1.bf16.msra.mxu0 0
        %3223 = vmatprep.mubr.bf16.mxu0 0
        %3224 = vmatmul.mubr.bf16.gmra.mrb[0].mxu0 %v3189
        %v3225 = vpop.f32.mrb[0].mxu0
        %v3226 = vadd.f32 %v3174, %v3225
        %v3227 = vpop.f32.mrb[0].mxu0
        %v3228 = vpop.f32.mrb[0].mxu0
        %v3229 = vpop.f32.mrb[0].mxu0
        %3230 = vdwg.mxu0
        %v3231 = vadd.f32 %v2634, %v3226
        %s3232 = scalar_lea.vmem [#allocation17], 1
        %v3233 = vld [vmem:[%s3232] sm:$0x1]
        %s3234 = scalar_lea.vmem [#allocation19], 1
        %v3235 = vld [vmem:[%s3234] sm:$0x1]
        %v3236 = vsel %vm1092, %v3231, 0.0
        %3237 = vadd.xlane.f32.xlu0 %v3236
        %v3238 = vpop.xlane.xlu0 %3237
        %v3239 = vmul.f32 %v3238, %v1742
        %v3240 = vsub.f32 %v3231, %v3239
        %v3241 = vmul.f32 %v3240, %v3240
        %v3242 = vsel %vm1092, %v3241, 0.0
        %3243 = vadd.xlane.f32.xlu0 %v3242
        %v3244 = vpop.xlane.xlu0 %3243
        %v3245 = vmul.f32 %v3244, %v1742
        %v3246 = vadd.f32 %v3245, 1e-05
        %v3247 = vrsqrt.pop %v3246
        %v3248 = vmul.f32 %v3240, %v3247
        %v3250 = vlaneseq
        %v3251 = vshrl.u32 %v3250, 7
        %v3252 = vsub.s32 0, %v3251
        %v3253 = vrot.slane %v3233, %v3252
        %v3255 = vmul.f32 %v3248, %v3253
        %v3257 = vlaneseq
        %v3258 = vshrl.u32 %v3257, 7
        %v3259 = vsub.s32 0, %v3258
        %v3260 = vrot.slane %v3235, %v3259
        %v3262 = vadd.f32 %v3255, %v3260
        %s3263 = scalar_lea.vmem %s9, 16
        %v3264 = vld [vmem:[%s3263] sm:$0xf]
        %v3265 = vld [vmem:[%s3263 + $0x4] sm:$0xf]
        %v3266 = vld [vmem:[%s3263 + $0x8] sm:$0xf]
        %v3267 = vld [vmem:[%s3263 + $0xc] sm:$0xf]
        %v3268 = vpack.c.bf16 %v3262, %v3262
        %s3269 = scalar_lea.vmem [#allocation10], 1
        %v3270 = vld [vmem:[%s3269] sm:$0x1]
        %v3272 = vlaneseq
        %v3273 = vshrl.u32 %v3272, 7
        %v3274 = vsub.s32 0, %v3273
        %v3275 = vrot.slane %v3270, %v3274
        %v3281 = vunpack.c.l.b16 %v3264
        %v3282 = vunpack.c.l.b16 %v3265
        %v3283 = vunpack.c.l.b16 %v3266
        %v3284 = vunpack.c.l.b16 %v3267
        %v3285 = vpack.c.b16 %v3282, %v3281
        %v3286 = vpack.c.b16 %v3284, %v3283
        %v3290 = vsel %vm1092, %v3268, 0
        %3292 = vmatprep.subr.bf16.mxu0 0
        %3293 = vmatpush1.bf16.msra.mxu0 %v3285
        %3294 = vmatprep.subr.bf16.mxu0 0
        %3295 = vmatpush1.bf16.msra.mxu0 %v3286
        %3296 = vmatprep.subr.bf16.mxu0 0
        %3297 = vmatpush1.bf16.msra.mxu0 0
        %3298 = vmatprep.subr.bf16.mxu0 0
        %3299 = vmatpush1.bf16.msra.mxu0 0
        %3300 = vmatprep.subr.bf16.mxu0 0
        %3301 = vmatpush1.bf16.msra.mxu0 0
        %3302 = vmatprep.subr.bf16.mxu0 0
        %3303 = vmatpush1.bf16.msra.mxu0 0
        %3304 = vmatprep.subr.bf16.mxu0 0
        %3305 = vmatpush1.bf16.msra.mxu0 0
        %3306 = vmatprep.subr.bf16.mxu0 0
        %3307 = vmatpush1.bf16.msra.mxu0 0
        %3308 = vmatprep.subr.bf16.mxu0 0
        %3309 = vmatpush1.bf16.msra.mxu0 0
        %3310 = vmatprep.subr.bf16.mxu0 0
        %3311 = vmatpush1.bf16.msra.mxu0 0
        %3312 = vmatprep.subr.bf16.mxu0 0
        %3313 = vmatpush1.bf16.msra.mxu0 0
        %3314 = vmatprep.subr.bf16.mxu0 0
        %3315 = vmatpush1.bf16.msra.mxu0 0
        %3316 = vmatprep.subr.bf16.mxu0 0
        %3317 = vmatpush1.bf16.msra.mxu0 0
        %3318 = vmatprep.subr.bf16.mxu0 0
        %3319 = vmatpush1.bf16.msra.mxu0 0
        %3320 = vmatprep.subr.bf16.mxu0 0
        %3321 = vmatpush1.bf16.msra.mxu0 0
        %3322 = vmatprep.subr.bf16.mxu0 0
        %3323 = vmatpush1.bf16.msra.mxu0 0
        %3324 = vmatprep.mubr.bf16.mxu0 0
        %3325 = vmatmul.mubr.bf16.gmra.mrb[0].mxu0 %v3290
        %v3326 = vpop.f32.mrb[0].mxu0
        %v3327 = vadd.f32 %v3275, %v3326
        %v3328 = vpop.f32.mrb[0].mxu0
        %v3329 = vpop.f32.mrb[0].mxu0
        %v3330 = vpop.f32.mrb[0].mxu0
        %3331 = vdwg.mxu0
        %v3332 = vmul.f32 %v3327, 0.35355338
        %s3333 = scalar_lea.vmem [#allocation11], 16
        %v3334 = vld [vmem:[%s3333] sm:$0xf]
        %v3335 = vld [vmem:[%s3333 + $0x4] sm:$0xf]
        %v3336 = vld [vmem:[%s3333 + $0x8] sm:$0xf]
        %v3337 = vld [vmem:[%s3333 + $0xc] sm:$0xf]
        %s3338 = scalar_lea.vmem [#allocation13], 1
        %v3339 = vld [vmem:[%s3338] sm:$0x1]
        %v3341 = vlaneseq
        %v3342 = vshrl.u32 %v3341, 7
        %v3343 = vsub.s32 0, %v3342
        %v3344 = vrot.slane %v3339, %v3343
        %v3350 = vunpack.c.l.b16 %v3334
        %v3351 = vunpack.c.l.b16 %v3335
        %v3352 = vunpack.c.l.b16 %v3336
        %v3353 = vunpack.c.l.b16 %v3337
        %v3354 = vpack.c.b16 %v3351, %v3350
        %v3355 = vpack.c.b16 %v3353, %v3352
        %3358 = vmatprep.subr.bf16.mxu0 0
        %3359 = vmatpush1.bf16.msra.mxu0 %v3354
        %3360 = vmatprep.subr.bf16.mxu0 0
        %3361 = vmatpush1.bf16.msra.mxu0 %v3355
        %3362 = vmatprep.subr.bf16.mxu0 0
        %3363 = vmatpush1.bf16.msra.mxu0 0
        %3364 = vmatprep.subr.bf16.mxu0 0
        %3365 = vmatpush1.bf16.msra.mxu0 0
        %3366 = vmatprep.subr.bf16.mxu0 0
        %3367 = vmatpush1.bf16.msra.mxu0 0
        %3368 = vmatprep.subr.bf16.mxu0 0
        %3369 = vmatpush1.bf16.msra.mxu0 0
        %3370 = vmatprep.subr.bf16.mxu0 0
        %3371 = vmatpush1.bf16.msra.mxu0 0
        %3372 = vmatprep.subr.bf16.mxu0 0
        %3373 = vmatpush1.bf16.msra.mxu0 0
        %3374 = vmatprep.subr.bf16.mxu0 0
        %3375 = vmatpush1.bf16.msra.mxu0 0
        %3376 = vmatprep.subr.bf16.mxu0 0
        %3377 = vmatpush1.bf16.msra.mxu0 0
        %3378 = vmatprep.subr.bf16.mxu0 0
        %3379 = vmatpush1.bf16.msra.mxu0 0
        %3380 = vmatprep.subr.bf16.mxu0 0
        %3381 = vmatpush1.bf16.msra.mxu0 0
        %3382 = vmatprep.subr.bf16.mxu0 0
        %3383 = vmatpush1.bf16.msra.mxu0 0
        %3384 = vmatprep.subr.bf16.mxu0 0
        %3385 = vmatpush1.bf16.msra.mxu0 0
        %3386 = vmatprep.subr.bf16.mxu0 0
        %3387 = vmatpush1.bf16.msra.mxu0 0
        %3388 = vmatprep.subr.bf16.mxu0 0
        %3389 = vmatpush1.bf16.msra.mxu0 0
        %3390 = vmatprep.mubr.bf16.mxu0 0
        %3391 = vmatmul.mubr.bf16.gmra.mrb[0].mxu0 %v1859
        %v3392 = vpop.f32.mrb[0].mxu0
        %v3393 = vadd.f32 %v3344, %v3392
        %v3394 = vpop.f32.mrb[0].mxu0
        %v3395 = vpop.f32.mrb[0].mxu0
        %v3396 = vpop.f32.mrb[0].mxu0
        %3397 = vdwg.mxu0
        %v3398 = vpack.c.bf16 %v3332, %v3332
        %v3399 = vpack.c.bf16 %v3393, %v3393
        %v3401 = vsel %vm1213, %v3398, 0
        %v3404 = vsel %vm1213, %v3399, 0
        %3406 = vmatprep.subr.bf16.mxu0 0
        %3407 = vmatpush1.bf16.xpose.msra.mxu0 %v3404
        %3408 = vmatprep.subr.bf16.mxu0 0
        %3409 = vmatpush1.bf16.xpose.msra.mxu0 0
        %3410 = vmatprep.subr.bf16.mxu0 0
        %3411 = vmatpush1.bf16.xpose.msra.mxu0 0
        %3412 = vmatprep.subr.bf16.mxu0 0
        %3413 = vmatpush1.bf16.xpose.msra.mxu0 0
        %3414 = vmatprep.subr.bf16.mxu0 0
        %3415 = vmatpush1.bf16.xpose.msra.mxu0 0
        %3416 = vmatprep.subr.bf16.mxu0 0
        %3417 = vmatpush1.bf16.xpose.msra.mxu0 0
        %3418 = vmatprep.subr.bf16.mxu0 0
        %3419 = vmatpush1.bf16.xpose.msra.mxu0 0
        %3420 = vmatprep.subr.bf16.mxu0 0
        %3421 = vmatpush1.bf16.xpose.msra.mxu0 0
        %3422 = vmatprep.subr.bf16.mxu0 0
        %3423 = vmatpush1.bf16.xpose.msra.mxu0 0
        %3424 = vmatprep.subr.bf16.mxu0 0
        %3425 = vmatpush1.bf16.xpose.msra.mxu0 0
        %3426 = vmatprep.subr.bf16.mxu0 0
        %3427 = vmatpush1.bf16.xpose.msra.mxu0 0
        %3428 = vmatprep.subr.bf16.mxu0 0
        %3429 = vmatpush1.bf16.xpose.msra.mxu0 0
        %3430 = vmatprep.subr.bf16.mxu0 0
        %3431 = vmatpush1.bf16.xpose.msra.mxu0 0
        %3432 = vmatprep.subr.bf16.mxu0 0
        %3433 = vmatpush1.bf16.xpose.msra.mxu0 0
        %3434 = vmatprep.subr.bf16.mxu0 0
        %3435 = vmatpush1.bf16.xpose.msra.mxu0 0
        %3436 = vmatprep.subr.bf16.mxu0 0
        %3437 = vmatpush1.bf16.xpose.msra.mxu0 0
        %3438 = vmatprep.mubr.bf16.mxu0 0
        %3439 = vmatmul.mubr.bf16.gmra.mrb[0].mxu0 %v3401
        %v3440 = vpop.f32.mrb[0].mxu0
        %v3441 = vadd.f32 0.0, %v3440
        %v3442 = vpop.f32.mrb[0].mxu0
        %v3443 = vpop.f32.mrb[0].mxu0
        %v3444 = vpop.f32.mrb[0].mxu0
        %3445 = vdwg.mxu0
        %v3446 = vsel %vm1213, %v3441, -inf
        %3447 = vmax.xlane.f32.xlu0 %v3446
        %v3448 = vpop.xlane.xlu0 %3447
        %v3449 = vsub.f32 %v3441, %v3448
        %v3450 = vmul.f32 %v3449, 1.442695
        %v3451 = vpow.pop %v3450
        %v3452 = vsel %vm1213, %v3451, 0.0
        %3453 = vadd.xlane.f32.xlu0 %v3452
        %v3454 = vpop.xlane.xlu0 %3453
        %v3455 = vrcp.pop %v3454
        %v3456 = vmul.f32 %v3451, %v3455
        %v3457 = vpack.c.bf16 %v3456, %v3456
        %3459 = vrot.lane.b32.xlu0 %v3399, 96
        %v3460 = vpop.permute.xlu0 %3459
        %v3462 = vsel %vm1213, %v3457, 0
        %v3465 = vsel %vm1277, %v3460, 0
        %3467 = vmatprep.subr.bf16.mxu0 0
        %3468 = vmatpush1.bf16.msra.mxu0 %v3465
        %3469 = vmatprep.subr.bf16.mxu0 0
        %3470 = vmatpush1.bf16.msra.mxu0 0
        %3471 = vmatprep.subr.bf16.mxu0 0
        %3472 = vmatpush1.bf16.msra.mxu0 0
        %3473 = vmatprep.subr.bf16.mxu0 0
        %3474 = vmatpush1.bf16.msra.mxu0 0
        %3475 = vmatprep.subr.bf16.mxu0 0
        %3476 = vmatpush1.bf16.msra.mxu0 0
        %3477 = vmatprep.subr.bf16.mxu0 0
        %3478 = vmatpush1.bf16.msra.mxu0 0
        %3479 = vmatprep.subr.bf16.mxu0 0
        %3480 = vmatpush1.bf16.msra.mxu0 0
        %3481 = vmatprep.subr.bf16.mxu0 0
        %3482 = vmatpush1.bf16.msra.mxu0 0
        %3483 = vmatprep.subr.bf16.mxu0 0
        %3484 = vmatpush1.bf16.msra.mxu0 0
        %3485 = vmatprep.subr.bf16.mxu0 0
        %3486 = vmatpush1.bf16.msra.mxu0 0
        %3487 = vmatprep.subr.bf16.mxu0 0
        %3488 = vmatpush1.bf16.msra.mxu0 0
        %3489 = vmatprep.subr.bf16.mxu0 0
        %3490 = vmatpush1.bf16.msra.mxu0 0
        %3491 = vmatprep.subr.bf16.mxu0 0
        %3492 = vmatpush1.bf16.msra.mxu0 0
        %3493 = vmatprep.subr.bf16.mxu0 0
        %3494 = vmatpush1.bf16.msra.mxu0 0
        %3495 = vmatprep.subr.bf16.mxu0 0
        %3496 = vmatpush1.bf16.msra.mxu0 0
        %3497 = vmatprep.subr.bf16.mxu0 0
        %3498 = vmatpush1.bf16.msra.mxu0 0
        %3499 = vmatprep.mubr.bf16.mxu0 0
        %3500 = vmatmul.mubr.bf16.gmra.mrb[0].mxu0 %v3462
        %v3501 = vpop.f32.mrb[0].mxu0
        %v3502 = vadd.f32 0.0, %v3501
        %v3503 = vpop.f32.mrb[0].mxu0
        %v3504 = vpop.f32.mrb[0].mxu0
        %v3505 = vpop.f32.mrb[0].mxu0
        %3506 = vdwg.mxu0
        %3508 = vrot.lane.b32.xlu0 %v3398, 120
        %v3509 = vpop.permute.xlu0 %3508
        %3510 = vrot.lane.b32.xlu0 %v3399, 120
        %v3511 = vpop.permute.xlu0 %3510
        %v3513 = vsel %vm1213, %v3509, 0
        %v3516 = vsel %vm1213, %v3511, 0
        %3518 = vmatprep.subr.bf16.mxu0 0
        %3519 = vmatpush1.bf16.xpose.msra.mxu0 %v3516
        %3520 = vmatprep.subr.bf16.mxu0 0
        %3521 = vmatpush1.bf16.xpose.msra.mxu0 0
        %3522 = vmatprep.subr.bf16.mxu0 0
        %3523 = vmatpush1.bf16.xpose.msra.mxu0 0
        %3524 = vmatprep.subr.bf16.mxu0 0
        %3525 = vmatpush1.bf16.xpose.msra.mxu0 0
        %3526 = vmatprep.subr.bf16.mxu0 0
        %3527 = vmatpush1.bf16.xpose.msra.mxu0 0
        %3528 = vmatprep.subr.bf16.mxu0 0
        %3529 = vmatpush1.bf16.xpose.msra.mxu0 0
        %3530 = vmatprep.subr.bf16.mxu0 0
        %3531 = vmatpush1.bf16.xpose.msra.mxu0 0
        %3532 = vmatprep.subr.bf16.mxu0 0
        %3533 = vmatpush1.bf16.xpose.msra.mxu0 0
        %3534 = vmatprep.subr.bf16.mxu0 0
        %3535 = vmatpush1.bf16.xpose.msra.mxu0 0
        %3536 = vmatprep.subr.bf16.mxu0 0
        %3537 = vmatpush1.bf16.xpose.msra.mxu0 0
        %3538 = vmatprep.subr.bf16.mxu0 0
        %3539 = vmatpush1.bf16.xpose.msra.mxu0 0
        %3540 = vmatprep.subr.bf16.mxu0 0
        %3541 = vmatpush1.bf16.xpose.msra.mxu0 0
        %3542 = vmatprep.subr.bf16.mxu0 0
        %3543 = vmatpush1.bf16.xpose.msra.mxu0 0
        %3544 = vmatprep.subr.bf16.mxu0 0
        %3545 = vmatpush1.bf16.xpose.msra.mxu0 0
        %3546 = vmatprep.subr.bf16.mxu0 0
        %3547 = vmatpush1.bf16.xpose.msra.mxu0 0
        %3548 = vmatprep.subr.bf16.mxu0 0
        %3549 = vmatpush1.bf16.xpose.msra.mxu0 0
        %3550 = vmatprep.mubr.bf16.mxu0 0
        %3551 = vmatmul.mubr.bf16.gmra.mrb[0].mxu0 %v3513
        %v3552 = vpop.f32.mrb[0].mxu0
        %v3553 = vadd.f32 0.0, %v3552
        %v3554 = vpop.f32.mrb[0].mxu0
        %v3555 = vpop.f32.mrb[0].mxu0
        %v3556 = vpop.f32.mrb[0].mxu0
        %3557 = vdwg.mxu0
        %v3558 = vsel %vm1213, %v3553, -inf
        %3559 = vmax.xlane.f32.xlu0 %v3558
        %v3560 = vpop.xlane.xlu0 %3559
        %v3561 = vsub.f32 %v3553, %v3560
        %v3562 = vmul.f32 %v3561, 1.442695
        %v3563 = vpow.pop %v3562
        %v3564 = vsel %vm1213, %v3563, 0.0
        %3565 = vadd.xlane.f32.xlu0 %v3564
        %v3566 = vpop.xlane.xlu0 %3565
        %v3567 = vrcp.pop %v3566
        %v3568 = vmul.f32 %v3563, %v3567
        %v3569 = vpack.c.bf16 %v3568, %v3568
        %3570 = vrot.lane.b32.xlu0 %v3399, 88
        %v3571 = vpop.permute.xlu0 %3570
        %v3573 = vsel %vm1213, %v3569, 0
        %v3576 = vsel %vm1277, %v3571, 0
        %3578 = vmatprep.subr.bf16.mxu0 0
        %3579 = vmatpush1.bf16.msra.mxu0 %v3576
        %3580 = vmatprep.subr.bf16.mxu0 0
        %3581 = vmatpush1.bf16.msra.mxu0 0
        %3582 = vmatprep.subr.bf16.mxu0 0
        %3583 = vmatpush1.bf16.msra.mxu0 0
        %3584 = vmatprep.subr.bf16.mxu0 0
        %3585 = vmatpush1.bf16.msra.mxu0 0
        %3586 = vmatprep.subr.bf16.mxu0 0
        %3587 = vmatpush1.bf16.msra.mxu0 0
        %3588 = vmatprep.subr.bf16.mxu0 0
        %3589 = vmatpush1.bf16.msra.mxu0 0
        %3590 = vmatprep.subr.bf16.mxu0 0
        %3591 = vmatpush1.bf16.msra.mxu0 0
        %3592 = vmatprep.subr.bf16.mxu0 0
        %3593 = vmatpush1.bf16.msra.mxu0 0
        %3594 = vmatprep.subr.bf16.mxu0 0
        %3595 = vmatpush1.bf16.msra.mxu0 0
        %3596 = vmatprep.subr.bf16.mxu0 0
        %3597 = vmatpush1.bf16.msra.mxu0 0
        %3598 = vmatprep.subr.bf16.mxu0 0
        %3599 = vmatpush1.bf16.msra.mxu0 0
        %3600 = vmatprep.subr.bf16.mxu0 0
        %3601 = vmatpush1.bf16.msra.mxu0 0
        %3602 = vmatprep.subr.bf16.mxu0 0
        %3603 = vmatpush1.bf16.msra.mxu0 0
        %3604 = vmatprep.subr.bf16.mxu0 0
        %3605 = vmatpush1.bf16.msra.mxu0 0
        %3606 = vmatprep.subr.bf16.mxu0 0
        %3607 = vmatpush1.bf16.msra.mxu0 0
        %3608 = vmatprep.subr.bf16.mxu0 0
        %3609 = vmatpush1.bf16.msra.mxu0 0
        %3610 = vmatprep.mubr.bf16.mxu0 0
        %3611 = vmatmul.mubr.bf16.gmra.mrb[0].mxu0 %v3573
        %v3612 = vpop.f32.mrb[0].mxu0
        %v3613 = vadd.f32 0.0, %v3612
        %v3614 = vpop.f32.mrb[0].mxu0
        %v3615 = vpop.f32.mrb[0].mxu0
        %v3616 = vpop.f32.mrb[0].mxu0
        %3617 = vdwg.mxu0
        %3618 = vrot.lane.b32.xlu0 %v3398, 112
        %v3619 = vpop.permute.xlu0 %3618
        %3620 = vrot.lane.b32.xlu0 %v3399, 112
        %v3621 = vpop.permute.xlu0 %3620
        %v3623 = vsel %vm1213, %v3619, 0
        %v3626 = vsel %vm1213, %v3621, 0
        %3628 = vmatprep.subr.bf16.mxu0 0
        %3629 = vmatpush1.bf16.xpose.msra.mxu0 %v3626
        %3630 = vmatprep.subr.bf16.mxu0 0
        %3631 = vmatpush1.bf16.xpose.msra.mxu0 0
        %3632 = vmatprep.subr.bf16.mxu0 0
        %3633 = vmatpush1.bf16.xpose.msra.mxu0 0
        %3634 = vmatprep.subr.bf16.mxu0 0
        %3635 = vmatpush1.bf16.xpose.msra.mxu0 0
        %3636 = vmatprep.subr.bf16.mxu0 0
        %3637 = vmatpush1.bf16.xpose.msra.mxu0 0
        %3638 = vmatprep.subr.bf16.mxu0 0
        %3639 = vmatpush1.bf16.xpose.msra.mxu0 0
        %3640 = vmatprep.subr.bf16.mxu0 0
        %3641 = vmatpush1.bf16.xpose.msra.mxu0 0
        %3642 = vmatprep.subr.bf16.mxu0 0
        %3643 = vmatpush1.bf16.xpose.msra.mxu0 0
        %3644 = vmatprep.subr.bf16.mxu0 0
        %3645 = vmatpush1.bf16.xpose.msra.mxu0 0
        %3646 = vmatprep.subr.bf16.mxu0 0
        %3647 = vmatpush1.bf16.xpose.msra.mxu0 0
        %3648 = vmatprep.subr.bf16.mxu0 0
        %3649 = vmatpush1.bf16.xpose.msra.mxu0 0
        %3650 = vmatprep.subr.bf16.mxu0 0
        %3651 = vmatpush1.bf16.xpose.msra.mxu0 0
        %3652 = vmatprep.subr.bf16.mxu0 0
        %3653 = vmatpush1.bf16.xpose.msra.mxu0 0
        %3654 = vmatprep.subr.bf16.mxu0 0
        %3655 = vmatpush1.bf16.xpose.msra.mxu0 0
        %3656 = vmatprep.subr.bf16.mxu0 0
        %3657 = vmatpush1.bf16.xpose.msra.mxu0 0
        %3658 = vmatprep.subr.bf16.mxu0 0
        %3659 = vmatpush1.bf16.xpose.msra.mxu0 0
        %3660 = vmatprep.mubr.bf16.mxu0 0
        %3661 = vmatmul.mubr.bf16.gmra.mrb[0].mxu0 %v3623
        %v3662 = vpop.f32.mrb[0].mxu0
        %v3663 = vadd.f32 0.0, %v3662
        %v3664 = vpop.f32.mrb[0].mxu0
        %v3665 = vpop.f32.mrb[0].mxu0
        %v3666 = vpop.f32.mrb[0].mxu0
        %3667 = vdwg.mxu0
        %v3668 = vsel %vm1213, %v3663, -inf
        %3669 = vmax.xlane.f32.xlu0 %v3668
        %v3670 = vpop.xlane.xlu0 %3669
        %v3671 = vsub.f32 %v3663, %v3670
        %v3672 = vmul.f32 %v3671, 1.442695
        %v3673 = vpow.pop %v3672
        %v3674 = vsel %vm1213, %v3673, 0.0
        %3675 = vadd.xlane.f32.xlu0 %v3674
        %v3676 = vpop.xlane.xlu0 %3675
        %v3677 = vrcp.pop %v3676
        %v3678 = vmul.f32 %v3673, %v3677
        %v3679 = vpack.c.bf16 %v3678, %v3678
        %3680 = vrot.lane.b32.xlu0 %v3399, 80
        %v3681 = vpop.permute.xlu0 %3680
        %v3683 = vsel %vm1213, %v3679, 0
        %v3686 = vsel %vm1277, %v3681, 0
        %3688 = vmatprep.subr.bf16.mxu0 0
        %3689 = vmatpush1.bf16.msra.mxu0 %v3686
        %3690 = vmatprep.subr.bf16.mxu0 0
        %3691 = vmatpush1.bf16.msra.mxu0 0
        %3692 = vmatprep.subr.bf16.mxu0 0
        %3693 = vmatpush1.bf16.msra.mxu0 0
        %3694 = vmatprep.subr.bf16.mxu0 0
        %3695 = vmatpush1.bf16.msra.mxu0 0
        %3696 = vmatprep.subr.bf16.mxu0 0
        %3697 = vmatpush1.bf16.msra.mxu0 0
        %3698 = vmatprep.subr.bf16.mxu0 0
        %3699 = vmatpush1.bf16.msra.mxu0 0
        %3700 = vmatprep.subr.bf16.mxu0 0
        %3701 = vmatpush1.bf16.msra.mxu0 0
        %3702 = vmatprep.subr.bf16.mxu0 0
        %3703 = vmatpush1.bf16.msra.mxu0 0
        %3704 = vmatprep.subr.bf16.mxu0 0
        %3705 = vmatpush1.bf16.msra.mxu0 0
        %3706 = vmatprep.subr.bf16.mxu0 0
        %3707 = vmatpush1.bf16.msra.mxu0 0
        %3708 = vmatprep.subr.bf16.mxu0 0
        %3709 = vmatpush1.bf16.msra.mxu0 0
        %3710 = vmatprep.subr.bf16.mxu0 0
        %3711 = vmatpush1.bf16.msra.mxu0 0
        %3712 = vmatprep.subr.bf16.mxu0 0
        %3713 = vmatpush1.bf16.msra.mxu0 0
        %3714 = vmatprep.subr.bf16.mxu0 0
        %3715 = vmatpush1.bf16.msra.mxu0 0
        %3716 = vmatprep.subr.bf16.mxu0 0
        %3717 = vmatpush1.bf16.msra.mxu0 0
        %3718 = vmatprep.subr.bf16.mxu0 0
        %3719 = vmatpush1.bf16.msra.mxu0 0
        %3720 = vmatprep.mubr.bf16.mxu0 0
        %3721 = vmatmul.mubr.bf16.gmra.mrb[0].mxu0 %v3683
        %v3722 = vpop.f32.mrb[0].mxu0
        %v3723 = vadd.f32 0.0, %v3722
        %v3724 = vpop.f32.mrb[0].mxu0
        %v3725 = vpop.f32.mrb[0].mxu0
        %v3726 = vpop.f32.mrb[0].mxu0
        %3727 = vdwg.mxu0
        %3728 = vrot.lane.b32.xlu0 %v3398, 104
        %v3729 = vpop.permute.xlu0 %3728
        %3730 = vrot.lane.b32.xlu0 %v3399, 104
        %v3731 = vpop.permute.xlu0 %3730
        %v3733 = vsel %vm1213, %v3729, 0
        %v3736 = vsel %vm1213, %v3731, 0
        %3738 = vmatprep.subr.bf16.mxu0 0
        %3739 = vmatpush1.bf16.xpose.msra.mxu0 %v3736
        %3740 = vmatprep.subr.bf16.mxu0 0
        %3741 = vmatpush1.bf16.xpose.msra.mxu0 0
        %3742 = vmatprep.subr.bf16.mxu0 0
        %3743 = vmatpush1.bf16.xpose.msra.mxu0 0
        %3744 = vmatprep.subr.bf16.mxu0 0
        %3745 = vmatpush1.bf16.xpose.msra.mxu0 0
        %3746 = vmatprep.subr.bf16.mxu0 0
        %3747 = vmatpush1.bf16.xpose.msra.mxu0 0
        %3748 = vmatprep.subr.bf16.mxu0 0
        %3749 = vmatpush1.bf16.xpose.msra.mxu0 0
        %3750 = vmatprep.subr.bf16.mxu0 0
        %3751 = vmatpush1.bf16.xpose.msra.mxu0 0
        %3752 = vmatprep.subr.bf16.mxu0 0
        %3753 = vmatpush1.bf16.xpose.msra.mxu0 0
        %3754 = vmatprep.subr.bf16.mxu0 0
        %3755 = vmatpush1.bf16.xpose.msra.mxu0 0
        %3756 = vmatprep.subr.bf16.mxu0 0
        %3757 = vmatpush1.bf16.xpose.msra.mxu0 0
        %3758 = vmatprep.subr.bf16.mxu0 0
        %3759 = vmatpush1.bf16.xpose.msra.mxu0 0
        %3760 = vmatprep.subr.bf16.mxu0 0
        %3761 = vmatpush1.bf16.xpose.msra.mxu0 0
        %3762 = vmatprep.subr.bf16.mxu0 0
        %3763 = vmatpush1.bf16.xpose.msra.mxu0 0
        %3764 = vmatprep.subr.bf16.mxu0 0
        %3765 = vmatpush1.bf16.xpose.msra.mxu0 0
        %3766 = vmatprep.subr.bf16.mxu0 0
        %3767 = vmatpush1.bf16.xpose.msra.mxu0 0
        %3768 = vmatprep.subr.bf16.mxu0 0
        %3769 = vmatpush1.bf16.xpose.msra.mxu0 0
        %3770 = vmatprep.mubr.bf16.mxu0 0
        %3771 = vmatmul.mubr.bf16.gmra.mrb[0].mxu0 %v3733
        %v3772 = vpop.f32.mrb[0].mxu0
        %v3773 = vadd.f32 0.0, %v3772
        %v3774 = vpop.f32.mrb[0].mxu0
        %v3775 = vpop.f32.mrb[0].mxu0
        %v3776 = vpop.f32.mrb[0].mxu0
        %3777 = vdwg.mxu0
        %v3778 = vsel %vm1213, %v3773, -inf
        %3779 = vmax.xlane.f32.xlu0 %v3778
        %v3780 = vpop.xlane.xlu0 %3779
        %v3781 = vsub.f32 %v3773, %v3780
        %v3782 = vmul.f32 %v3781, 1.442695
        %v3783 = vpow.pop %v3782
        %v3784 = vsel %vm1213, %v3783, 0.0
        %3785 = vadd.xlane.f32.xlu0 %v3784
        %v3786 = vpop.xlane.xlu0 %3785
        %v3787 = vrcp.pop %v3786
        %v3788 = vmul.f32 %v3783, %v3787
        %v3789 = vpack.c.bf16 %v3788, %v3788
        %3790 = vrot.lane.b32.xlu0 %v3399, 72
        %v3791 = vpop.permute.xlu0 %3790
        %v3793 = vsel %vm1213, %v3789, 0
        %v3796 = vsel %vm1277, %v3791, 0
        %3798 = vmatprep.subr.bf16.mxu0 0
        %3799 = vmatpush1.bf16.msra.mxu0 %v3796
        %3800 = vmatprep.subr.bf16.mxu0 0
        %3801 = vmatpush1.bf16.msra.mxu0 0
        %3802 = vmatprep.subr.bf16.mxu0 0
        %3803 = vmatpush1.bf16.msra.mxu0 0
        %3804 = vmatprep.subr.bf16.mxu0 0
        %3805 = vmatpush1.bf16.msra.mxu0 0
        %3806 = vmatprep.subr.bf16.mxu0 0
        %3807 = vmatpush1.bf16.msra.mxu0 0
        %3808 = vmatprep.subr.bf16.mxu0 0
        %3809 = vmatpush1.bf16.msra.mxu0 0
        %3810 = vmatprep.subr.bf16.mxu0 0
        %3811 = vmatpush1.bf16.msra.mxu0 0
        %3812 = vmatprep.subr.bf16.mxu0 0
        %3813 = vmatpush1.bf16.msra.mxu0 0
        %3814 = vmatprep.subr.bf16.mxu0 0
        %3815 = vmatpush1.bf16.msra.mxu0 0
        %3816 = vmatprep.subr.bf16.mxu0 0
        %3817 = vmatpush1.bf16.msra.mxu0 0
        %3818 = vmatprep.subr.bf16.mxu0 0
        %3819 = vmatpush1.bf16.msra.mxu0 0
        %3820 = vmatprep.subr.bf16.mxu0 0
        %3821 = vmatpush1.bf16.msra.mxu0 0
        %3822 = vmatprep.subr.bf16.mxu0 0
        %3823 = vmatpush1.bf16.msra.mxu0 0
        %3824 = vmatprep.subr.bf16.mxu0 0
        %3825 = vmatpush1.bf16.msra.mxu0 0
        %3826 = vmatprep.subr.bf16.mxu0 0
        %3827 = vmatpush1.bf16.msra.mxu0 0
        %3828 = vmatprep.subr.bf16.mxu0 0
        %3829 = vmatpush1.bf16.msra.mxu0 0
        %3830 = vmatprep.mubr.bf16.mxu0 0
        %3831 = vmatmul.mubr.bf16.gmra.mrb[0].mxu0 %v3793
        %v3832 = vpop.f32.mrb[0].mxu0
        %v3833 = vadd.f32 0.0, %v3832
        %v3834 = vpop.f32.mrb[0].mxu0
        %v3835 = vpop.f32.mrb[0].mxu0
        %v3836 = vpop.f32.mrb[0].mxu0
        %3837 = vdwg.mxu0
        %3839 = vrot.lane.b32.xlu0 %v3613, 8
        %v3840 = vpop.permute.xlu0 %3839
        %3843 = vrot.lane.b32.xlu0 %v3723, 16
        %v3844 = vpop.permute.xlu0 %3843
        %3847 = vrot.lane.b32.xlu0 %v3833, 24
        %v3848 = vpop.permute.xlu0 %3847
        %v3850 = vsel %vm1213, %v3502, %v3840
        %v3851 = vsel %vm1665, %v3850, %v3844
        %v3852 = vsel %vm1667, %v3851, %v3848
        %s3853 = scalar_lea.vmem [#allocation14], 16
        %v3854 = vld [vmem:[%s3853] sm:$0xf]
        %v3855 = vld [vmem:[%s3853 + $0x4] sm:$0xf]
        %v3856 = vld [vmem:[%s3853 + $0x8] sm:$0xf]
        %v3857 = vld [vmem:[%s3853 + $0xc] sm:$0xf]
        %v3858 = vpack.c.bf16 %v3852, %v3852
        %s3859 = scalar_lea.vmem [#allocation16], 1
        %v3860 = vld [vmem:[%s3859] sm:$0x1]
        %v3862 = vlaneseq
        %v3863 = vshrl.u32 %v3862, 7
        %v3864 = vsub.s32 0, %v3863
        %v3865 = vrot.slane %v3860, %v3864
        %v3871 = vunpack.c.l.b16 %v3854
        %v3872 = vunpack.c.l.b16 %v3855
        %v3873 = vunpack.c.l.b16 %v3856
        %v3874 = vunpack.c.l.b16 %v3857
        %v3875 = vpack.c.b16 %v3872, %v3871
        %v3876 = vpack.c.b16 %v3874, %v3873
        %v3880 = vsel %vm1092, %v3858, 0
        %3882 = vmatprep.subr.bf16.mxu0 0
        %3883 = vmatpush1.bf16.msra.mxu0 %v3875
        %3884 = vmatprep.subr.bf16.mxu0 0
        %3885 = vmatpush1.bf16.msra.mxu0 %v3876
        %3886 = vmatprep.subr.bf16.mxu0 0
        %3887 = vmatpush1.bf16.msra.mxu0 0
        %3888 = vmatprep.subr.bf16.mxu0 0
        %3889 = vmatpush1.bf16.msra.mxu0 0
        %3890 = vmatprep.subr.bf16.mxu0 0
        %3891 = vmatpush1.bf16.msra.mxu0 0
        %3892 = vmatprep.subr.bf16.mxu0 0
        %3893 = vmatpush1.bf16.msra.mxu0 0
        %3894 = vmatprep.subr.bf16.mxu0 0
        %3895 = vmatpush1.bf16.msra.mxu0 0
        %3896 = vmatprep.subr.bf16.mxu0 0
        %3897 = vmatpush1.bf16.msra.mxu0 0
        %3898 = vmatprep.subr.bf16.mxu0 0
        %3899 = vmatpush1.bf16.msra.mxu0 0
        %3900 = vmatprep.subr.bf16.mxu0 0
        %3901 = vmatpush1.bf16.msra.mxu0 0
        %3902 = vmatprep.subr.bf16.mxu0 0
        %3903 = vmatpush1.bf16.msra.mxu0 0
        %3904 = vmatprep.subr.bf16.mxu0 0
        %3905 = vmatpush1.bf16.msra.mxu0 0
        %3906 = vmatprep.subr.bf16.mxu0 0
        %3907 = vmatpush1.bf16.msra.mxu0 0
        %3908 = vmatprep.subr.bf16.mxu0 0
        %3909 = vmatpush1.bf16.msra.mxu0 0
        %3910 = vmatprep.subr.bf16.mxu0 0
        %3911 = vmatpush1.bf16.msra.mxu0 0
        %3912 = vmatprep.subr.bf16.mxu0 0
        %3913 = vmatpush1.bf16.msra.mxu0 0
        %3914 = vmatprep.mubr.bf16.mxu0 0
        %3915 = vmatmul.mubr.bf16.gmra.mrb[0].mxu0 %v3880
        %v3916 = vpop.f32.mrb[0].mxu0
        %v3917 = vadd.f32 %v3865, %v3916
        %v3918 = vpop.f32.mrb[0].mxu0
        %v3919 = vpop.f32.mrb[0].mxu0
        %v3920 = vpop.f32.mrb[0].mxu0
        %3921 = vdwg.mxu0
        %v3922 = vadd.f32 %v3262, %v3917
        %s3923 = scalar_lea.vmem [#allocation20], 1
        %v3924 = vld [vmem:[%s3923] sm:$0x1]
        %s3925 = scalar_lea.vmem [#allocation22], 1
        %v3926 = vld [vmem:[%s3925] sm:$0x1]
        %v3927 = vsel %vm1092, %v3922, 0.0
        %3928 = vadd.xlane.f32.xlu0 %v3927
        %v3929 = vpop.xlane.xlu0 %3928
        %v3930 = vmul.f32 %v3929, %v1742
        %v3931 = vsub.f32 %v3922, %v3930
        %v3932 = vmul.f32 %v3931, %v3931
        %v3933 = vsel %vm1092, %v3932, 0.0
        %3934 = vadd.xlane.f32.xlu0 %v3933
        %v3935 = vpop.xlane.xlu0 %3934
        %v3936 = vmul.f32 %v3935, %v1742
        %v3937 = vadd.f32 %v3936, 1e-05
        %v3938 = vrsqrt.pop %v3937
        %v3939 = vmul.f32 %v3931, %v3938
        %v3941 = vlaneseq
        %v3942 = vshrl.u32 %v3941, 7
        %v3943 = vsub.s32 0, %v3942
        %v3944 = vrot.slane %v3924, %v3943
        %v3946 = vmul.f32 %v3939, %v3944
        %v3948 = vlaneseq
        %v3949 = vshrl.u32 %v3948, 7
        %v3950 = vsub.s32 0, %v3949
        %v3951 = vrot.slane %v3926, %v3950
        %v3953 = vadd.f32 %v3946, %v3951
        %s3954 = scalar_lea.vmem [#allocation25], 16
        %v3955 = vld [vmem:[%s3954] sm:$0xf]
        %v3956 = vld [vmem:[%s3954 + $0x4] sm:$0xf]
        %v3957 = vld [vmem:[%s3954 + $0x8] sm:$0xf]
        %v3958 = vld [vmem:[%s3954 + $0xc] sm:$0xf]
        %v3959 = vpack.c.bf16 %v3953, %v3953
        %s3960 = scalar_lea.vmem [#allocation26], 1
        %v3961 = vld [vmem:[%s3960] sm:$0x1]
        %v3963 = vlaneseq
        %v3964 = vshrl.u32 %v3963, 7
        %v3965 = vsub.s32 0, %v3964
        %v3966 = vrot.slane %v3961, %v3965
        %v3972 = vunpack.c.l.b16 %v3955
        %v3973 = vunpack.c.l.b16 %v3956
        %v3974 = vunpack.c.l.b16 %v3957
        %v3975 = vunpack.c.l.b16 %v3958
        %v3976 = vpack.c.b16 %v3973, %v3972
        %v3977 = vpack.c.b16 %v3975, %v3974
        %v3981 = vsel %vm1092, %v3959, 0
        %3983 = vmatprep.subr.bf16.mxu0 0
        %3984 = vmatpush1.bf16.msra.mxu0 %v3976
        %3985 = vmatprep.subr.bf16.mxu0 0
        %3986 = vmatpush1.bf16.msra.mxu0 %v3977
        %3987 = vmatprep.subr.bf16.mxu0 0
        %3988 = vmatpush1.bf16.msra.mxu0 0
        %3989 = vmatprep.subr.bf16.mxu0 0
        %3990 = vmatpush1.bf16.msra.mxu0 0
        %3991 = vmatprep.subr.bf16.mxu0 0
        %3992 = vmatpush1.bf16.msra.mxu0 0
        %3993 = vmatprep.subr.bf16.mxu0 0
        %3994 = vmatpush1.bf16.msra.mxu0 0
        %3995 = vmatprep.subr.bf16.mxu0 0
        %3996 = vmatpush1.bf16.msra.mxu0 0
        %3997 = vmatprep.subr.bf16.mxu0 0
        %3998 = vmatpush1.bf16.msra.mxu0 0
        %3999 = vmatprep.subr.bf16.mxu0 0
        %4000 = vmatpush1.bf16.msra.mxu0 0
        %4001 = vmatprep.subr.bf16.mxu0 0
        %4002 = vmatpush1.bf16.msra.mxu0 0
        %4003 = vmatprep.subr.bf16.mxu0 0
        %4004 = vmatpush1.bf16.msra.mxu0 0
        %4005 = vmatprep.subr.bf16.mxu0 0
        %4006 = vmatpush1.bf16.msra.mxu0 0
        %4007 = vmatprep.subr.bf16.mxu0 0
        %4008 = vmatpush1.bf16.msra.mxu0 0
        %4009 = vmatprep.subr.bf16.mxu0 0
        %4010 = vmatpush1.bf16.msra.mxu0 0
        %4011 = vmatprep.subr.bf16.mxu0 0
        %4012 = vmatpush1.bf16.msra.mxu0 0
        %4013 = vmatprep.subr.bf16.mxu0 0
        %4014 = vmatpush1.bf16.msra.mxu0 0
        %4015 = vmatprep.mubr.bf16.mxu0 0
        %4016 = vmatmul.mubr.bf16.gmra.mrb[0].mxu0 %v3981
        %v4017 = vpop.f32.mrb[0].mxu0
        %v4018 = vadd.f32 %v3966, %v4017
        %v4019 = vpop.f32.mrb[0].mxu0
        %v4020 = vpop.f32.mrb[0].mxu0
        %v4021 = vpop.f32.mrb[0].mxu0
        %4022 = vdwg.mxu0
        %v4023 = vmax.f32 %v4018, 0.0
        %s4024 = scalar_lea.vmem %s23, 32
        %v4025 = vld [vmem:[%s4024] sm:$0xf]
        %v4026 = vld [vmem:[%s4024 + $0x4] sm:$0xf]
        %v4027 = vld [vmem:[%s4024 + $0x8] sm:$0xf]
        %v4028 = vld [vmem:[%s4024 + $0xc] sm:$0xf]
        %v4029 = vld [vmem:[%s4024 + $0x10] sm:$0xf]
        %v4030 = vld [vmem:[%s4024 + $0x14] sm:$0xf]
        %v4031 = vld [vmem:[%s4024 + $0x18] sm:$0xf]
        %v4032 = vld [vmem:[%s4024 + $0x1c] sm:$0xf]
        %v4033 = vpack.c.bf16 %v4023, %v4023
        %s4034 = scalar_lea.vmem [#allocation28], 1
        %v4035 = vld [vmem:[%s4034] sm:$0x1]
        %v4037 = vlaneseq
        %v4038 = vshrl.u32 %v4037, 7
        %v4039 = vsub.s32 0, %v4038
        %v4040 = vrot.slane %v4035, %v4039
        %v4050 = vunpack.c.l.b16 %v4025
        %v4051 = vunpack.c.l.b16 %v4026
        %v4052 = vunpack.c.l.b16 %v4027
        %v4053 = vunpack.c.l.b16 %v4028
        %v4054 = vunpack.c.l.b16 %v4029
        %v4055 = vunpack.c.l.b16 %v4030
        %v4056 = vunpack.c.l.b16 %v4031
        %v4057 = vunpack.c.l.b16 %v4032
        %v4058 = vpack.c.b16 %v4051, %v4050
        %v4059 = vpack.c.b16 %v4053, %v4052
        %v4060 = vpack.c.b16 %v4055, %v4054
        %v4061 = vpack.c.b16 %v4057, %v4056
        %v4067 = vsel %vm2561, %v4033, 0
        %4069 = vmatprep.subr.bf16.mxu0 0
        %4070 = vmatpush1.bf16.msra.mxu0 %v4058
        %4071 = vmatprep.subr.bf16.mxu0 0
        %4072 = vmatpush1.bf16.msra.mxu0 %v4059
        %4073 = vmatprep.subr.bf16.mxu0 0
        %4074 = vmatpush1.bf16.msra.mxu0 %v4060
        %4075 = vmatprep.subr.bf16.mxu0 0
        %4076 = vmatpush1.bf16.msra.mxu0 %v4061
        %4077 = vmatprep.subr.bf16.mxu0 0
        %4078 = vmatpush1.bf16.msra.mxu0 0
        %4079 = vmatprep.subr.bf16.mxu0 0
        %4080 = vmatpush1.bf16.msra.mxu0 0
        %4081 = vmatprep.subr.bf16.mxu0 0
        %4082 = vmatpush1.bf16.msra.mxu0 0
        %4083 = vmatprep.subr.bf16.mxu0 0
        %4084 = vmatpush1.bf16.msra.mxu0 0
        %4085 = vmatprep.subr.bf16.mxu0 0
        %4086 = vmatpush1.bf16.msra.mxu0 0
        %4087 = vmatprep.subr.bf16.mxu0 0
        %4088 = vmatpush1.bf16.msra.mxu0 0
        %4089 = vmatprep.subr.bf16.mxu0 0
        %4090 = vmatpush1.bf16.msra.mxu0 0
        %4091 = vmatprep.subr.bf16.mxu0 0
        %4092 = vmatpush1.bf16.msra.mxu0 0
        %4093 = vmatprep.subr.bf16.mxu0 0
        %4094 = vmatpush1.bf16.msra.mxu0 0
        %4095 = vmatprep.subr.bf16.mxu0 0
        %4096 = vmatpush1.bf16.msra.mxu0 0
        %4097 = vmatprep.subr.bf16.mxu0 0
        %4098 = vmatpush1.bf16.msra.mxu0 0
        %4099 = vmatprep.subr.bf16.mxu0 0
        %4100 = vmatpush1.bf16.msra.mxu0 0
        %4101 = vmatprep.mubr.bf16.mxu0 0
        %4102 = vmatmul.mubr.bf16.gmra.mrb[0].mxu0 %v4067
        %v4103 = vpop.f32.mrb[0].mxu0
        %v4104 = vadd.f32 %v4040, %v4103
        %v4105 = vpop.f32.mrb[0].mxu0
        %v4106 = vpop.f32.mrb[0].mxu0
        %v4107 = vpop.f32.mrb[0].mxu0
        %4108 = vdwg.mxu0
        %v4109 = vadd.f32 %v3953, %v4104
        %s4110 = scalar_lea.vmem %s19, 1
        %v4111 = vld [vmem:[%s4110] sm:$0x1]
        %s4112 = scalar_lea.vmem [#allocation23], 1
        %v4113 = vld [vmem:[%s4112] sm:$0x1]
        %v4114 = vsel %vm1092, %v4109, 0.0
        %4115 = vadd.xlane.f32.xlu0 %v4114
        %v4116 = vpop.xlane.xlu0 %4115
        %v4117 = vmul.f32 %v4116, %v1742
        %v4118 = vsub.f32 %v4109, %v4117
        %v4119 = vmul.f32 %v4118, %v4118
        %v4120 = vsel %vm1092, %v4119, 0.0
        %4121 = vadd.xlane.f32.xlu0 %v4120
        %v4122 = vpop.xlane.xlu0 %4121
        %v4123 = vmul.f32 %v4122, %v1742
        %v4124 = vadd.f32 %v4123, 1e-05
        %v4125 = vrsqrt.pop %v4124
        %v4126 = vmul.f32 %v4118, %v4125
        %v4128 = vlaneseq
        %v4129 = vshrl.u32 %v4128, 7
        %v4130 = vsub.s32 0, %v4129
        %v4131 = vrot.slane %v4111, %v4130
        %v4133 = vmul.f32 %v4126, %v4131
        %v4135 = vlaneseq
        %v4136 = vshrl.u32 %v4135, 7
        %v4137 = vsub.s32 0, %v4136
        %v4138 = vrot.slane %v4113, %v4137
        %v4140 = vadd.f32 %v4133, %v4138
        %v4141 = vld [vmem:[%s25] sm:$0xf]
        %v4142 = vld [vmem:[%s25 + $0x4] sm:$0xf]
        %v4143 = vld [vmem:[%s25 + $0x8] sm:$0xf]
        %v4144 = vld [vmem:[%s25 + $0xc] sm:$0xf]
        %v4145 = vpack.c.bf16 %v4140, %v4140
        %v4146 = vld [vmem:[%s26] sm:$0x1]
        %v4148 = vlaneseq
        %v4149 = vshrl.u32 %v4148, 7
        %v4150 = vsub.s32 0, %v4149
        %v4151 = vrot.slane %v4146, %v4150
        %v4157 = vunpack.c.l.b16 %v4141
        %v4158 = vunpack.c.l.b16 %v4142
        %v4159 = vunpack.c.l.b16 %v4143
        %v4160 = vunpack.c.l.b16 %v4144
        %v4161 = vpack.c.b16 %v4158, %v4157
        %v4162 = vpack.c.b16 %v4160, %v4159
        %v4166 = vsel %vm1092, %v4145, 0
        %4168 = vmatprep.subr.bf16.mxu0 0
        %4169 = vmatpush1.bf16.msra.mxu0 %v4161
        %4170 = vmatprep.subr.bf16.mxu0 0
        %4171 = vmatpush1.bf16.msra.mxu0 %v4162
        %4172 = vmatprep.subr.bf16.mxu0 0
        %4173 = vmatpush1.bf16.msra.mxu0 0
        %4174 = vmatprep.subr.bf16.mxu0 0
        %4175 = vmatpush1.bf16.msra.mxu0 0
        %4176 = vmatprep.subr.bf16.mxu0 0
        %4177 = vmatpush1.bf16.msra.mxu0 0
        %4178 = vmatprep.subr.bf16.mxu0 0
        %4179 = vmatpush1.bf16.msra.mxu0 0
        %4180 = vmatprep.subr.bf16.mxu0 0
        %4181 = vmatpush1.bf16.msra.mxu0 0
        %4182 = vmatprep.subr.bf16.mxu0 0
        %4183 = vmatpush1.bf16.msra.mxu0 0
        %4184 = vmatprep.subr.bf16.mxu0 0
        %4185 = vmatpush1.bf16.msra.mxu0 0
        %4186 = vmatprep.subr.bf16.mxu0 0
        %4187 = vmatpush1.bf16.msra.mxu0 0
        %4188 = vmatprep.subr.bf16.mxu0 0
        %4189 = vmatpush1.bf16.msra.mxu0 0
        %4190 = vmatprep.subr.bf16.mxu0 0
        %4191 = vmatpush1.bf16.msra.mxu0 0
        %4192 = vmatprep.subr.bf16.mxu0 0
        %4193 = vmatpush1.bf16.msra.mxu0 0
        %4194 = vmatprep.subr.bf16.mxu0 0
        %4195 = vmatpush1.bf16.msra.mxu0 0
        %4196 = vmatprep.subr.bf16.mxu0 0
        %4197 = vmatpush1.bf16.msra.mxu0 0
        %4198 = vmatprep.subr.bf16.mxu0 0
        %4199 = vmatpush1.bf16.msra.mxu0 0
        %4200 = vmatprep.mubr.bf16.mxu0 0
        %4201 = vmatmul.mubr.bf16.gmra.mrb[0].mxu0 %v4166
        %v4202 = vpop.f32.mrb[0].mxu0
        %v4203 = vadd.f32 %v4151, %v4202
        %v4204 = vpop.f32.mrb[0].mxu0
        %v4205 = vpop.f32.mrb[0].mxu0
        %v4206 = vpop.f32.mrb[0].mxu0
        %4207 = vdwg.mxu0
        %4208 = vst [vmem:[%s1059] sm:$0xff] %v4203
        %s4209 = sand.u32 %s632, 1
        %s4210 = scalar_lea.sflag [#allocation4], %s4209
        %s4211 = sand.u32 %s632, 1
        %s4212 = smul.addr %s4211, 8
        %s4213 = scalar_lea.vmem [#allocation29], %s4212
        // Predicated region
        $region197: #{image_to_audio_forward.1} parent=127 // pred_check
          %p4214 = pneg %p642
        $region198: #{image_to_audio_forward.1} parent=127 // pred_check_branch
          %4216 = sbr.rel (%p4214) target = $region200
        $region199: #{image_to_audio_forward.1} parent=127 // pred_region
          %s4218 = ssub.s32 128, 128
          %4219 = vsyncadd %s4210, %s4218
          %s4220 = smul.addr %s52, 128
          %s4221 = scalar_lea.hbm %s27, %s4220
          %s4223 = sshll.u32 %s4213, 4
          %s4224 = int_to_ptr.vmem [resolvable:$true] %s4223
          %4226 = dma.vmem_to_hbm [thread:$0]  %s4224, 128, %s4221, %s4210
        $region200: #{image_to_audio_forward.1} parent=127 // pred_fallthru
          _
      $region128: #{image_to_audio_forward.1} parent=5 // pred_fallthru
        _
      %p4227 = scmp.le.s32.totalorder 2, %s47
      // Predicated region
      $region201: #{image_to_audio_forward.1} parent=5 // pred_check
        %p4228 = pneg %p4227
      $region202: #{image_to_audio_forward.1} parent=5 // pred_check_branch
        %4230 = sbr.rel (%p4228) target = $region204
      $region203: #{image_to_audio_forward.1} parent=5 // pred_region
        %s4231 = ssub.s32 %s47, 2
        // Predicated region
        $region205: #{image_to_audio_forward.1} parent=203 // pred_check
          %p4232 = pneg %p648
        $region206: #{image_to_audio_forward.1} parent=203 // pred_check_branch
          %4234 = sbr.rel (%p4232) target = $region208
        $region207: #{image_to_audio_forward.1} parent=203 // pred_region
          %s4235 = sand.u32 %s633, 1
          %s4236 = scalar_lea.sflag [#allocation4], %s4235
          %s4237 = sand.u32 %s633, 1
          %s4238 = smul.addr %s4237, 8
          %s4239 = scalar_lea.vmem [#allocation29], %s4238
          %4240 = dma.done %s4236, 128
        $region208: #{image_to_audio_forward.1} parent=203 // pred_fallthru
          _
      $region204: #{image_to_audio_forward.1} parent=5 // pred_fallthru
        _
    $region6: #{image_to_audio_forward.1} parent=1 // loop_footer
      %s51 = sadd.s32 1, %s47
    $region7: #{image_to_audio_forward.1} parent=1 // loop_footer_branch
      %46 = sbr.rel target = $region3
    $region8: #{image_to_audio_forward.1} parent=1 // loop_exit
      _
    %4241 = vsyncpa [#allocation3], 1
    %s4242 = scalar_lea.sflag [#allocation3], 1
    %4243 = vsyncpa %s4242, 1
    %4244 = vsyncpa [#allocation6], 1
    %4245 = vsyncpa [#allocation9], 1
    %4246 = vsyncpa [#allocation12], 1
    %4247 = vsyncpa [#allocation15], 1
    %4248 = vsyncpa [#allocation18], 1
    %4249 = vsyncpa [#allocation21], 1
    %4250 = vsyncpa [#allocation24], 1
    %4251 = vsyncpa [#allocation27], 1
    %4252 = vsyncpa [#allocation4], 1
    %s4253 = scalar_lea.sflag [#allocation4], 1
    %4254 = vsyncpa %s4253, 1

</llo_original>
